<compile_context>
chip_gen: v7x
topology: tpu7x:2x2x1
jax: 0.10.0
libtpu: 0.0.40
codegen_flags: <defaults>
</compile_context>

<pallas_src>
import functools
import math

import jax
import jax.numpy as jnp
from jax import lax
from jax.experimental import pallas as pl
from jax.experimental.pallas import tpu as pltpu


_LN_EPS = 1e-5  # nn.LayerNorm default


def _layer_norm_f32(h, gamma, beta):
    # h: (S, D) f32, gamma/beta: (1, D) f32
    mu = jnp.mean(h, axis=-1, keepdims=True)
    var = jnp.mean(jnp.square(h - mu), axis=-1, keepdims=True)
    return (h - mu) * lax.rsqrt(var + _LN_EPS) * gamma + beta


# ----------------------------------------------------------------------------
# Fused whole-stack kernel
# ----------------------------------------------------------------------------
def transformer_stack_kernel(x_ref, cos_ref, sin_ref,
                             n1g_ref, n1b_ref, n2g_ref, n2b_ref,
                             og_ref, ob_ref,
                             wq_ref, wk_ref, wv_ref, wo_ref,
                             wg_ref, wu_ref, wd_ref,
                             o_ref, *, n_heads, d_head):
    """Grid = (B, n_layers).  o_ref (the residual stream) is resident across
    the layer ("arbitrary") axis; per-layer weights stream per step."""
    layer = pl.program_id(1)

    @pl.when(layer == 0)
    def _init():
        o_ref[0] = x_ref[0]                         # load residual stream once

    h = o_ref[0]                                    # (S, D) f32
    S, D = h.shape
    half = d_head // 2

    # ---------------- attention block ----------------
    ln1 = _layer_norm_f32(h, n1g_ref[0], n1b_ref[0]).astype(jnp.bfloat16)
    # Full-width projections; 1/sqrt(d_head) is pre-folded into wq.
    q = jnp.dot(ln1, wq_ref[0], preferred_element_type=jnp.float32)   # (S, D)
    k = jnp.dot(ln1, wk_ref[0], preferred_element_type=jnp.float32)
    v = jnp.dot(ln1, wv_ref[0], preferred_element_type=jnp.float32)

    cos = cos_ref[...]                              # (S, d_head)  [cos, cos]
    sin = sin_ref[...]                              # (S, d_head)  [-sin, sin]

    def rope(t):                                    # rotate-half RoPE on (S, d_head)
        return t * cos + pltpu.roll(t, shift=half, axis=1) * sin

    row = lax.broadcasted_iota(jnp.int32, (S, S), 0)
    col = lax.broadcasted_iota(jnp.int32, (S, S), 1)
    causal = col <= row

    # TODO(synk): flash-style online softmax + KV tiling for long sequences.
    attn = jnp.zeros((S, D), jnp.float32)
    for hh in range(n_heads):                       # static unroll, 128-lane aligned slices
        a, b = hh * d_head, (hh + 1) * d_head
        qh = rope(q[:, a:b]).astype(jnp.bfloat16)
        kh = rope(k[:, a:b]).astype(jnp.bfloat16)
        vh = v[:, a:b].astype(jnp.bfloat16)
        s = lax.dot_general(qh, kh, (((1,), (1,)), ((), ())),
                            preferred_element_type=jnp.float32)       # (S, S)
        s = jnp.where(causal, s, jnp.float32(-1e30))
        s = s - jnp.max(s, axis=-1, keepdims=True)
        p = jnp.exp(s)
        p = (p / jnp.sum(p, axis=-1, keepdims=True)).astype(jnp.bfloat16)
        head_out = jnp.dot(p, vh, preferred_element_type=jnp.float32)  # (S, d_head)
        attn = attn + jnp.dot(head_out.astype(jnp.bfloat16),
                              wo_ref[0, a:b, :],
                              preferred_element_type=jnp.float32)      # (S, D)
    h = h + attn

    # ---------------- SwiGLU FFN block ----------------
    ln2 = _layer_norm_f32(h, n2g_ref[0], n2b_ref[0]).astype(jnp.bfloat16)
    gate = jnp.dot(ln2, wg_ref[0], preferred_element_type=jnp.float32)  # (S, Dff)
    up = jnp.dot(ln2, wu_ref[0], preferred_element_type=jnp.float32)
    act = (gate * jax.nn.sigmoid(gate) * up).astype(jnp.bfloat16)       # silu(gate)*up
    h = h + jnp.dot(act, wd_ref[0], preferred_element_type=jnp.float32)

    o_ref[0] = h

    # Fuse out_layer_norm into the last layer step (no extra HBM round trip).
    @pl.when(layer == pl.num_programs(1) - 1)
    def _final():
        o_ref[0] = _layer_norm_f32(o_ref[0], og_ref[...], ob_ref[...])


# ----------------------------------------------------------------------------
# pallas_call wrapper
# ----------------------------------------------------------------------------
def _vmem_limit_bytes():
    # Per-generation cap: ~112 MiB on v5e/v6e (128 MiB VMEM), ~56 MiB on v7x
    # (64 MiB VMEM).  Actual residency here is only a few MiB.
    try:
        cap = int(pltpu.get_tpu_info().vmem_capacity_bytes)
    except Exception:
        cap = 64 * 1024 * 1024
    return min((cap * 7) // 8, 112 * 1024 * 1024)


def run_transformer_stack(x, cos, sin, layers, out_g, out_b, *, n_heads, d_head):
    B, S, D = x.shape
    L = layers["wq"].shape[0]
    Dff = layers["wg"].shape[2]

    def invariant(shape):
        return pl.BlockSpec(shape, lambda b, l: (0,) * len(shape))

    def per_layer(shape):
        return pl.BlockSpec(shape, lambda b, l: (l,) + (0,) * (len(shape) - 1))

    return pl.pallas_call(
        functools.partial(transformer_stack_kernel, n_heads=n_heads, d_head=d_head),
        out_shape=jax.ShapeDtypeStruct((B, S, D), jnp.float32),
        grid=(B, L),
        in_specs=[
            pl.BlockSpec((1, S, D), lambda b, l: (b, 0, 0)),   # x (read at layer 0)
            invariant((S, d_head)), invariant((S, d_head)),    # rope cos / sin
            per_layer((1, 1, D)), per_layer((1, 1, D)),        # norm1 gamma/beta
            per_layer((1, 1, D)), per_layer((1, 1, D)),        # norm2 gamma/beta
            invariant((1, D)), invariant((1, D)),              # out LN gamma/beta
            per_layer((1, D, D)),                              # wq (scale folded in)
            per_layer((1, D, D)),                              # wk
            per_layer((1, D, D)),                              # wv
            per_layer((1, D, D)),                              # wo
            per_layer((1, D, Dff)),                            # ff gate
            per_layer((1, D, Dff)),                            # ff up
            per_layer((1, Dff, D)),                            # ff down
        ],
        out_specs=pl.BlockSpec((1, S, D), lambda b, l: (b, 0, 0)),
        compiler_params=pltpu.CompilerParams(
            dimension_semantics=("parallel", "arbitrary"),
            vmem_limit_bytes=_vmem_limit_bytes()),
    )(x, cos, sin,
      layers["n1g"], layers["n1b"], layers["n2g"], layers["n2b"],
      out_g, out_b,
      layers["wq"], layers["wk"], layers["wv"], layers["wo"],
      layers["wg"], layers["wu"], layers["wd"])


# ----------------------------------------------------------------------------
# Model: params + forward
# ----------------------------------------------------------------------------
def precompute_rope_tables(seq_len, d_head, base=500000.0):
    """Full-width (S, d_head) tables: cos_full=[cos,cos], sin_signed=[-sin,sin]."""
    half = d_head // 2
    idx = jnp.arange(0, half, dtype=jnp.float32)
    freqs = 1.0 / (base ** (2.0 * idx / d_head))
    t = jnp.arange(seq_len, dtype=jnp.float32)
    ang = jnp.outer(t, freqs)                                  # (S, d_head//2)
    cos, sin = jnp.cos(ang), jnp.sin(ang)
    cos_full = jnp.concatenate([cos, cos], axis=-1)
    sin_signed = jnp.concatenate([-sin, sin], axis=-1)
    return cos_full, sin_signed


def init_params(key, *, d_model, n_heads, n_layers, ff_mult, vocab_size):
    d_head = d_model // n_heads
    d_ff = d_model * ff_mult
    scale = 1.0 / math.sqrt(d_head)                 # folded into wq (pre-RoPE is OK: RoPE is linear)
    ks = jax.random.split(key, 1 + 5 * n_layers)

    def lin(k, fan_in, fan_out):                    # (in, out) layout, x @ w
        bound = 1.0 / math.sqrt(fan_in)
        return jax.random.uniform(k, (fan_in, fan_out), jnp.float32,
                                  minval=-bound, maxval=bound)

    wq, wk, wv, wo, wg, wu, wd = [], [], [], [], [], [], []
    for li in range(n_layers):
        base = 1 + 5 * li
        wqkv = lin(ks[base + 0], d_model, 3 * d_model)          # mixed_qkv
        wq.append((wqkv[:, :d_model] * scale).astype(jnp.bfloat16))
        wk.append(wqkv[:, d_model:2 * d_model].astype(jnp.bfloat16))
        wv.append(wqkv[:, 2 * d_model:].astype(jnp.bfloat16))
        wo.append(lin(ks[base + 1], d_model, d_model).astype(jnp.bfloat16))
        wg.append(lin(ks[base + 2], d_model, d_ff).astype(jnp.bfloat16))
        wu.append(lin(ks[base + 3], d_model, d_ff).astype(jnp.bfloat16))
        wd.append(lin(ks[base + 4], d_ff, d_model).astype(jnp.bfloat16))

    ones = jnp.ones((n_layers, 1, d_model), jnp.float32)
    zeros = jnp.zeros((n_layers, 1, d_model), jnp.float32)
    return {
        "tok_emb": jax.random.normal(ks[0], (vocab_size, d_model), jnp.float32),
        "out_ln_g": jnp.ones((1, d_model), jnp.float32),
        "out_ln_b": jnp.zeros((1, d_model), jnp.float32),
        "layers": {
            "wq": jnp.stack(wq), "wk": jnp.stack(wk), "wv": jnp.stack(wv),
            "wo": jnp.stack(wo),
            "wg": jnp.stack(wg), "wu": jnp.stack(wu), "wd": jnp.stack(wd),
            "n1g": ones, "n1b": zeros, "n2g": ones, "n2b": zeros,
        },
    }


def transformer_forward(params, src, emb=None, *, n_heads, max_seq_len):
    """src: (B, S) int32 token ids; emb: optional (B, d_model) f32 conditioning."""
    B, S = src.shape
    D = params["tok_emb"].shape[1]
    d_head = D // n_heads

    hidden = params["tok_emb"][src]                            # (B, S, D) glue gather
    if emb is not None:
        # torch.cat([emb[:, None, :], hidden[:, :-1, :]], dim=1)
        hidden = jnp.concatenate([emb[:, None, :], hidden[:, :-1, :]], axis=1)

    cos_full, sin_full = precompute_rope_tables(max_seq_len, d_head)
    cos, sin = cos_full[:S], sin_full[:S]

    return run_transformer_stack(hidden, cos, sin, params["layers"],
                                 params["out_ln_g"], params["out_ln_b"],
                                 n_heads=n_heads, d_head=d_head)   # (B, S, D)


# ----------------------------------------------------------------------------
if __name__ == "__main__":
    D_MODEL, N_HEADS, N_LAYERS, FF_MULT = 256, 2, 2, 2
    VOCAB, MAX_SEQ_LEN = 128, 32
    B, S = 2, 16

    key = jax.random.PRNGKey(0)
    k_param, k_src, k_emb = jax.random.split(key, 3)

    params = init_params(k_param, d_model=D_MODEL, n_heads=N_HEADS,
                         n_layers=N_LAYERS, ff_mult=FF_MULT, vocab_size=VOCAB)
    src = jax.random.randint(k_src, (B, S), 0, VOCAB, dtype=jnp.int32)
    emb = jax.random.normal(k_emb, (B, D_MODEL), jnp.float32)

    fwd = jax.jit(functools.partial(transformer_forward,
                                    n_heads=N_HEADS, max_seq_len=MAX_SEQ_LEN))

    out_cond = jax.block_until_ready(fwd(params, src, emb))      # conditioned path
    assert out_cond.shape == (B, S, D_MODEL), out_cond.shape

    out_uncond = jax.block_until_ready(fwd(params, src, None))   # unconditioned path
    assert out_uncond.shape == (B, S, D_MODEL), out_uncond.shape

    assert bool(jnp.all(jnp.isfinite(out_cond)))
    assert bool(jnp.all(jnp.isfinite(out_uncond)))
    print("KERNEL_OK")
</pallas_src>

<mosaic_0001>
module attributes {stable_mosaic.version = 11 : i64} {
  func.func @transformer_stack_kernel(%arg0: i32, %arg1: i32, %arg2: memref<1x16x256xf32, #tpu.memory_space<vmem>>, %arg3: memref<16x128xf32, #tpu.memory_space<vmem>>, %arg4: memref<16x128xf32, #tpu.memory_space<vmem>>, %arg5: memref<1x1x256xf32, #tpu.memory_space<vmem>>, %arg6: memref<1x1x256xf32, #tpu.memory_space<vmem>>, %arg7: memref<1x1x256xf32, #tpu.memory_space<vmem>>, %arg8: memref<1x1x256xf32, #tpu.memory_space<vmem>>, %arg9: memref<1x256xf32, #tpu.memory_space<vmem>>, %arg10: memref<1x256xf32, #tpu.memory_space<vmem>>, %arg11: memref<1x256x256xbf16, #tpu.memory_space<vmem>>, %arg12: memref<1x256x256xbf16, #tpu.memory_space<vmem>>, %arg13: memref<1x256x256xbf16, #tpu.memory_space<vmem>>, %arg14: memref<1x256x256xbf16, #tpu.memory_space<vmem>>, %arg15: memref<1x256x512xbf16, #tpu.memory_space<vmem>>, %arg16: memref<1x256x512xbf16, #tpu.memory_space<vmem>>, %arg17: memref<1x512x256xbf16, #tpu.memory_space<vmem>>, %arg18: memref<1x16x256xf32, #tpu.memory_space<vmem>>) attributes {dimension_semantics = [#tpu.dimension_semantics<parallel>, #tpu.dimension_semantics<arbitrary>], iteration_bounds = array<i64: 2, 2>, scalar_prefetch = 0 : i64, scratch_operands = 0 : i64, tpu.core_type = #tpu.core_type<tc>, window_params = [{transform_indices = @transform_0, window_bounds = array<i64: 1, 16, 256>}, {pipeline_mode = #tpu.pipeline_mode<synchronous>, transform_indices = @transform_1, window_bounds = array<i64: 16, 128>}, {pipeline_mode = #tpu.pipeline_mode<synchronous>, transform_indices = @transform_2, window_bounds = array<i64: 16, 128>}, {transform_indices = @transform_3, window_bounds = array<i64: 1, 1, 256>}, {transform_indices = @transform_4, window_bounds = array<i64: 1, 1, 256>}, {transform_indices = @transform_5, window_bounds = array<i64: 1, 1, 256>}, {transform_indices = @transform_6, window_bounds = array<i64: 1, 1, 256>}, {pipeline_mode = #tpu.pipeline_mode<synchronous>, transform_indices = @transform_7, window_bounds = array<i64: 1, 256>}, {pipeline_mode = #tpu.pipeline_mode<synchronous>, transform_indices = @transform_8, window_bounds = array<i64: 1, 256>}, {transform_indices = @transform_9, window_bounds = array<i64: 1, 256, 256>}, {transform_indices = @transform_10, window_bounds = array<i64: 1, 256, 256>}, {transform_indices = @transform_11, window_bounds = array<i64: 1, 256, 256>}, {transform_indices = @transform_12, window_bounds = array<i64: 1, 256, 256>}, {transform_indices = @transform_13, window_bounds = array<i64: 1, 256, 512>}, {transform_indices = @transform_14, window_bounds = array<i64: 1, 256, 512>}, {transform_indices = @transform_15, window_bounds = array<i64: 1, 512, 256>}, {transform_indices = @transform_16, window_bounds = array<i64: 1, 16, 256>}]} {
    %c0_i32 = arith.constant 0 : i32
    %0 = arith.cmpi eq, %arg1, %c0_i32 : i32
    %1 = arith.extui %0 : i1 to i32
    %c0_i32_0 = arith.constant 0 : i32
    %2 = arith.cmpi ne, %1, %c0_i32_0 : i32
    scf.if %2 {
      %c0_78 = arith.constant 0 : index
      %c0_79 = arith.constant 0 : index
      %c0_80 = arith.constant 0 : index
      %165 = vector.load %arg2[%c0_78, %c0_79, %c0_80] : memref<1x16x256xf32, #tpu.memory_space<vmem>>, vector<1x16x256xf32>
      %166 = vector.shape_cast %165 : vector<1x16x256xf32> to vector<16x256xf32>
      %c0_81 = arith.constant 0 : index
      %c0_82 = arith.constant 0 : index
      %c0_83 = arith.constant 0 : index
      %167 = vector.load %arg18[%c0_81, %c0_82, %c0_83] : memref<1x16x256xf32, #tpu.memory_space<vmem>>, vector<1x16x256xf32>
      %168 = vector.shape_cast %167 : vector<1x16x256xf32> to vector<16x256xf32>
      %169 = vector.shape_cast %166 : vector<16x256xf32> to vector<1x16x256xf32>
      tpu.vector_store %arg18[%c0_81, %c0_82, %c0_83], %169 {strides = array<i32>} : memref<1x16x256xf32, #tpu.memory_space<vmem>>, vector<1x16x256xf32>,
    } else {
    }
    %c0 = arith.constant 0 : index
    %c0_1 = arith.constant 0 : index
    %c0_2 = arith.constant 0 : index
    %3 = vector.load %arg18[%c0, %c0_1, %c0_2] : memref<1x16x256xf32, #tpu.memory_space<vmem>>, vector<1x16x256xf32>
    %4 = vector.shape_cast %3 : vector<1x16x256xf32> to vector<16x256xf32>
    %c0_3 = arith.constant 0 : index
    %c0_4 = arith.constant 0 : index
    %c0_5 = arith.constant 0 : index
    %5 = vector.load %arg5[%c0_3, %c0_4, %c0_5] : memref<1x1x256xf32, #tpu.memory_space<vmem>>, vector<1x1x256xf32>
    %6 = vector.shape_cast %5 : vector<1x1x256xf32> to vector<1x256xf32>
    %c0_6 = arith.constant 0 : index
    %c0_7 = arith.constant 0 : index
    %c0_8 = arith.constant 0 : index
    %7 = vector.load %arg6[%c0_6, %c0_7, %c0_8] : memref<1x1x256xf32, #tpu.memory_space<vmem>>, vector<1x1x256xf32>
    %8 = vector.shape_cast %7 : vector<1x1x256xf32> to vector<1x256xf32>
    %cst = arith.constant dense<0.000000e+00> : vector<16xf32>
    %9 = vector.multi_reduction <add>, %4, %cst [1] : vector<16x256xf32> to vector<16xf32>
    %10 = vector.shape_cast %9 : vector<16xf32> to vector<16x1xf32>
    %cst_9 = arith.constant 2.560000e+02 : f32
    %11 = vector.broadcast %cst_9 : f32 to vector<16x1xf32>
    %12 = arith.divf %10, %11 : vector<16x1xf32>
    %13 = vector.broadcast %12 : vector<16x1xf32> to vector<16x256xf32>
    %14 = arith.subf %4, %13 : vector<16x256xf32>
    %15 = arith.mulf %14, %14 : vector<16x256xf32>
    %cst_10 = arith.constant dense<0.000000e+00> : vector<16xf32>
    %16 = vector.multi_reduction <add>, %15, %cst_10 [1] : vector<16x256xf32> to vector<16xf32>
    %17 = vector.shape_cast %16 : vector<16xf32> to vector<16x1xf32>
    %cst_11 = arith.constant 2.560000e+02 : f32
    %18 = vector.broadcast %cst_11 : f32 to vector<16x1xf32>
    %19 = arith.divf %17, %18 : vector<16x1xf32>
    %20 = vector.broadcast %12 : vector<16x1xf32> to vector<16x256xf32>
    %21 = arith.subf %4, %20 : vector<16x256xf32>
    %cst_12 = arith.constant 9.99999974E-6 : f32
    %22 = vector.broadcast %cst_12 : f32 to vector<16x1xf32>
    %23 = arith.addf %19, %22 : vector<16x1xf32>
    %24 = math.rsqrt %23 : vector<16x1xf32>
    %25 = vector.broadcast %24 : vector<16x1xf32> to vector<16x256xf32>
    %26 = arith.mulf %21, %25 : vector<16x256xf32>
    %27 = vector.broadcast %6 : vector<1x256xf32> to vector<16x256xf32>
    %28 = arith.mulf %26, %27 : vector<16x256xf32>
    %29 = vector.broadcast %8 : vector<1x256xf32> to vector<16x256xf32>
    %30 = arith.addf %28, %29 : vector<16x256xf32>
    %31 = arith.truncf %30 : vector<16x256xf32> to vector<16x256xbf16>
    %c0_13 = arith.constant 0 : index
    %c0_14 = arith.constant 0 : index
    %c0_15 = arith.constant 0 : index
    %32 = vector.load %arg11[%c0_13, %c0_14, %c0_15] : memref<1x256x256xbf16, #tpu.memory_space<vmem>>, vector<1x256x256xbf16>
    %33 = vector.shape_cast %32 : vector<1x256x256xbf16> to vector<256x256xbf16>
    %cst_16 = arith.constant dense<0.000000e+00> : vector<16x256xf32>
    %34 = tpu.matmul %31, %33, %cst_16 {dimension_numbers = #tpu.dot_dimension_numbers<[1], [0], [0], [1], [0, 0, 1, 1], [], []>} : vector<16x256xbf16>, vector<256x256xbf16>, vector<16x256xf32> -> vector<16x256xf32>
    %c0_17 = arith.constant 0 : index
    %c0_18 = arith.constant 0 : index
    %c0_19 = arith.constant 0 : index
    %35 = vector.load %arg12[%c0_17, %c0_18, %c0_19] : memref<1x256x256xbf16, #tpu.memory_space<vmem>>, vector<1x256x256xbf16>
    %36 = vector.shape_cast %35 : vector<1x256x256xbf16> to vector<256x256xbf16>
    %cst_20 = arith.constant dense<0.000000e+00> : vector<16x256xf32>
    %37 = tpu.matmul %31, %36, %cst_20 {dimension_numbers = #tpu.dot_dimension_numbers<[1], [0], [0], [1], [0, 0, 1, 1], [], []>} : vector<16x256xbf16>, vector<256x256xbf16>, vector<16x256xf32> -> vector<16x256xf32>
    %c0_21 = arith.constant 0 : index
    %c0_22 = arith.constant 0 : index
    %c0_23 = arith.constant 0 : index
    %38 = vector.load %arg13[%c0_21, %c0_22, %c0_23] : memref<1x256x256xbf16, #tpu.memory_space<vmem>>, vector<1x256x256xbf16>
    %39 = vector.shape_cast %38 : vector<1x256x256xbf16> to vector<256x256xbf16>
    %cst_24 = arith.constant dense<0.000000e+00> : vector<16x256xf32>
    %40 = tpu.matmul %31, %39, %cst_24 {dimension_numbers = #tpu.dot_dimension_numbers<[1], [0], [0], [1], [0, 0, 1, 1], [], []>} : vector<16x256xbf16>, vector<256x256xbf16>, vector<16x256xf32> -> vector<16x256xf32>
    %c0_25 = arith.constant 0 : index
    %c0_26 = arith.constant 0 : index
    %41 = vector.load %arg3[%c0_25, %c0_26] : memref<16x128xf32, #tpu.memory_space<vmem>>, vector<16x128xf32>
    %c0_27 = arith.constant 0 : index
    %c0_28 = arith.constant 0 : index
    %42 = vector.load %arg4[%c0_27, %c0_28] : memref<16x128xf32, #tpu.memory_space<vmem>>, vector<16x128xf32>
    %43 = tpu.iota {dimensions = array<i32: 0>} : vector<16x16xi32>
    %44 = tpu.iota {dimensions = array<i32: 1>} : vector<16x16xi32>
    %45 = arith.cmpi sle, %44, %43 : vector<16x16xi32>
    %cst_29 = arith.constant 0.000000e+00 : f32
    %46 = vector.broadcast %cst_29 : f32 to vector<16x256xf32>
    %47 = vector.extract_strided_slice %34 {offsets = [0, 0], sizes = [16, 128], strides = [1, 1]} : vector<16x256xf32> to vector<16x128xf32>
    %48 = arith.mulf %47, %41 : vector<16x128xf32>
    %c64_i32 = arith.constant 64 : i32
    %49 = tpu.dynamic_rotate %47 by %c64_i32 dim 1 : vector<16x128xf32>, i32 -> vector<16x128xf32>
    %50 = arith.mulf %49, %42 : vector<16x128xf32>
    %51 = arith.addf %48, %50 : vector<16x128xf32>
    %52 = arith.truncf %51 : vector<16x128xf32> to vector<16x128xbf16>
    %53 = vector.extract_strided_slice %37 {offsets = [0, 0], sizes = [16, 128], strides = [1, 1]} : vector<16x256xf32> to vector<16x128xf32>
    %54 = arith.mulf %53, %41 : vector<16x128xf32>
    %c64_i32_30 = arith.constant 64 : i32
    %55 = tpu.dynamic_rotate %53 by %c64_i32_30 dim 1 : vector<16x128xf32>, i32 -> vector<16x128xf32>
    %56 = arith.mulf %55, %42 : vector<16x128xf32>
    %57 = arith.addf %54, %56 : vector<16x128xf32>
    %58 = arith.truncf %57 : vector<16x128xf32> to vector<16x128xbf16>
    %59 = vector.extract_strided_slice %40 {offsets = [0, 0], sizes = [16, 128], strides = [1, 1]} : vector<16x256xf32> to vector<16x128xf32>
    %60 = arith.truncf %59 : vector<16x128xf32> to vector<16x128xbf16>
    %cst_31 = arith.constant dense<0.000000e+00> : vector<16x16xf32>
    %61 = tpu.matmul %52, %58, %cst_31 {dimension_numbers = #tpu.dot_dimension_numbers<[1], [1], [0], [0], [0, 0, 1, 0], [], []>} : vector<16x128xbf16>, vector<16x128xbf16>, vector<16x16xf32> -> vector<16x16xf32>
    %cst_32 = arith.constant -1.000000e+30 : f32
    %62 = vector.broadcast %cst_32 : f32 to vector<16x16xf32>
    %63 = arith.select %45, %61, %62 : vector<16x16xi1>, vector<16x16xf32>
    %cst_33 = arith.constant dense<0xFF800000> : vector<16xf32>
    %64 = vector.multi_reduction <maximumf>, %63, %cst_33 [1] : vector<16x16xf32> to vector<16xf32>
    %65 = vector.shape_cast %64 : vector<16xf32> to vector<16x1xf32>
    %66 = vector.broadcast %65 : vector<16x1xf32> to vector<16x16xf32>
    %67 = arith.subf %63, %66 : vector<16x16xf32>
    %68 = math.exp %67 : vector<16x16xf32>
    %cst_34 = arith.constant dense<0.000000e+00> : vector<16xf32>
    %69 = vector.multi_reduction <add>, %68, %cst_34 [1] : vector<16x16xf32> to vector<16xf32>
    %70 = vector.shape_cast %69 : vector<16xf32> to vector<16x1xf32>
    %71 = vector.broadcast %70 : vector<16x1xf32> to vector<16x16xf32>
    %72 = arith.divf %68, %71 : vector<16x16xf32>
    %73 = arith.truncf %72 : vector<16x16xf32> to vector<16x16xbf16>
    %cst_35 = arith.constant dense<0.000000e+00> : vector<16x128xf32>
    %74 = tpu.matmul %73, %60, %cst_35 {dimension_numbers = #tpu.dot_dimension_numbers<[1], [0], [0], [1], [0, 0, 1, 1], [], []>} : vector<16x16xbf16>, vector<16x128xbf16>, vector<16x128xf32> -> vector<16x128xf32>
    %75 = arith.truncf %74 : vector<16x128xf32> to vector<16x128xbf16>
    %c0_36 = arith.constant 0 : index
    %c0_37 = arith.constant 0 : index
    %c0_38 = arith.constant 0 : index
    %76 = vector.load %arg14[%c0_36, %c0_37, %c0_38] : memref<1x256x256xbf16, #tpu.memory_space<vmem>>, vector<1x128x256xbf16>
    %77 = vector.shape_cast %76 : vector<1x128x256xbf16> to vector<128x256xbf16>
    %cst_39 = arith.constant dense<0.000000e+00> : vector<16x256xf32>
    %78 = tpu.matmul %75, %77, %cst_39 {dimension_numbers = #tpu.dot_dimension_numbers<[1], [0], [0], [1], [0, 0, 1, 1], [], []>} : vector<16x128xbf16>, vector<128x256xbf16>, vector<16x256xf32> -> vector<16x256xf32>
    %79 = arith.addf %46, %78 : vector<16x256xf32>
    %80 = vector.extract_strided_slice %34 {offsets = [0, 128], sizes = [16, 128], strides = [1, 1]} : vector<16x256xf32> to vector<16x128xf32>
    %81 = arith.mulf %80, %41 : vector<16x128xf32>
    %c64_i32_40 = arith.constant 64 : i32
    %82 = tpu.dynamic_rotate %80 by %c64_i32_40 dim 1 : vector<16x128xf32>, i32 -> vector<16x128xf32>
    %83 = arith.mulf %82, %42 : vector<16x128xf32>
    %84 = arith.addf %81, %83 : vector<16x128xf32>
    %85 = arith.truncf %84 : vector<16x128xf32> to vector<16x128xbf16>
    %86 = vector.extract_strided_slice %37 {offsets = [0, 128], sizes = [16, 128], strides = [1, 1]} : vector<16x256xf32> to vector<16x128xf32>
    %87 = arith.mulf %86, %41 : vector<16x128xf32>
    %c64_i32_41 = arith.constant 64 : i32
    %88 = tpu.dynamic_rotate %86 by %c64_i32_41 dim 1 : vector<16x128xf32>, i32 -> vector<16x128xf32>
    %89 = arith.mulf %88, %42 : vector<16x128xf32>
    %90 = arith.addf %87, %89 : vector<16x128xf32>
    %91 = arith.truncf %90 : vector<16x128xf32> to vector<16x128xbf16>
    %92 = vector.extract_strided_slice %40 {offsets = [0, 128], sizes = [16, 128], strides = [1, 1]} : vector<16x256xf32> to vector<16x128xf32>
    %93 = arith.truncf %92 : vector<16x128xf32> to vector<16x128xbf16>
    %cst_42 = arith.constant dense<0.000000e+00> : vector<16x16xf32>
    %94 = tpu.matmul %85, %91, %cst_42 {dimension_numbers = #tpu.dot_dimension_numbers<[1], [1], [0], [0], [0, 0, 1, 0], [], []>} : vector<16x128xbf16>, vector<16x128xbf16>, vector<16x16xf32> -> vector<16x16xf32>
    %cst_43 = arith.constant -1.000000e+30 : f32
    %95 = vector.broadcast %cst_43 : f32 to vector<16x16xf32>
    %96 = arith.select %45, %94, %95 : vector<16x16xi1>, vector<16x16xf32>
    %cst_44 = arith.constant dense<0xFF800000> : vector<16xf32>
    %97 = vector.multi_reduction <maximumf>, %96, %cst_44 [1] : vector<16x16xf32> to vector<16xf32>
    %98 = vector.shape_cast %97 : vector<16xf32> to vector<16x1xf32>
    %99 = vector.broadcast %98 : vector<16x1xf32> to vector<16x16xf32>
    %100 = arith.subf %96, %99 : vector<16x16xf32>
    %101 = math.exp %100 : vector<16x16xf32>
    %cst_45 = arith.constant dense<0.000000e+00> : vector<16xf32>
    %102 = vector.multi_reduction <add>, %101, %cst_45 [1] : vector<16x16xf32> to vector<16xf32>
    %103 = vector.shape_cast %102 : vector<16xf32> to vector<16x1xf32>
    %104 = vector.broadcast %103 : vector<16x1xf32> to vector<16x16xf32>
    %105 = arith.divf %101, %104 : vector<16x16xf32>
    %106 = arith.truncf %105 : vector<16x16xf32> to vector<16x16xbf16>
    %cst_46 = arith.constant dense<0.000000e+00> : vector<16x128xf32>
    %107 = tpu.matmul %106, %93, %cst_46 {dimension_numbers = #tpu.dot_dimension_numbers<[1], [0], [0], [1], [0, 0, 1, 1], [], []>} : vector<16x16xbf16>, vector<16x128xbf16>, vector<16x128xf32> -> vector<16x128xf32>
    %108 = arith.truncf %107 : vector<16x128xf32> to vector<16x128xbf16>
    %c0_47 = arith.constant 0 : index
    %c128 = arith.constant 128 : index
    %c0_48 = arith.constant 0 : index
    %109 = vector.load %arg14[%c0_47, %c128, %c0_48] : memref<1x256x256xbf16, #tpu.memory_space<vmem>>, vector<1x128x256xbf16>
    %110 = vector.shape_cast %109 : vector<1x128x256xbf16> to vector<128x256xbf16>
    %cst_49 = arith.constant dense<0.000000e+00> : vector<16x256xf32>
    %111 = tpu.matmul %108, %110, %cst_49 {dimension_numbers = #tpu.dot_dimension_numbers<[1], [0], [0], [1], [0, 0, 1, 1], [], []>} : vector<16x128xbf16>, vector<128x256xbf16>, vector<16x256xf32> -> vector<16x256xf32>
    %112 = arith.addf %79, %111 : vector<16x256xf32>
    %113 = arith.addf %4, %112 : vector<16x256xf32>
    %c0_50 = arith.constant 0 : index
    %c0_51 = arith.constant 0 : index
    %c0_52 = arith.constant 0 : index
    %114 = vector.load %arg7[%c0_50, %c0_51, %c0_52] : memref<1x1x256xf32, #tpu.memory_space<vmem>>, vector<1x1x256xf32>
    %115 = vector.shape_cast %114 : vector<1x1x256xf32> to vector<1x256xf32>
    %c0_53 = arith.constant 0 : index
    %c0_54 = arith.constant 0 : index
    %c0_55 = arith.constant 0 : index
    %116 = vector.load %arg8[%c0_53, %c0_54, %c0_55] : memref<1x1x256xf32, #tpu.memory_space<vmem>>, vector<1x1x256xf32>
    %117 = vector.shape_cast %116 : vector<1x1x256xf32> to vector<1x256xf32>
    %cst_56 = arith.constant dense<0.000000e+00> : vector<16xf32>
    %118 = vector.multi_reduction <add>, %113, %cst_56 [1] : vector<16x256xf32> to vector<16xf32>
    %119 = vector.shape_cast %118 : vector<16xf32> to vector<16x1xf32>
    %cst_57 = arith.constant 2.560000e+02 : f32
    %120 = vector.broadcast %cst_57 : f32 to vector<16x1xf32>
    %121 = arith.divf %119, %120 : vector<16x1xf32>
    %122 = vector.broadcast %121 : vector<16x1xf32> to vector<16x256xf32>
    %123 = arith.subf %113, %122 : vector<16x256xf32>
    %124 = arith.mulf %123, %123 : vector<16x256xf32>
    %cst_58 = arith.constant dense<0.000000e+00> : vector<16xf32>
    %125 = vector.multi_reduction <add>, %124, %cst_58 [1] : vector<16x256xf32> to vector<16xf32>
    %126 = vector.shape_cast %125 : vector<16xf32> to vector<16x1xf32>
    %cst_59 = arith.constant 2.560000e+02 : f32
    %127 = vector.broadcast %cst_59 : f32 to vector<16x1xf32>
    %128 = arith.divf %126, %127 : vector<16x1xf32>
    %129 = vector.broadcast %121 : vector<16x1xf32> to vector<16x256xf32>
    %130 = arith.subf %113, %129 : vector<16x256xf32>
    %cst_60 = arith.constant 9.99999974E-6 : f32
    %131 = vector.broadcast %cst_60 : f32 to vector<16x1xf32>
    %132 = arith.addf %128, %131 : vector<16x1xf32>
    %133 = math.rsqrt %132 : vector<16x1xf32>
    %134 = vector.broadcast %133 : vector<16x1xf32> to vector<16x256xf32>
    %135 = arith.mulf %130, %134 : vector<16x256xf32>
    %136 = vector.broadcast %115 : vector<1x256xf32> to vector<16x256xf32>
    %137 = arith.mulf %135, %136 : vector<16x256xf32>
    %138 = vector.broadcast %117 : vector<1x256xf32> to vector<16x256xf32>
    %139 = arith.addf %137, %138 : vector<16x256xf32>
    %140 = arith.truncf %139 : vector<16x256xf32> to vector<16x256xbf16>
    %c0_61 = arith.constant 0 : index
    %c0_62 = arith.constant 0 : index
    %c0_63 = arith.constant 0 : index
    %141 = vector.load %arg15[%c0_61, %c0_62, %c0_63] : memref<1x256x512xbf16, #tpu.memory_space<vmem>>, vector<1x256x512xbf16>
    %142 = vector.shape_cast %141 : vector<1x256x512xbf16> to vector<256x512xbf16>
    %cst_64 = arith.constant dense<0.000000e+00> : vector<16x512xf32>
    %143 = tpu.matmul %140, %142, %cst_64 {dimension_numbers = #tpu.dot_dimension_numbers<[1], [0], [0], [1], [0, 0, 1, 1], [], []>} : vector<16x256xbf16>, vector<256x512xbf16>, vector<16x512xf32> -> vector<16x512xf32>
    %c0_65 = arith.constant 0 : index
    %c0_66 = arith.constant 0 : index
    %c0_67 = arith.constant 0 : index
    %144 = vector.load %arg16[%c0_65, %c0_66, %c0_67] : memref<1x256x512xbf16, #tpu.memory_space<vmem>>, vector<1x256x512xbf16>
    %145 = vector.shape_cast %144 : vector<1x256x512xbf16> to vector<256x512xbf16>
    %cst_68 = arith.constant dense<0.000000e+00> : vector<16x512xf32>
    %146 = tpu.matmul %140, %145, %cst_68 {dimension_numbers = #tpu.dot_dimension_numbers<[1], [0], [0], [1], [0, 0, 1, 1], [], []>} : vector<16x256xbf16>, vector<256x512xbf16>, vector<16x512xf32> -> vector<16x512xf32>
    %147 = arith.negf %143 : vector<16x512xf32>
    %148 = math.exp %147 : vector<16x512xf32>
    %cst_69 = arith.constant 1.000000e+00 : f32
    %149 = vector.broadcast %cst_69 : f32 to vector<16x512xf32>
    %150 = arith.addf %149, %148 : vector<16x512xf32>
    %151 = arith.divf %149, %150 : vector<16x512xf32>
    %152 = arith.mulf %143, %151 : vector<16x512xf32>
    %153 = arith.mulf %152, %146 : vector<16x512xf32>
    %154 = arith.truncf %153 : vector<16x512xf32> to vector<16x512xbf16>
    %c0_70 = arith.constant 0 : index
    %c0_71 = arith.constant 0 : index
    %c0_72 = arith.constant 0 : index
    %155 = vector.load %arg17[%c0_70, %c0_71, %c0_72] : memref<1x512x256xbf16, #tpu.memory_space<vmem>>, vector<1x512x256xbf16>
    %156 = vector.shape_cast %155 : vector<1x512x256xbf16> to vector<512x256xbf16>
    %cst_73 = arith.constant dense<0.000000e+00> : vector<16x256xf32>
    %157 = tpu.matmul %154, %156, %cst_73 {dimension_numbers = #tpu.dot_dimension_numbers<[1], [0], [0], [1], [0, 0, 1, 1], [], []>} : vector<16x512xbf16>, vector<512x256xbf16>, vector<16x256xf32> -> vector<16x256xf32>
    %158 = arith.addf %113, %157 : vector<16x256xf32>
    %c0_74 = arith.constant 0 : index
    %c0_75 = arith.constant 0 : index
    %c0_76 = arith.constant 0 : index
    %159 = vector.load %arg18[%c0_74, %c0_75, %c0_76] : memref<1x16x256xf32, #tpu.memory_space<vmem>>, vector<1x16x256xf32>
    %160 = vector.shape_cast %159 : vector<1x16x256xf32> to vector<16x256xf32>
    %161 = vector.shape_cast %158 : vector<16x256xf32> to vector<1x16x256xf32>
    tpu.vector_store %arg18[%c0_74, %c0_75, %c0_76], %161 {strides = array<i32>} : memref<1x16x256xf32, #tpu.memory_space<vmem>>, vector<1x16x256xf32>,
    %c1_i32 = arith.constant 1 : i32
    %162 = arith.cmpi eq, %arg1, %c1_i32 : i32
    %163 = arith.extui %162 : i1 to i32
    %c0_i32_77 = arith.constant 0 : i32
    %164 = arith.cmpi ne, %163, %c0_i32_77 : i32
    scf.if %164 {
      %c0_78 = arith.constant 0 : index
      %c0_79 = arith.constant 0 : index
      %c0_80 = arith.constant 0 : index
      %165 = vector.load %arg18[%c0_78, %c0_79, %c0_80] : memref<1x16x256xf32, #tpu.memory_space<vmem>>, vector<1x16x256xf32>
      %166 = vector.shape_cast %165 : vector<1x16x256xf32> to vector<16x256xf32>
      %c0_81 = arith.constant 0 : index
      %c0_82 = arith.constant 0 : index
      %167 = vector.load %arg9[%c0_81, %c0_82] : memref<1x256xf32, #tpu.memory_space<vmem>>, vector<1x256xf32>
      %c0_83 = arith.constant 0 : index
      %c0_84 = arith.constant 0 : index
      %168 = vector.load %arg10[%c0_83, %c0_84] : memref<1x256xf32, #tpu.memory_space<vmem>>, vector<1x256xf32>
      %cst_85 = arith.constant dense<0.000000e+00> : vector<16xf32>
      %169 = vector.multi_reduction <add>, %166, %cst_85 [1] : vector<16x256xf32> to vector<16xf32>
      %170 = vector.shape_cast %169 : vector<16xf32> to vector<16x1xf32>
      %cst_86 = arith.constant 2.560000e+02 : f32
      %171 = vector.broadcast %cst_86 : f32 to vector<16x1xf32>
      %172 = arith.divf %170, %171 : vector<16x1xf32>
      %173 = vector.broadcast %172 : vector<16x1xf32> to vector<16x256xf32>
      %174 = arith.subf %166, %173 : vector<16x256xf32>
      %175 = arith.mulf %174, %174 : vector<16x256xf32>
      %cst_87 = arith.constant dense<0.000000e+00> : vector<16xf32>
      %176 = vector.multi_reduction <add>, %175, %cst_87 [1] : vector<16x256xf32> to vector<16xf32>
      %177 = vector.shape_cast %176 : vector<16xf32> to vector<16x1xf32>
      %cst_88 = arith.constant 2.560000e+02 : f32
      %178 = vector.broadcast %cst_88 : f32 to vector<16x1xf32>
      %179 = arith.divf %177, %178 : vector<16x1xf32>
      %180 = vector.broadcast %172 : vector<16x1xf32> to vector<16x256xf32>
      %181 = arith.subf %166, %180 : vector<16x256xf32>
      %cst_89 = arith.constant 9.99999974E-6 : f32
      %182 = vector.broadcast %cst_89 : f32 to vector<16x1xf32>
      %183 = arith.addf %179, %182 : vector<16x1xf32>
      %184 = math.rsqrt %183 : vector<16x1xf32>
      %185 = vector.broadcast %184 : vector<16x1xf32> to vector<16x256xf32>
      %186 = arith.mulf %181, %185 : vector<16x256xf32>
      %187 = vector.broadcast %167 : vector<1x256xf32> to vector<16x256xf32>
      %188 = arith.mulf %186, %187 : vector<16x256xf32>
      %189 = vector.broadcast %168 : vector<1x256xf32> to vector<16x256xf32>
      %190 = arith.addf %188, %189 : vector<16x256xf32>
      %c0_90 = arith.constant 0 : index
      %c0_91 = arith.constant 0 : index
      %c0_92 = arith.constant 0 : index
      %191 = vector.load %arg18[%c0_90, %c0_91, %c0_92] : memref<1x16x256xf32, #tpu.memory_space<vmem>>, vector<1x16x256xf32>
      %192 = vector.shape_cast %191 : vector<1x16x256xf32> to vector<16x256xf32>
      %193 = vector.shape_cast %190 : vector<16x256xf32> to vector<1x16x256xf32>
      tpu.vector_store %arg18[%c0_90, %c0_91, %c0_92], %193 {strides = array<i32>} : memref<1x16x256xf32, #tpu.memory_space<vmem>>, vector<1x16x256xf32>,
    } else {
    }
    return
  }
  func.func @transform_0(%arg0: i32, %arg1: i32) -> (i32, i32, i32) {
    %c0_i32 = arith.constant 0 : i32
    %c0_i32_0 = arith.constant 0 : i32
    %c0_i32_1 = arith.constant 0 : i32
    return %arg0, %c0_i32, %c0_i32_0 : i32, i32, i32
  }
  func.func @transform_1(%arg0: i32, %arg1: i32) -> (i32, i32) {
    %c0_i32 = arith.constant 0 : i32
    %c0_i32_0 = arith.constant 0 : i32
    %c0_i32_1 = arith.constant 0 : i32
    return %c0_i32, %c0_i32_0 : i32, i32
  }
  func.func @transform_2(%arg0: i32, %arg1: i32) -> (i32, i32) {
    %c0_i32 = arith.constant 0 : i32
    %c0_i32_0 = arith.constant 0 : i32
    %c0_i32_1 = arith.constant 0 : i32
    return %c0_i32, %c0_i32_0 : i32, i32
  }
  func.func @transform_3(%arg0: i32, %arg1: i32) -> (i32, i32, i32) {
    %c0_i32 = arith.constant 0 : i32
    %c0_i32_0 = arith.constant 0 : i32
    %c0_i32_1 = arith.constant 0 : i32
    return %arg1, %c0_i32, %c0_i32_0 : i32, i32, i32
  }
  func.func @transform_4(%arg0: i32, %arg1: i32) -> (i32, i32, i32) {
    %c0_i32 = arith.constant 0 : i32
    %c0_i32_0 = arith.constant 0 : i32
    %c0_i32_1 = arith.constant 0 : i32
    return %arg1, %c0_i32, %c0_i32_0 : i32, i32, i32
  }
  func.func @transform_5(%arg0: i32, %arg1: i32) -> (i32, i32, i32) {
    %c0_i32 = arith.constant 0 : i32
    %c0_i32_0 = arith.constant 0 : i32
    %c0_i32_1 = arith.constant 0 : i32
    return %arg1, %c0_i32, %c0_i32_0 : i32, i32, i32
  }
  func.func @transform_6(%arg0: i32, %arg1: i32) -> (i32, i32, i32) {
    %c0_i32 = arith.constant 0 : i32
    %c0_i32_0 = arith.constant 0 : i32
    %c0_i32_1 = arith.constant 0 : i32
    return %arg1, %c0_i32, %c0_i32_0 : i32, i32, i32
  }
  func.func @transform_7(%arg0: i32, %arg1: i32) -> (i32, i32) {
    %c0_i32 = arith.constant 0 : i32
    %c0_i32_0 = arith.constant 0 : i32
    %c0_i32_1 = arith.constant 0 : i32
    return %c0_i32, %c0_i32_0 : i32, i32
  }
  func.func @transform_8(%arg0: i32, %arg1: i32) -> (i32, i32) {
    %c0_i32 = arith.constant 0 : i32
    %c0_i32_0 = arith.constant 0 : i32
    %c0_i32_1 = arith.constant 0 : i32
    return %c0_i32, %c0_i32_0 : i32, i32
  }
  func.func @transform_9(%arg0: i32, %arg1: i32) -> (i32, i32, i32) {
    %c0_i32 = arith.constant 0 : i32
    %c0_i32_0 = arith.constant 0 : i32
    %c0_i32_1 = arith.constant 0 : i32
    return %arg1, %c0_i32, %c0_i32_0 : i32, i32, i32
  }
  func.func @transform_10(%arg0: i32, %arg1: i32) -> (i32, i32, i32) {
    %c0_i32 = arith.constant 0 : i32
    %c0_i32_0 = arith.constant 0 : i32
    %c0_i32_1 = arith.constant 0 : i32
    return %arg1, %c0_i32, %c0_i32_0 : i32, i32, i32
  }
  func.func @transform_11(%arg0: i32, %arg1: i32) -> (i32, i32, i32) {
    %c0_i32 = arith.constant 0 : i32
    %c0_i32_0 = arith.constant 0 : i32
    %c0_i32_1 = arith.constant 0 : i32
    return %arg1, %c0_i32, %c0_i32_0 : i32, i32, i32
  }
  func.func @transform_12(%arg0: i32, %arg1: i32) -> (i32, i32, i32) {
    %c0_i32 = arith.constant 0 : i32
    %c0_i32_0 = arith.constant 0 : i32
    %c0_i32_1 = arith.constant 0 : i32
    return %arg1, %c0_i32, %c0_i32_0 : i32, i32, i32
  }
  func.func @transform_13(%arg0: i32, %arg1: i32) -> (i32, i32, i32) {
    %c0_i32 = arith.constant 0 : i32
    %c0_i32_0 = arith.constant 0 : i32
    %c0_i32_1 = arith.constant 0 : i32
    return %arg1, %c0_i32, %c0_i32_0 : i32, i32, i32
  }
  func.func @transform_14(%arg0: i32, %arg1: i32) -> (i32, i32, i32) {
    %c0_i32 = arith.constant 0 : i32
    %c0_i32_0 = arith.constant 0 : i32
    %c0_i32_1 = arith.constant 0 : i32
    return %arg1, %c0_i32, %c0_i32_0 : i32, i32, i32
  }
  func.func @transform_15(%arg0: i32, %arg1: i32) -> (i32, i32, i32) {
    %c0_i32 = arith.constant 0 : i32
    %c0_i32_0 = arith.constant 0 : i32
    %c0_i32_1 = arith.constant 0 : i32
    return %arg1, %c0_i32, %c0_i32_0 : i32, i32, i32
  }
  func.func @transform_16(%arg0: i32, %arg1: i32) -> (i32, i32, i32) {
    %c0_i32 = arith.constant 0 : i32
    %c0_i32_0 = arith.constant 0 : i32
    %c0_i32_1 = arith.constant 0 : i32
    return %arg0, %c0_i32, %c0_i32_0 : i32, i32, i32
  }
}

</mosaic_0001>

<llo_original>
// kernel: transformer_forward.1
$region0: #{transformer_forward.1}
  #allocation0 [shape = 'u32[]', space=smem, size = 0x4, offset = 0x4, fixed_abs, tag = 'smem constant byte address 0x4 - core index']
  #allocation1 [shape = 'u32[144,128]{1,0:T(1,128)}', space=vmem, size = 0x12000, scoped, tag = 'internal scratch']
  %s0 = inlined_call_operand.vmem [shape: f32[2,16,256], index: 0, kind: input, shape index: {}]
  %s1 = inlined_call_operand.vmem [shape: f32[16,128], index: 1, kind: input, shape index: {}]
  %s2 = inlined_call_operand.vmem [shape: f32[16,128], index: 2, kind: input, shape index: {}]
  %s3 = inlined_call_operand.vmem [shape: f32[2,1,256], index: 3, kind: input, shape index: {}]
  %s4 = inlined_call_operand.vmem [shape: f32[2,1,256], index: 4, kind: input, shape index: {}]
  %s5 = inlined_call_operand.vmem [shape: f32[2,1,256], index: 5, kind: input, shape index: {}]
  %s6 = inlined_call_operand.vmem [shape: f32[2,1,256], index: 6, kind: input, shape index: {}]
  %s7 = inlined_call_operand.vmem [shape: f32[1,256], index: 7, kind: input, shape index: {}]
  %s8 = inlined_call_operand.vmem [shape: f32[1,256], index: 8, kind: input, shape index: {}]
  %s9 = inlined_call_operand.vmem [shape: bf16[2,256,256], index: 9, kind: input, shape index: {}]
  %s10 = inlined_call_operand.hbm [shape: bf16[2,256,256], index: 10, kind: input, shape index: {}]
  %s11 = inlined_call_operand.hbm [shape: bf16[2,256,256], index: 11, kind: input, shape index: {}]
  %s12 = inlined_call_operand.hbm [shape: bf16[2,256,256], index: 12, kind: input, shape index: {}]
  %s13 = inlined_call_operand.hbm [shape: bf16[2,256,512], index: 13, kind: input, shape index: {}]
  %s14 = inlined_call_operand.hbm [shape: bf16[2,256,512], index: 14, kind: input, shape index: {}]
  %s15 = inlined_call_operand.hbm [shape: bf16[2,512,256], index: 15, kind: input, shape index: {}]
  %s16 = inlined_call_operand.hbm [shape: f32[2,16,256], index: 16, kind: output, shape index: {}]
  %s17 = sld [smem:[#allocation0]]
  $region129: #{transformer_forward.1} parent=0
    _
  %s19 = ssub.s32 1, %s17
  %s20 = scalar_select 0, %s19, %s17
  $region1: #{transformer_forward.1} parent=0
    #allocation2 [shape = 'u8[262144]{0}', space=vmem, size = 0x40000, scoped, tag = 'input window, operand 10']
    #allocation3 [shape = 's32[2]{0}', space=sflag, size = 0x8, scoped, tag = 'scoped memory for transformer_forward.1']
    #allocation4 [shape = 's32[2]{0}', space=sflag, size = 0x8, scoped, tag = 'scoped memory for transformer_forward.1']
    #allocation5 [shape = 'u8[262144]{0}', space=vmem, size = 0x40000, scoped, tag = 'input window, operand 11']
    #allocation6 [shape = 's32[2]{0}', space=sflag, size = 0x8, scoped, tag = 'scoped memory for transformer_forward.1']
    #allocation7 [shape = 'u8[262144]{0}', space=vmem, size = 0x40000, scoped, tag = 'input window, operand 12']
    #allocation8 [shape = 'u8[524288]{0}', space=vmem, size = 0x80000, scoped, tag = 'input window, operand 13']
    #allocation9 [shape = 's32[2]{0}', space=sflag, size = 0x8, scoped, tag = 'scoped memory for transformer_forward.1']
    #allocation10 [shape = 'u8[524288]{0}', space=vmem, size = 0x80000, scoped, tag = 'input window, operand 14']
    #allocation11 [shape = 'u8[524288]{0}', space=vmem, size = 0x80000, scoped, tag = 'input window, operand 15']
    #allocation12 [shape = 's32[2]{0}', space=sflag, size = 0x8, scoped, tag = 'scoped memory for transformer_forward.1']
    #allocation13 [shape = 'u8[32768]{0}', space=vmem, size = 0x8000, scoped, tag = 'output window, operand 0']
    %21 = vsyncpa [#allocation3], 0
    %s22 = scalar_lea.sflag [#allocation3], 1
    %23 = vsyncpa %s22, 0
    %24 = vsyncpa [#allocation6], 0
    %s25 = scalar_lea.sflag [#allocation6], 1
    %26 = vsyncpa %s25, 0
    %27 = vsyncpa [#allocation9], 0
    %s28 = scalar_lea.sflag [#allocation9], 1
    %29 = vsyncpa %s28, 0
    %30 = vsyncpa [#allocation12], 0
    %s31 = scalar_lea.sflag [#allocation12], 1
    %32 = vsyncpa %s31, 0
    %33 = vsyncpa [#allocation4], 0
    %s34 = scalar_lea.sflag [#allocation4], 1
    %35 = vsyncpa %s34, 0
    loop: start=0, step=1, limit=6
    $region2: #{transformer_forward.1} parent=1 // loop_pre_header
      _
    $region3: #{transformer_forward.1} parent=1 // loop_header
      %s37 = sphi 0, %s41
      %p38 = scmp.ge.s32.totalorder %s37, 6
      %s44 = sphi 0, %s56
      %s45 = sphi 0, %s52
      %s46 = sphi 0, %s44
      %s47 = sphi 0, %s45
      %s48 = sphi 0, %s46
      %s49 = sphi 0, %s47
      %s59 = sphi 0, %s61
      %s62 = sphi 0, %s59
      %s63 = sphi 0, %s62
      %s79 = sphi 0, %s63
      %s83 = sphi 0, %s83
      %s85 = sphi 0, %s83
      %s86 = sphi 0, %s85
      %s100 = sphi 0, %s86
      %s104 = sphi 0, %s104
      %s106 = sphi 0, %s104
      %s107 = sphi 0, %s106
      %s121 = sphi 0, %s107
      %s127 = sphi 0, %s129
      %s130 = sphi 0, %s127
      %s131 = sphi 0, %s130
      %s147 = sphi 0, %s131
      %s153 = sphi 0, %s155
      %s156 = sphi 0, %s153
      %s157 = sphi 0, %s156
      %s173 = sphi 0, %s157
      %s179 = sphi 0, %s181
      %s182 = sphi 0, %s179
      %s183 = sphi 0, %s182
      %s199 = sphi 0, %s183
      %s205 = sphi 0, %s207
      %s208 = sphi 0, %s205
      %s209 = sphi 0, %s208
      %s225 = sphi 0, %s209
      %s229 = sphi 0, %s229
      %s231 = sphi 0, %s229
      %s232 = sphi 0, %s231
      %s246 = sphi 0, %s232
      %s250 = sphi 0, %s250
      %s252 = sphi 0, %s250
      %s253 = sphi 0, %s252
      %s267 = sphi 0, %s253
      %s273 = sphi 0, %s275
      %s276 = sphi 0, %s273
      %s277 = sphi 0, %s276
      %s293 = sphi 0, %s277
      %s299 = sphi 0, %s301
      %s302 = sphi 0, %s299
      %s303 = sphi 0, %s302
      %s319 = sphi 0, %s303
      %s325 = sphi 0, %s327
      %s328 = sphi 0, %s325
      %s329 = sphi 0, %s328
      %s345 = sphi 0, %s329
      %s351 = sphi 0, %s353
      %s354 = sphi 0, %s351
      %s355 = sphi 0, %s354
      %s371 = sphi 0, %s355
      %s377 = sphi 0, %s379
      %s380 = sphi 0, %s377
      %s381 = sphi 0, %s380
      %s397 = sphi 0, %s381
      %s403 = sphi 0, %s405
      %s406 = sphi 0, %s403
      %s407 = sphi 0, %s406
      %s423 = sphi 0, %s407
      %s429 = sphi 0, %s431
      %s432 = sphi 0, %s429
      %s433 = sphi 0, %s432
      %s449 = sphi 0, %s433
      %s455 = sphi 0, %s457
      %s458 = sphi 0, %s455
      %s459 = sphi 0, %s458
      %s475 = sphi 0, %s459
    $region4: #{transformer_forward.1} parent=1 // loop_header_branch
      %40 = sbr.rel (%p38) target = $region8
    $region5: #{transformer_forward.1} parent=1 // loop_body
      %s42 = ssub.s32 %s37, 1
      %s43 = ssub.s32 %s37, 2
      %s50 = sadd.s32 1, %s45
      %p51 = scmp.ge.s32.totalorder %s50, 2
      %s52 = scalar_select %p51, 0, %s50
      %s53 = sadd.s32 1, %s44
      %s54 = scalar_select %p51, %s53, %s44
      %p55 = scmp.ge.s32.totalorder %s54, 2
      %s56 = scalar_select %p55, 0, %s54
      %s57 = ssub.s32 %s44, %s56
      %p58 = scmp.eq.s32.totalorder %s57, 0
      %s60 = sadd.s32 %s59, 1
      %s61 = scalar_select %p58, %s59, %s60
      %p64 = pneg %p58
      %p65 = scmp.eq.s32.totalorder %s37, 3
      %p66 = por %p64, %p65
      %p67 = scmp.ne.s32.totalorder %s59, %s62
      %p68 = scmp.eq.s32.totalorder %s37, 0
      %p69 = por %p67, %p68
      %p70 = scmp.ne.s32.totalorder %s59, %s62
      %p71 = scmp.eq.s32.totalorder %s42, 3
      %p72 = por %p70, %p71
      %p73 = scmp.ne.s32.totalorder %s62, %s63
      %p74 = scmp.eq.s32.totalorder %s42, 0
      %p75 = por %p73, %p74
      %p76 = scmp.ne.s32.totalorder %s62, %s63
      %p77 = scmp.eq.s32.totalorder %s43, 3
      %p78 = por %p76, %p77
      %p80 = scmp.ne.s32.totalorder %s63, %s79
      %p81 = scmp.eq.s32.totalorder %s43, 0
      %p82 = por %p80, %p81
      %s84 = sadd.s32 %s83, 1
      %p87 = scmp.eq.s32.totalorder %s37, 3
      %p88 = scmp.ne.s32.totalorder %s83, %s85
      %p89 = scmp.eq.s32.totalorder %s37, 0
      %p90 = por %p88, %p89
      %p91 = scmp.ne.s32.totalorder %s83, %s85
      %p92 = scmp.eq.s32.totalorder %s42, 3
      %p93 = por %p91, %p92
      %p94 = scmp.ne.s32.totalorder %s85, %s86
      %p95 = scmp.eq.s32.totalorder %s42, 0
      %p96 = por %p94, %p95
      %p97 = scmp.ne.s32.totalorder %s85, %s86
      %p98 = scmp.eq.s32.totalorder %s43, 3
      %p99 = por %p97, %p98
      %p101 = scmp.ne.s32.totalorder %s86, %s100
      %p102 = scmp.eq.s32.totalorder %s43, 0
      %p103 = por %p101, %p102
      %s105 = sadd.s32 %s104, 1
      %p108 = scmp.eq.s32.totalorder %s37, 3
      %p109 = scmp.ne.s32.totalorder %s104, %s106
      %p110 = scmp.eq.s32.totalorder %s37, 0
      %p111 = por %p109, %p110
      %p112 = scmp.ne.s32.totalorder %s104, %s106
      %p113 = scmp.eq.s32.totalorder %s42, 3
      %p114 = por %p112, %p113
      %p115 = scmp.ne.s32.totalorder %s106, %s107
      %p116 = scmp.eq.s32.totalorder %s42, 0
      %p117 = por %p115, %p116
      %p118 = scmp.ne.s32.totalorder %s106, %s107
      %p119 = scmp.eq.s32.totalorder %s43, 3
      %p120 = por %p118, %p119
      %p122 = scmp.ne.s32.totalorder %s107, %s121
      %p123 = scmp.eq.s32.totalorder %s43, 0
      %p124 = por %p122, %p123
      %s125 = ssub.s32 %s45, %s52
      %p126 = scmp.eq.s32.totalorder %s125, 0
      %s128 = sadd.s32 %s127, 1
      %s129 = scalar_select %p126, %s127, %s128
      %p132 = pneg %p126
      %p133 = scmp.eq.s32.totalorder %s37, 3
      %p134 = por %p132, %p133
      %p135 = scmp.ne.s32.totalorder %s127, %s130
      %p136 = scmp.eq.s32.totalorder %s37, 0
      %p137 = por %p135, %p136
      %p138 = scmp.ne.s32.totalorder %s127, %s130
      %p139 = scmp.eq.s32.totalorder %s42, 3
      %p140 = por %p138, %p139
      %p141 = scmp.ne.s32.totalorder %s130, %s131
      %p142 = scmp.eq.s32.totalorder %s42, 0
      %p143 = por %p141, %p142
      %p144 = scmp.ne.s32.totalorder %s130, %s131
      %p145 = scmp.eq.s32.totalorder %s43, 3
      %p146 = por %p144, %p145
      %p148 = scmp.ne.s32.totalorder %s131, %s147
      %p149 = scmp.eq.s32.totalorder %s43, 0
      %p150 = por %p148, %p149
      %s151 = ssub.s32 %s45, %s52
      %p152 = scmp.eq.s32.totalorder %s151, 0
      %s154 = sadd.s32 %s153, 1
      %s155 = scalar_select %p152, %s153, %s154
      %p158 = pneg %p152
      %p159 = scmp.eq.s32.totalorder %s37, 3
      %p160 = por %p158, %p159
      %p161 = scmp.ne.s32.totalorder %s153, %s156
      %p162 = scmp.eq.s32.totalorder %s37, 0
      %p163 = por %p161, %p162
      %p164 = scmp.ne.s32.totalorder %s153, %s156
      %p165 = scmp.eq.s32.totalorder %s42, 3
      %p166 = por %p164, %p165
      %p167 = scmp.ne.s32.totalorder %s156, %s157
      %p168 = scmp.eq.s32.totalorder %s42, 0
      %p169 = por %p167, %p168
      %p170 = scmp.ne.s32.totalorder %s156, %s157
      %p171 = scmp.eq.s32.totalorder %s43, 3
      %p172 = por %p170, %p171
      %p174 = scmp.ne.s32.totalorder %s157, %s173
      %p175 = scmp.eq.s32.totalorder %s43, 0
      %p176 = por %p174, %p175
      %s177 = ssub.s32 %s45, %s52
      %p178 = scmp.eq.s32.totalorder %s177, 0
      %s180 = sadd.s32 %s179, 1
      %s181 = scalar_select %p178, %s179, %s180
      %p184 = pneg %p178
      %p185 = scmp.eq.s32.totalorder %s37, 3
      %p186 = por %p184, %p185
      %p187 = scmp.ne.s32.totalorder %s179, %s182
      %p188 = scmp.eq.s32.totalorder %s37, 0
      %p189 = por %p187, %p188
      %p190 = scmp.ne.s32.totalorder %s179, %s182
      %p191 = scmp.eq.s32.totalorder %s42, 3
      %p192 = por %p190, %p191
      %p193 = scmp.ne.s32.totalorder %s182, %s183
      %p194 = scmp.eq.s32.totalorder %s42, 0
      %p195 = por %p193, %p194
      %p196 = scmp.ne.s32.totalorder %s182, %s183
      %p197 = scmp.eq.s32.totalorder %s43, 3
      %p198 = por %p196, %p197
      %p200 = scmp.ne.s32.totalorder %s183, %s199
      %p201 = scmp.eq.s32.totalorder %s43, 0
      %p202 = por %p200, %p201
      %s203 = ssub.s32 %s45, %s52
      %p204 = scmp.eq.s32.totalorder %s203, 0
      %s206 = sadd.s32 %s205, 1
      %s207 = scalar_select %p204, %s205, %s206
      %p210 = pneg %p204
      %p211 = scmp.eq.s32.totalorder %s37, 3
      %p212 = por %p210, %p211
      %p213 = scmp.ne.s32.totalorder %s205, %s208
      %p214 = scmp.eq.s32.totalorder %s37, 0
      %p215 = por %p213, %p214
      %p216 = scmp.ne.s32.totalorder %s205, %s208
      %p217 = scmp.eq.s32.totalorder %s42, 3
      %p218 = por %p216, %p217
      %p219 = scmp.ne.s32.totalorder %s208, %s209
      %p220 = scmp.eq.s32.totalorder %s42, 0
      %p221 = por %p219, %p220
      %p222 = scmp.ne.s32.totalorder %s208, %s209
      %p223 = scmp.eq.s32.totalorder %s43, 3
      %p224 = por %p222, %p223
      %p226 = scmp.ne.s32.totalorder %s209, %s225
      %p227 = scmp.eq.s32.totalorder %s43, 0
      %p228 = por %p226, %p227
      %s230 = sadd.s32 %s229, 1
      %p233 = scmp.eq.s32.totalorder %s37, 3
      %p234 = scmp.ne.s32.totalorder %s229, %s231
      %p235 = scmp.eq.s32.totalorder %s37, 0
      %p236 = por %p234, %p235
      %p237 = scmp.ne.s32.totalorder %s229, %s231
      %p238 = scmp.eq.s32.totalorder %s42, 3
      %p239 = por %p237, %p238
      %p240 = scmp.ne.s32.totalorder %s231, %s232
      %p241 = scmp.eq.s32.totalorder %s42, 0
      %p242 = por %p240, %p241
      %p243 = scmp.ne.s32.totalorder %s231, %s232
      %p244 = scmp.eq.s32.totalorder %s43, 3
      %p245 = por %p243, %p244
      %p247 = scmp.ne.s32.totalorder %s232, %s246
      %p248 = scmp.eq.s32.totalorder %s43, 0
      %p249 = por %p247, %p248
      %s251 = sadd.s32 %s250, 1
      %p254 = scmp.eq.s32.totalorder %s37, 3
      %p255 = scmp.ne.s32.totalorder %s250, %s252
      %p256 = scmp.eq.s32.totalorder %s37, 0
      %p257 = por %p255, %p256
      %p258 = scmp.ne.s32.totalorder %s250, %s252
      %p259 = scmp.eq.s32.totalorder %s42, 3
      %p260 = por %p258, %p259
      %p261 = scmp.ne.s32.totalorder %s252, %s253
      %p262 = scmp.eq.s32.totalorder %s42, 0
      %p263 = por %p261, %p262
      %p264 = scmp.ne.s32.totalorder %s252, %s253
      %p265 = scmp.eq.s32.totalorder %s43, 3
      %p266 = por %p264, %p265
      %p268 = scmp.ne.s32.totalorder %s253, %s267
      %p269 = scmp.eq.s32.totalorder %s43, 0
      %p270 = por %p268, %p269
      %s271 = ssub.s32 %s45, %s52
      %p272 = scmp.eq.s32.totalorder %s271, 0
      %s274 = sadd.s32 %s273, 1
      %s275 = scalar_select %p272, %s273, %s274
      %p278 = pneg %p272
      %p279 = scmp.eq.s32.totalorder %s37, 3
      %p280 = por %p278, %p279
      %p281 = scmp.ne.s32.totalorder %s273, %s276
      %p282 = scmp.eq.s32.totalorder %s37, 0
      %p283 = por %p281, %p282
      %p284 = scmp.ne.s32.totalorder %s273, %s276
      %p285 = scmp.eq.s32.totalorder %s42, 3
      %p286 = por %p284, %p285
      %p287 = scmp.ne.s32.totalorder %s276, %s277
      %p288 = scmp.eq.s32.totalorder %s42, 0
      %p289 = por %p287, %p288
      %p290 = scmp.ne.s32.totalorder %s276, %s277
      %p291 = scmp.eq.s32.totalorder %s43, 3
      %p292 = por %p290, %p291
      %p294 = scmp.ne.s32.totalorder %s277, %s293
      %p295 = scmp.eq.s32.totalorder %s43, 0
      %p296 = por %p294, %p295
      %s297 = ssub.s32 %s45, %s52
      %p298 = scmp.eq.s32.totalorder %s297, 0
      %s300 = sadd.s32 %s299, 1
      %s301 = scalar_select %p298, %s299, %s300
      %p304 = pneg %p298
      %p305 = scmp.eq.s32.totalorder %s37, 3
      %p306 = por %p304, %p305
      %p307 = scmp.ne.s32.totalorder %s299, %s302
      %p308 = scmp.eq.s32.totalorder %s37, 0
      %p309 = por %p307, %p308
      %p310 = scmp.ne.s32.totalorder %s299, %s302
      %p311 = scmp.eq.s32.totalorder %s42, 3
      %p312 = por %p310, %p311
      %p313 = scmp.ne.s32.totalorder %s302, %s303
      %p314 = scmp.eq.s32.totalorder %s42, 0
      %p315 = por %p313, %p314
      %p316 = scmp.ne.s32.totalorder %s302, %s303
      %p317 = scmp.eq.s32.totalorder %s43, 3
      %p318 = por %p316, %p317
      %p320 = scmp.ne.s32.totalorder %s303, %s319
      %p321 = scmp.eq.s32.totalorder %s43, 0
      %p322 = por %p320, %p321
      %s323 = ssub.s32 %s45, %s52
      %p324 = scmp.eq.s32.totalorder %s323, 0
      %s326 = sadd.s32 %s325, 1
      %s327 = scalar_select %p324, %s325, %s326
      %p330 = pneg %p324
      %p331 = scmp.eq.s32.totalorder %s37, 3
      %p332 = por %p330, %p331
      %p333 = scmp.ne.s32.totalorder %s325, %s328
      %p334 = scmp.eq.s32.totalorder %s37, 0
      %p335 = por %p333, %p334
      %p336 = scmp.ne.s32.totalorder %s325, %s328
      %p337 = scmp.eq.s32.totalorder %s42, 3
      %p338 = por %p336, %p337
      %p339 = scmp.ne.s32.totalorder %s328, %s329
      %p340 = scmp.eq.s32.totalorder %s42, 0
      %p341 = por %p339, %p340
      %p342 = scmp.ne.s32.totalorder %s328, %s329
      %p343 = scmp.eq.s32.totalorder %s43, 3
      %p344 = por %p342, %p343
      %p346 = scmp.ne.s32.totalorder %s329, %s345
      %p347 = scmp.eq.s32.totalorder %s43, 0
      %p348 = por %p346, %p347
      %s349 = ssub.s32 %s45, %s52
      %p350 = scmp.eq.s32.totalorder %s349, 0
      %s352 = sadd.s32 %s351, 1
      %s353 = scalar_select %p350, %s351, %s352
      %p356 = pneg %p350
      %p357 = scmp.eq.s32.totalorder %s37, 3
      %p358 = por %p356, %p357
      %p359 = scmp.ne.s32.totalorder %s351, %s354
      %p360 = scmp.eq.s32.totalorder %s37, 0
      %p361 = por %p359, %p360
      %p362 = scmp.ne.s32.totalorder %s351, %s354
      %p363 = scmp.eq.s32.totalorder %s42, 3
      %p364 = por %p362, %p363
      %p365 = scmp.ne.s32.totalorder %s354, %s355
      %p366 = scmp.eq.s32.totalorder %s42, 0
      %p367 = por %p365, %p366
      %p368 = scmp.ne.s32.totalorder %s354, %s355
      %p369 = scmp.eq.s32.totalorder %s43, 3
      %p370 = por %p368, %p369
      %p372 = scmp.ne.s32.totalorder %s355, %s371
      %p373 = scmp.eq.s32.totalorder %s43, 0
      %p374 = por %p372, %p373
      %s375 = ssub.s32 %s45, %s52
      %p376 = scmp.eq.s32.totalorder %s375, 0
      %s378 = sadd.s32 %s377, 1
      %s379 = scalar_select %p376, %s377, %s378
      %p382 = pneg %p376
      %p383 = scmp.eq.s32.totalorder %s37, 3
      %p384 = por %p382, %p383
      %p385 = scmp.ne.s32.totalorder %s377, %s380
      %p386 = scmp.eq.s32.totalorder %s37, 0
      %p387 = por %p385, %p386
      %p388 = scmp.ne.s32.totalorder %s377, %s380
      %p389 = scmp.eq.s32.totalorder %s42, 3
      %p390 = por %p388, %p389
      %p391 = scmp.ne.s32.totalorder %s380, %s381
      %p392 = scmp.eq.s32.totalorder %s42, 0
      %p393 = por %p391, %p392
      %p394 = scmp.ne.s32.totalorder %s380, %s381
      %p395 = scmp.eq.s32.totalorder %s43, 3
      %p396 = por %p394, %p395
      %p398 = scmp.ne.s32.totalorder %s381, %s397
      %p399 = scmp.eq.s32.totalorder %s43, 0
      %p400 = por %p398, %p399
      %s401 = ssub.s32 %s45, %s52
      %p402 = scmp.eq.s32.totalorder %s401, 0
      %s404 = sadd.s32 %s403, 1
      %s405 = scalar_select %p402, %s403, %s404
      %p408 = pneg %p402
      %p409 = scmp.eq.s32.totalorder %s37, 3
      %p410 = por %p408, %p409
      %p411 = scmp.ne.s32.totalorder %s403, %s406
      %p412 = scmp.eq.s32.totalorder %s37, 0
      %p413 = por %p411, %p412
      %p414 = scmp.ne.s32.totalorder %s403, %s406
      %p415 = scmp.eq.s32.totalorder %s42, 3
      %p416 = por %p414, %p415
      %p417 = scmp.ne.s32.totalorder %s406, %s407
      %p418 = scmp.eq.s32.totalorder %s42, 0
      %p419 = por %p417, %p418
      %p420 = scmp.ne.s32.totalorder %s406, %s407
      %p421 = scmp.eq.s32.totalorder %s43, 3
      %p422 = por %p420, %p421
      %p424 = scmp.ne.s32.totalorder %s407, %s423
      %p425 = scmp.eq.s32.totalorder %s43, 0
      %p426 = por %p424, %p425
      %s427 = ssub.s32 %s45, %s52
      %p428 = scmp.eq.s32.totalorder %s427, 0
      %s430 = sadd.s32 %s429, 1
      %s431 = scalar_select %p428, %s429, %s430
      %p434 = pneg %p428
      %p435 = scmp.eq.s32.totalorder %s37, 3
      %p436 = por %p434, %p435
      %p437 = scmp.ne.s32.totalorder %s429, %s432
      %p438 = scmp.eq.s32.totalorder %s37, 0
      %p439 = por %p437, %p438
      %p440 = scmp.ne.s32.totalorder %s429, %s432
      %p441 = scmp.eq.s32.totalorder %s42, 3
      %p442 = por %p440, %p441
      %p443 = scmp.ne.s32.totalorder %s432, %s433
      %p444 = scmp.eq.s32.totalorder %s42, 0
      %p445 = por %p443, %p444
      %p446 = scmp.ne.s32.totalorder %s432, %s433
      %p447 = scmp.eq.s32.totalorder %s43, 3
      %p448 = por %p446, %p447
      %p450 = scmp.ne.s32.totalorder %s433, %s449
      %p451 = scmp.eq.s32.totalorder %s43, 0
      %p452 = por %p450, %p451
      %s453 = ssub.s32 %s44, %s56
      %p454 = scmp.eq.s32.totalorder %s453, 0
      %s456 = sadd.s32 %s455, 1
      %s457 = scalar_select %p454, %s455, %s456
      %p460 = pneg %p454
      %p461 = scmp.eq.s32.totalorder %s37, 3
      %p462 = por %p460, %p461
      %p463 = scmp.ne.s32.totalorder %s455, %s458
      %p464 = scmp.eq.s32.totalorder %s37, 0
      %p465 = por %p463, %p464
      %p466 = scmp.ne.s32.totalorder %s455, %s458
      %p467 = scmp.eq.s32.totalorder %s42, 3
      %p468 = por %p466, %p467
      %p469 = scmp.ne.s32.totalorder %s458, %s459
      %p470 = scmp.eq.s32.totalorder %s42, 0
      %p471 = por %p469, %p470
      %p472 = scmp.ne.s32.totalorder %s458, %s459
      %p473 = scmp.eq.s32.totalorder %s43, 3
      %p474 = por %p472, %p473
      %p476 = scmp.ne.s32.totalorder %s459, %s475
      %p477 = scmp.eq.s32.totalorder %s43, 0
      %p478 = por %p476, %p477
      %p479 = scmp.le.s32.totalorder 1, %s37
      %p480 = scmp.lt.s32.totalorder %s37, 5
      %p481 = pnand %p479, %p480
      %p482 = pneg %p481
      // Predicated region
      $region9: #{transformer_forward.1} parent=5 // pred_check
        _
      $region10: #{transformer_forward.1} parent=5 // pred_check_branch
        %484 = sbr.rel (%p481) target = $region12
      $region11: #{transformer_forward.1} parent=5 // pred_region
        %s485 = ssub.s32 %s37, 1
        // Predicated region
        $region13: #{transformer_forward.1} parent=11 // pred_check
          %p486 = pneg %p96
        $region14: #{transformer_forward.1} parent=11 // pred_check_branch
          %488 = sbr.rel (%p486) target = $region16
        $region15: #{transformer_forward.1} parent=11 // pred_region
          _
        $region16: #{transformer_forward.1} parent=11 // pred_fallthru
          _
        // Predicated region
        $region17: #{transformer_forward.1} parent=11 // pred_check
          %p489 = pneg %p117
        $region18: #{transformer_forward.1} parent=11 // pred_check_branch
          %491 = sbr.rel (%p489) target = $region20
        $region19: #{transformer_forward.1} parent=11 // pred_region
          _
        $region20: #{transformer_forward.1} parent=11 // pred_fallthru
          _
        // Predicated region
        $region21: #{transformer_forward.1} parent=11 // pred_check
          %p492 = pneg %p242
        $region22: #{transformer_forward.1} parent=11 // pred_check_branch
          %494 = sbr.rel (%p492) target = $region24
        $region23: #{transformer_forward.1} parent=11 // pred_region
          _
        $region24: #{transformer_forward.1} parent=11 // pred_fallthru
          _
        // Predicated region
        $region25: #{transformer_forward.1} parent=11 // pred_check
          %p495 = pneg %p263
        $region26: #{transformer_forward.1} parent=11 // pred_check_branch
          %497 = sbr.rel (%p495) target = $region28
        $region27: #{transformer_forward.1} parent=11 // pred_region
          _
        $region28: #{transformer_forward.1} parent=11 // pred_fallthru
          _
      $region12: #{transformer_forward.1} parent=5 // pred_fallthru
        _
      %p498 = scmp.lt.s32.totalorder %s37, 4
      // Predicated region
      $region29: #{transformer_forward.1} parent=5 // pred_check
        %p499 = pneg %p498
      $region30: #{transformer_forward.1} parent=5 // pred_check_branch
        %501 = sbr.rel (%p499) target = $region32
      $region31: #{transformer_forward.1} parent=5 // pred_region
        // Predicated region
        $region33: #{transformer_forward.1} parent=31 // pred_check
          %p502 = pneg %p69
        $region34: #{transformer_forward.1} parent=31 // pred_check_branch
          %504 = sbr.rel (%p502) target = $region36
        $region35: #{transformer_forward.1} parent=31 // pred_region
          %p505 = scmp.lt.s32.totalorder %s44, 1
          %s506 = scalar_select %p505, %s44, 1
          %s507 = smul.addr %s506, 4
          %s508 = smul.addr %s507, 8
          %s509 = scalar_lea.vmem %s0, %s508
        $region36: #{transformer_forward.1} parent=31 // pred_fallthru
          _
        // Predicated region
        $region37: #{transformer_forward.1} parent=31 // pred_check
          %p510 = pneg %p137
        $region38: #{transformer_forward.1} parent=31 // pred_check_branch
          %512 = sbr.rel (%p510) target = $region40
        $region39: #{transformer_forward.1} parent=31 // pred_region
          %p513 = scmp.lt.s32.totalorder %s45, 1
          %s514 = scalar_select %p513, %s45, 1
          %s515 = smul.addr %s514, 2
          %s516 = scalar_lea.vmem %s3, %s515
        $region40: #{transformer_forward.1} parent=31 // pred_fallthru
          _
        // Predicated region
        $region41: #{transformer_forward.1} parent=31 // pred_check
          %p517 = pneg %p163
        $region42: #{transformer_forward.1} parent=31 // pred_check_branch
          %519 = sbr.rel (%p517) target = $region44
        $region43: #{transformer_forward.1} parent=31 // pred_region
          %p520 = scmp.lt.s32.totalorder %s45, 1
          %s521 = scalar_select %p520, %s45, 1
          %s522 = smul.addr %s521, 2
          %s523 = scalar_lea.vmem %s4, %s522
        $region44: #{transformer_forward.1} parent=31 // pred_fallthru
          _
        // Predicated region
        $region45: #{transformer_forward.1} parent=31 // pred_check
          %p524 = pneg %p189
        $region46: #{transformer_forward.1} parent=31 // pred_check_branch
          %526 = sbr.rel (%p524) target = $region48
        $region47: #{transformer_forward.1} parent=31 // pred_region
          %p527 = scmp.lt.s32.totalorder %s45, 1
          %s528 = scalar_select %p527, %s45, 1
          %s529 = smul.addr %s528, 2
          %s530 = scalar_lea.vmem %s5, %s529
        $region48: #{transformer_forward.1} parent=31 // pred_fallthru
          _
        // Predicated region
        $region49: #{transformer_forward.1} parent=31 // pred_check
          %p531 = pneg %p215
        $region50: #{transformer_forward.1} parent=31 // pred_check_branch
          %533 = sbr.rel (%p531) target = $region52
        $region51: #{transformer_forward.1} parent=31 // pred_region
          %p534 = scmp.lt.s32.totalorder %s45, 1
          %s535 = scalar_select %p534, %s45, 1
          %s536 = smul.addr %s535, 2
          %s537 = scalar_lea.vmem %s6, %s536
        $region52: #{transformer_forward.1} parent=31 // pred_fallthru
          _
        // Predicated region
        $region53: #{transformer_forward.1} parent=31 // pred_check
          %p538 = pneg %p283
        $region54: #{transformer_forward.1} parent=31 // pred_check_branch
          %540 = sbr.rel (%p538) target = $region56
        $region55: #{transformer_forward.1} parent=31 // pred_region
          %p541 = scmp.lt.s32.totalorder %s45, 1
          %s542 = scalar_select %p541, %s45, 1
          %s543 = smul.addr %s542, 64
          %s544 = smul.addr %s543, 4
          %s545 = scalar_lea.vmem %s9, %s544
        $region56: #{transformer_forward.1} parent=31 // pred_fallthru
          _
        // Predicated region
        $region57: #{transformer_forward.1} parent=31 // pred_check
          %p546 = pneg %p309
        $region58: #{transformer_forward.1} parent=31 // pred_check_branch
          %548 = sbr.rel (%p546) target = $region60
        $region59: #{transformer_forward.1} parent=31 // pred_region
          %s549 = sand.u32 %s299, 1
          %s550 = scalar_lea.sflag [#allocation3], %s549
          %s551 = sand.u32 %s299, 1
          %s552 = smul.addr %s551, 256
          %s553 = scalar_lea.vmem [#allocation2], %s552
          %s555 = ssub.s32 4096, 4096
          %556 = vsyncadd %s550, %s555
          %s557 = smul.addr %s45, 64
          %s558 = smul.addr %s557, 64
          %s559 = scalar_lea.hbm %s10, %s558
          %s560 = sshll.u32 %s553, 4
          %s561 = int_to_ptr.vmem [resolvable:$true] %s560
          %566 = dma.hbm_to_vmem [thread:$0]  %s559, 4096, %s561, %s550, 128, 128, 8
        $region60: #{transformer_forward.1} parent=31 // pred_fallthru
          _
        // Predicated region
        $region61: #{transformer_forward.1} parent=31 // pred_check
          %p567 = pneg %p335
        $region62: #{transformer_forward.1} parent=31 // pred_check_branch
          %569 = sbr.rel (%p567) target = $region64
        $region63: #{transformer_forward.1} parent=31 // pred_region
          %s570 = sand.u32 %s37, 1
          %s571 = scalar_lea.sflag [#allocation6], %s570
          %s572 = sand.u32 %s325, 1
          %s573 = smul.addr %s572, 256
          %s574 = scalar_lea.vmem [#allocation5], %s573
          %s576 = ssub.s32 4096, 4096
          %577 = vsyncadd %s571, %s576
          %s578 = smul.addr %s45, 64
          %s579 = smul.addr %s578, 64
          %s580 = scalar_lea.hbm %s11, %s579
          %s581 = sshll.u32 %s574, 4
          %s582 = int_to_ptr.vmem [resolvable:$true] %s581
          %587 = dma.hbm_to_vmem [thread:$0]  %s580, 4096, %s582, %s571, 128, 128, 8
        $region64: #{transformer_forward.1} parent=31 // pred_fallthru
          _
        // Predicated region
        $region65: #{transformer_forward.1} parent=31 // pred_check
          %p588 = pneg %p361
        $region66: #{transformer_forward.1} parent=31 // pred_check_branch
          %590 = sbr.rel (%p588) target = $region68
        $region67: #{transformer_forward.1} parent=31 // pred_region
          %s591 = sand.u32 %s37, 1
          %s592 = scalar_lea.sflag [#allocation6], %s591
          %s593 = sand.u32 %s351, 1
          %s594 = smul.addr %s593, 256
          %s595 = scalar_lea.vmem [#allocation7], %s594
          %s597 = ssub.s32 4096, 4096
          %598 = vsyncadd %s592, %s597
          %s599 = smul.addr %s45, 64
          %s600 = smul.addr %s599, 64
          %s601 = scalar_lea.hbm %s12, %s600
          %s602 = sshll.u32 %s595, 4
          %s603 = int_to_ptr.vmem [resolvable:$true] %s602
          %608 = dma.hbm_to_vmem [thread:$0]  %s601, 4096, %s603, %s592, 128, 128, 8
        $region68: #{transformer_forward.1} parent=31 // pred_fallthru
          _
        // Predicated region
        $region69: #{transformer_forward.1} parent=31 // pred_check
          %p609 = pneg %p387
        $region70: #{transformer_forward.1} parent=31 // pred_check_branch
          %611 = sbr.rel (%p609) target = $region72
        $region71: #{transformer_forward.1} parent=31 // pred_region
          %s612 = sand.u32 %s37, 1
          %s613 = scalar_lea.sflag [#allocation9], %s612
          %s614 = sand.u32 %s377, 1
          %s615 = smul.addr %s614, 512
          %s616 = scalar_lea.vmem [#allocation8], %s615
          %s618 = ssub.s32 8192, 8192
          %619 = vsyncadd %s613, %s618
          %s620 = smul.addr %s45, 128
          %s621 = smul.addr %s620, 64
          %s622 = scalar_lea.hbm %s13, %s621
          %s623 = sshll.u32 %s616, 4
          %s624 = int_to_ptr.vmem [resolvable:$true] %s623
          %629 = dma.hbm_to_vmem [thread:$0]  %s622, 8192, %s624, %s613, 256, 256, 16
        $region72: #{transformer_forward.1} parent=31 // pred_fallthru
          _
        // Predicated region
        $region73: #{transformer_forward.1} parent=31 // pred_check
          %p630 = pneg %p413
        $region74: #{transformer_forward.1} parent=31 // pred_check_branch
          %632 = sbr.rel (%p630) target = $region76
        $region75: #{transformer_forward.1} parent=31 // pred_region
          %s633 = sand.u32 %s37, 1
          %s634 = scalar_lea.sflag [#allocation9], %s633
          %s635 = sand.u32 %s403, 1
          %s636 = smul.addr %s635, 512
          %s637 = scalar_lea.vmem [#allocation10], %s636
          %s639 = ssub.s32 8192, 8192
          %640 = vsyncadd %s634, %s639
          %s641 = smul.addr %s45, 128
          %s642 = smul.addr %s641, 64
          %s643 = scalar_lea.hbm %s14, %s642
          %s644 = sshll.u32 %s637, 4
          %s645 = int_to_ptr.vmem [resolvable:$true] %s644
          %650 = dma.hbm_to_vmem [thread:$0]  %s643, 8192, %s645, %s634, 256, 256, 16
        $region76: #{transformer_forward.1} parent=31 // pred_fallthru
          _
        // Predicated region
        $region77: #{transformer_forward.1} parent=31 // pred_check
          %p651 = pneg %p439
        $region78: #{transformer_forward.1} parent=31 // pred_check_branch
          %653 = sbr.rel (%p651) target = $region80
        $region79: #{transformer_forward.1} parent=31 // pred_region
          %s654 = sand.u32 %s429, 1
          %s655 = scalar_lea.sflag [#allocation12], %s654
          %s656 = sand.u32 %s429, 1
          %s657 = smul.addr %s656, 512
          %s658 = scalar_lea.vmem [#allocation11], %s657
          %s660 = ssub.s32 8192, 8192
          %661 = vsyncadd %s655, %s660
          %s662 = smul.addr %s45, 128
          %s663 = smul.addr %s662, 64
          %s664 = scalar_lea.hbm %s15, %s663
          %s665 = sshll.u32 %s658, 4
          %s666 = int_to_ptr.vmem [resolvable:$true] %s665
          %671 = dma.hbm_to_vmem [thread:$0]  %s664, 8192, %s666, %s655, 128, 128, 8
        $region80: #{transformer_forward.1} parent=31 // pred_fallthru
          _
      $region32: #{transformer_forward.1} parent=5 // pred_fallthru
        _
      %p672 = scmp.le.s32.totalorder 1, %s37
      %p673 = scmp.lt.s32.totalorder %s37, 5
      %p674 = pnand %p672, %p673
      %p675 = pneg %p674
      // Predicated region
      $region81: #{transformer_forward.1} parent=5 // pred_check
        _
      $region82: #{transformer_forward.1} parent=5 // pred_check_branch
        %677 = sbr.rel (%p674) target = $region84
      $region83: #{transformer_forward.1} parent=5 // pred_region
        %s678 = ssub.s32 %s37, 1
        %s679 = sand.u32 %s302, 1
        %s680 = scalar_lea.sflag [#allocation3], %s679
        %s681 = sand.u32 %s302, 1
        %s682 = smul.addr %s681, 256
        %s683 = scalar_lea.vmem [#allocation2], %s682
        // Predicated region
        $region85: #{transformer_forward.1} parent=83 // pred_check
          %p684 = pneg %p315
        $region86: #{transformer_forward.1} parent=83 // pred_check_branch
          %686 = sbr.rel (%p684) target = $region88
        $region87: #{transformer_forward.1} parent=83 // pred_region
          %687 = dma.done %s680, 4096
        $region88: #{transformer_forward.1} parent=83 // pred_fallthru
          _
        %s688 = sand.u32 %s42, 1
        %s689 = scalar_lea.sflag [#allocation6], %s688
        %s690 = sand.u32 %s328, 1
        %s691 = smul.addr %s690, 256
        %s692 = scalar_lea.vmem [#allocation5], %s691
        // Predicated region
        $region89: #{transformer_forward.1} parent=83 // pred_check
          %p693 = pneg %p341
        $region90: #{transformer_forward.1} parent=83 // pred_check_branch
          %695 = sbr.rel (%p693) target = $region92
        $region91: #{transformer_forward.1} parent=83 // pred_region
          %696 = dma.done %s689, 4096
        $region92: #{transformer_forward.1} parent=83 // pred_fallthru
          _
        %s697 = sand.u32 %s42, 1
        %s698 = scalar_lea.sflag [#allocation6], %s697
        %s699 = sand.u32 %s354, 1
        %s700 = smul.addr %s699, 256
        %s701 = scalar_lea.vmem [#allocation7], %s700
        // Predicated region
        $region93: #{transformer_forward.1} parent=83 // pred_check
          %p702 = pneg %p367
        $region94: #{transformer_forward.1} parent=83 // pred_check_branch
          %704 = sbr.rel (%p702) target = $region96
        $region95: #{transformer_forward.1} parent=83 // pred_region
          %705 = dma.done %s698, 4096
        $region96: #{transformer_forward.1} parent=83 // pred_fallthru
          _
        %s706 = sand.u32 %s42, 1
        %s707 = scalar_lea.sflag [#allocation9], %s706
        %s708 = sand.u32 %s380, 1
        %s709 = smul.addr %s708, 512
        %s710 = scalar_lea.vmem [#allocation8], %s709
        // Predicated region
        $region97: #{transformer_forward.1} parent=83 // pred_check
          %p711 = pneg %p393
        $region98: #{transformer_forward.1} parent=83 // pred_check_branch
          %713 = sbr.rel (%p711) target = $region100
        $region99: #{transformer_forward.1} parent=83 // pred_region
          %714 = dma.done %s707, 8192
        $region100: #{transformer_forward.1} parent=83 // pred_fallthru
          _
        %s715 = sand.u32 %s42, 1
        %s716 = scalar_lea.sflag [#allocation9], %s715
        %s717 = sand.u32 %s406, 1
        %s718 = smul.addr %s717, 512
        %s719 = scalar_lea.vmem [#allocation10], %s718
        // Predicated region
        $region101: #{transformer_forward.1} parent=83 // pred_check
          %p720 = pneg %p419
        $region102: #{transformer_forward.1} parent=83 // pred_check_branch
          %722 = sbr.rel (%p720) target = $region104
        $region103: #{transformer_forward.1} parent=83 // pred_region
          %723 = dma.done %s716, 8192
        $region104: #{transformer_forward.1} parent=83 // pred_fallthru
          _
        %s724 = sand.u32 %s432, 1
        %s725 = scalar_lea.sflag [#allocation12], %s724
        %s726 = sand.u32 %s432, 1
        %s727 = smul.addr %s726, 512
        %s728 = scalar_lea.vmem [#allocation11], %s727
        // Predicated region
        $region105: #{transformer_forward.1} parent=83 // pred_check
          %p729 = pneg %p445
        $region106: #{transformer_forward.1} parent=83 // pred_check_branch
          %731 = sbr.rel (%p729) target = $region108
        $region107: #{transformer_forward.1} parent=83 // pred_region
          %732 = dma.done %s725, 8192
        $region108: #{transformer_forward.1} parent=83 // pred_fallthru
          _
        %p733 = scmp.lt.s32.totalorder %s46, 1
        %s734 = scalar_select %p733, %s46, 1
        %s735 = smul.addr %s734, 4
        %s736 = smul.addr %s735, 8
        %s737 = scalar_lea.vmem %s0, %s736
        %p738 = pneg %p75
        %p739 = pneg %p72
        %p740 = pneg %p96
        %p741 = pneg %p93
        %p742 = pneg %p117
        %p743 = pneg %p114
        %p744 = scmp.lt.s32.totalorder %s47, 1
        %s745 = scalar_select %p744, %s47, 1
        %s746 = smul.addr %s745, 2
        %s747 = scalar_lea.vmem %s3, %s746
        %p748 = pneg %p143
        %p749 = pneg %p140
        %p750 = scmp.lt.s32.totalorder %s47, 1
        %s751 = scalar_select %p750, %s47, 1
        %s752 = smul.addr %s751, 2
        %s753 = scalar_lea.vmem %s4, %s752
        %p754 = pneg %p169
        %p755 = pneg %p166
        %p756 = scmp.lt.s32.totalorder %s47, 1
        %s757 = scalar_select %p756, %s47, 1
        %s758 = smul.addr %s757, 2
        %s759 = scalar_lea.vmem %s5, %s758
        %p760 = pneg %p195
        %p761 = pneg %p192
        %p762 = scmp.lt.s32.totalorder %s47, 1
        %s763 = scalar_select %p762, %s47, 1
        %s764 = smul.addr %s763, 2
        %s765 = scalar_lea.vmem %s6, %s764
        %p766 = pneg %p221
        %p767 = pneg %p218
        %p768 = pneg %p242
        %p769 = pneg %p239
        %p770 = pneg %p263
        %p771 = pneg %p260
        %p772 = scmp.lt.s32.totalorder %s47, 1
        %s773 = scalar_select %p772, %s47, 1
        %s774 = smul.addr %s773, 64
        %s775 = smul.addr %s774, 4
        %s776 = scalar_lea.vmem %s9, %s775
        %p777 = pneg %p289
        %p778 = pneg %p286
        %s779 = sand.u32 %s302, 1
        %s780 = scalar_lea.sflag [#allocation3], %s779
        %s781 = sand.u32 %s302, 1
        %s782 = smul.addr %s781, 256
        %s783 = scalar_lea.vmem [#allocation2], %s782
        %p784 = pneg %p315
        %p785 = pneg %p312
        %s786 = sand.u32 %s42, 1
        %s787 = scalar_lea.sflag [#allocation6], %s786
        %s788 = sand.u32 %s328, 1
        %s789 = smul.addr %s788, 256
        %s790 = scalar_lea.vmem [#allocation5], %s789
        %p791 = pneg %p341
        %p792 = pneg %p338
        %s793 = sand.u32 %s42, 1
        %s794 = scalar_lea.sflag [#allocation6], %s793
        %s795 = sand.u32 %s354, 1
        %s796 = smul.addr %s795, 256
        %s797 = scalar_lea.vmem [#allocation7], %s796
        %p798 = pneg %p367
        %p799 = pneg %p364
        %s800 = sand.u32 %s42, 1
        %s801 = scalar_lea.sflag [#allocation9], %s800
        %s802 = sand.u32 %s380, 1
        %s803 = smul.addr %s802, 512
        %s804 = scalar_lea.vmem [#allocation8], %s803
        %p805 = pneg %p393
        %p806 = pneg %p390
        %s807 = sand.u32 %s42, 1
        %s808 = scalar_lea.sflag [#allocation9], %s807
        %s809 = sand.u32 %s406, 1
        %s810 = smul.addr %s809, 512
        %s811 = scalar_lea.vmem [#allocation10], %s810
        %p812 = pneg %p419
        %p813 = pneg %p416
        %s814 = sand.u32 %s432, 1
        %s815 = scalar_lea.sflag [#allocation12], %s814
        %s816 = sand.u32 %s432, 1
        %s817 = smul.addr %s816, 512
        %s818 = scalar_lea.vmem [#allocation11], %s817
        %p819 = pneg %p445
        %p820 = pneg %p442
        %p821 = pneg %p471
        %p822 = pneg %p468
        %s823 = sand.u32 %s458, 1
        %s824 = scalar_lea.sflag [#allocation4], %s823
        %s825 = sand.u32 %s458, 1
        %s826 = smul.addr %s825, 32
        %s827 = scalar_lea.vmem [#allocation13], %s826
        %p828 = scmp.lt.s32.totalorder %s46, 1
        %s829 = scalar_select %p828, %s46, 1
        %s830 = smul.addr %s829, 4
        %s831 = smul.addr %s830, 8
        %s832 = scalar_lea.vmem %s0, %s831
        %p833 = scmp.lt.s32.totalorder %s47, 1
        %s834 = scalar_select %p833, %s47, 1
        %s835 = smul.addr %s834, 2
        %s836 = scalar_lea.vmem %s3, %s835
        %p837 = scmp.lt.s32.totalorder %s47, 1
        %s838 = scalar_select %p837, %s47, 1
        %s839 = smul.addr %s838, 2
        %s840 = scalar_lea.vmem %s4, %s839
        %p841 = scmp.lt.s32.totalorder %s47, 1
        %s842 = scalar_select %p841, %s47, 1
        %s843 = smul.addr %s842, 2
        %s844 = scalar_lea.vmem %s5, %s843
        %p845 = scmp.lt.s32.totalorder %s47, 1
        %s846 = scalar_select %p845, %s47, 1
        %s847 = smul.addr %s846, 2
        %s848 = scalar_lea.vmem %s6, %s847
        %p849 = scmp.lt.s32.totalorder %s47, 1
        %s850 = scalar_select %p849, %s47, 1
        %s851 = smul.addr %s850, 64
        %s852 = smul.addr %s851, 4
        %s853 = scalar_lea.vmem %s9, %s852
        %p855 = scmp.eq.s32.totalorder %s47, 0
        // Predicated region
        $region109: #{transformer_forward.1} parent=83 // pred_check
          %p856 = pneg %p855
        $region110: #{transformer_forward.1} parent=83 // pred_check_branch
          %858 = sbr.rel (%p856) target = $region112
        $region111: #{transformer_forward.1} parent=83 // pred_region
          %v859 = vld [vmem:[%s832] sm:$0xff]
          %v860 = vld [vmem:[%s832 + $0x8] sm:$0xff]
          %v861 = vld [vmem:[%s832 + $0x10] sm:$0xff]
          %v862 = vld [vmem:[%s832 + $0x18] sm:$0xff]
          %863 = vst [vmem:[%s827] sm:$0xff] %v859
          %864 = vst [vmem:[%s827 + $0x8] sm:$0xff] %v860
          %865 = vst [vmem:[%s827 + $0x10] sm:$0xff] %v861
          %866 = vst [vmem:[%s827 + $0x18] sm:$0xff] %v862
        $region112: #{transformer_forward.1} parent=83 // pred_fallthru
          _
        %v867 = vld [vmem:[%s827] sm:$0xff]
        %v868 = vld [vmem:[%s827 + $0x8] sm:$0xff]
        %v869 = vld [vmem:[%s827 + $0x10] sm:$0xff]
        %v870 = vld [vmem:[%s827 + $0x18] sm:$0xff]
        %v871 = vld [vmem:[%s836] sm:$0x3]
        %v872 = vld [vmem:[%s840] sm:$0x3]
        %v873 = vadd.f32 %v867, %v868
        %874 = vadd.xlane.f32.xlu0 %v873
        %v875 = vpop.xlane.xlu0 %874
        %v876 = vadd.f32 %v869, %v870
        %877 = vadd.xlane.f32.xlu0 %v876
        %v878 = vpop.xlane.xlu0 %877
        %v879 = vrcp.pop 256.0
        %v880 = vmul.f32 %v875, %v879
        %v881 = vmul.f32 %v878, %v879
        %v882 = vsub.f32 %v867, %v880
        %v883 = vsub.f32 %v868, %v880
        %v884 = vsub.f32 %v869, %v881
        %v885 = vsub.f32 %v870, %v881
        %v886 = vmul.f32 %v882, %v882
        %v887 = vmul.f32 %v883, %v883
        %v888 = vmul.f32 %v884, %v884
        %v889 = vmul.f32 %v885, %v885
        %v890 = vadd.f32 %v886, %v887
        %891 = vadd.xlane.f32.xlu0 %v890
        %v892 = vpop.xlane.xlu0 %891
        %v893 = vadd.f32 %v888, %v889
        %894 = vadd.xlane.f32.xlu0 %v893
        %v895 = vpop.xlane.xlu0 %894
        %v896 = vmul.f32 %v892, %v879
        %v897 = vmul.f32 %v895, %v879
        %v898 = vadd.f32 %v896, 1e-05
        %v899 = vadd.f32 %v897, 1e-05
        %v900 = vrsqrt.pop %v898
        %v901 = vrsqrt.pop %v899
        %v902 = vmul.f32 %v882, %v900
        %v903 = vmul.f32 %v883, %v900
        %v904 = vmul.f32 %v884, %v901
        %v905 = vmul.f32 %v885, %v901
        %v907 = vlaneseq
        %v908 = vshrl.u32 %v907, 7
        %v909 = vsub.s32 0, %v908
        %v910 = vrot.slane %v871, %v909
        %v911 = vlaneseq
        %v912 = vshrl.u32 %v911, 7
        %v913 = vsub.s32 1, %v912
        %v914 = vrot.slane %v871, %v913
        %v917 = vmul.f32 %v902, %v910
        %v918 = vmul.f32 %v903, %v914
        %v919 = vmul.f32 %v904, %v910
        %v920 = vmul.f32 %v905, %v914
        %v922 = vlaneseq
        %v923 = vshrl.u32 %v922, 7
        %v924 = vsub.s32 0, %v923
        %v925 = vrot.slane %v872, %v924
        %v926 = vlaneseq
        %v927 = vshrl.u32 %v926, 7
        %v928 = vsub.s32 1, %v927
        %v929 = vrot.slane %v872, %v928
        %v932 = vadd.f32 %v917, %v925
        %v933 = vadd.f32 %v918, %v929
        %v934 = vadd.f32 %v919, %v925
        %v935 = vadd.f32 %v920, %v929
        %v936 = vpack.c.bf16 %v934, %v932
        %v937 = vpack.c.bf16 %v935, %v933
        %v938 = vld [vmem:[%s853] sm:$0xff]
        %v939 = vld [vmem:[%s853 + $0x8] sm:$0xff]
        %v940 = vld [vmem:[%s853 + $0x10] sm:$0xff]
        %v941 = vld [vmem:[%s853 + $0x18] sm:$0xff]
        %v942 = vld [vmem:[%s853 + $0x20] sm:$0xff]
        %v943 = vld [vmem:[%s853 + $0x28] sm:$0xff]
        %v944 = vld [vmem:[%s853 + $0x30] sm:$0xff]
        %v945 = vld [vmem:[%s853 + $0x38] sm:$0xff]
        %v946 = vld [vmem:[%s853 + $0x40] sm:$0xff]
        %v947 = vld [vmem:[%s853 + $0x48] sm:$0xff]
        %v948 = vld [vmem:[%s853 + $0x50] sm:$0xff]
        %v949 = vld [vmem:[%s853 + $0x58] sm:$0xff]
        %v950 = vld [vmem:[%s853 + $0x60] sm:$0xff]
        %v951 = vld [vmem:[%s853 + $0x68] sm:$0xff]
        %v952 = vld [vmem:[%s853 + $0x70] sm:$0xff]
        %v953 = vld [vmem:[%s853 + $0x78] sm:$0xff]
        %v954 = vld [vmem:[%s853 + $0x80] sm:$0xff]
        %v955 = vld [vmem:[%s853 + $0x88] sm:$0xff]
        %v956 = vld [vmem:[%s853 + $0x90] sm:$0xff]
        %v957 = vld [vmem:[%s853 + $0x98] sm:$0xff]
        %v958 = vld [vmem:[%s853 + $0xa0] sm:$0xff]
        %v959 = vld [vmem:[%s853 + $0xa8] sm:$0xff]
        %v960 = vld [vmem:[%s853 + $0xb0] sm:$0xff]
        %v961 = vld [vmem:[%s853 + $0xb8] sm:$0xff]
        %v962 = vld [vmem:[%s853 + $0xc0] sm:$0xff]
        %v963 = vld [vmem:[%s853 + $0xc8] sm:$0xff]
        %v964 = vld [vmem:[%s853 + $0xd0] sm:$0xff]
        %v965 = vld [vmem:[%s853 + $0xd8] sm:$0xff]
        %v966 = vld [vmem:[%s853 + $0xe0] sm:$0xff]
        %v967 = vld [vmem:[%s853 + $0xe8] sm:$0xff]
        %v968 = vld [vmem:[%s853 + $0xf0] sm:$0xff]
        %v969 = vld [vmem:[%s853 + $0xf8] sm:$0xff]
        %v1002 = vunpack.c.l.b16 %v938
        %v1003 = vunpack.c.h.b16 %v938
        %v1004 = vunpack.c.l.b16 %v939
        %v1005 = vunpack.c.h.b16 %v939
        %v1006 = vunpack.c.l.b16 %v940
        %v1007 = vunpack.c.h.b16 %v940
        %v1008 = vunpack.c.l.b16 %v941
        %v1009 = vunpack.c.h.b16 %v941
        %v1010 = vunpack.c.l.b16 %v942
        %v1011 = vunpack.c.h.b16 %v942
        %v1012 = vunpack.c.l.b16 %v943
        %v1013 = vunpack.c.h.b16 %v943
        %v1014 = vunpack.c.l.b16 %v944
        %v1015 = vunpack.c.h.b16 %v944
        %v1016 = vunpack.c.l.b16 %v945
        %v1017 = vunpack.c.h.b16 %v945
        %v1018 = vunpack.c.l.b16 %v946
        %v1019 = vunpack.c.h.b16 %v946
        %v1020 = vunpack.c.l.b16 %v947
        %v1021 = vunpack.c.h.b16 %v947
        %v1022 = vunpack.c.l.b16 %v948
        %v1023 = vunpack.c.h.b16 %v948
        %v1024 = vunpack.c.l.b16 %v949
        %v1025 = vunpack.c.h.b16 %v949
        %v1026 = vunpack.c.l.b16 %v950
        %v1027 = vunpack.c.h.b16 %v950
        %v1028 = vunpack.c.l.b16 %v951
        %v1029 = vunpack.c.h.b16 %v951
        %v1030 = vunpack.c.l.b16 %v952
        %v1031 = vunpack.c.h.b16 %v952
        %v1032 = vunpack.c.l.b16 %v953
        %v1033 = vunpack.c.h.b16 %v953
        %v1034 = vunpack.c.l.b16 %v954
        %v1035 = vunpack.c.h.b16 %v954
        %v1036 = vunpack.c.l.b16 %v955
        %v1037 = vunpack.c.h.b16 %v955
        %v1038 = vunpack.c.l.b16 %v956
        %v1039 = vunpack.c.h.b16 %v956
        %v1040 = vunpack.c.l.b16 %v957
        %v1041 = vunpack.c.h.b16 %v957
        %v1042 = vunpack.c.l.b16 %v958
        %v1043 = vunpack.c.h.b16 %v958
        %v1044 = vunpack.c.l.b16 %v959
        %v1045 = vunpack.c.h.b16 %v959
        %v1046 = vunpack.c.l.b16 %v960
        %v1047 = vunpack.c.h.b16 %v960
        %v1048 = vunpack.c.l.b16 %v961
        %v1049 = vunpack.c.h.b16 %v961
        %v1050 = vunpack.c.l.b16 %v962
        %v1051 = vunpack.c.h.b16 %v962
        %v1052 = vunpack.c.l.b16 %v963
        %v1053 = vunpack.c.h.b16 %v963
        %v1054 = vunpack.c.l.b16 %v964
        %v1055 = vunpack.c.h.b16 %v964
        %v1056 = vunpack.c.l.b16 %v965
        %v1057 = vunpack.c.h.b16 %v965
        %v1058 = vunpack.c.l.b16 %v966
        %v1059 = vunpack.c.h.b16 %v966
        %v1060 = vunpack.c.l.b16 %v967
        %v1061 = vunpack.c.h.b16 %v967
        %v1062 = vunpack.c.l.b16 %v968
        %v1063 = vunpack.c.h.b16 %v968
        %v1064 = vunpack.c.l.b16 %v969
        %v1065 = vunpack.c.h.b16 %v969
        %v1066 = vpack.c.b16 %v1004, %v1002
        %v1067 = vpack.c.b16 %v1005, %v1003
        %v1068 = vpack.c.b16 %v1008, %v1006
        %v1069 = vpack.c.b16 %v1009, %v1007
        %v1070 = vpack.c.b16 %v1012, %v1010
        %v1071 = vpack.c.b16 %v1013, %v1011
        %v1072 = vpack.c.b16 %v1016, %v1014
        %v1073 = vpack.c.b16 %v1017, %v1015
        %v1074 = vpack.c.b16 %v1020, %v1018
        %v1075 = vpack.c.b16 %v1021, %v1019
        %v1076 = vpack.c.b16 %v1024, %v1022
        %v1077 = vpack.c.b16 %v1025, %v1023
        %v1078 = vpack.c.b16 %v1028, %v1026
        %v1079 = vpack.c.b16 %v1029, %v1027
        %v1080 = vpack.c.b16 %v1032, %v1030
        %v1081 = vpack.c.b16 %v1033, %v1031
        %v1082 = vpack.c.b16 %v1036, %v1034
        %v1083 = vpack.c.b16 %v1037, %v1035
        %v1084 = vpack.c.b16 %v1040, %v1038
        %v1085 = vpack.c.b16 %v1041, %v1039
        %v1086 = vpack.c.b16 %v1044, %v1042
        %v1087 = vpack.c.b16 %v1045, %v1043
        %v1088 = vpack.c.b16 %v1048, %v1046
        %v1089 = vpack.c.b16 %v1049, %v1047
        %v1090 = vpack.c.b16 %v1052, %v1050
        %v1091 = vpack.c.b16 %v1053, %v1051
        %v1092 = vpack.c.b16 %v1056, %v1054
        %v1093 = vpack.c.b16 %v1057, %v1055
        %v1094 = vpack.c.b16 %v1060, %v1058
        %v1095 = vpack.c.b16 %v1061, %v1059
        %v1096 = vpack.c.b16 %v1064, %v1062
        %v1097 = vpack.c.b16 %v1065, %v1063
        %1130 = vmatprep.subr.bf16.mxu0 %v1067
        %1131 = vmatpush1.bf16.msra.mxu0 %v1066
        %1132 = vmatprep.subr.bf16.mxu0 %v1069
        %1133 = vmatpush1.bf16.msra.mxu0 %v1068
        %1134 = vmatprep.subr.bf16.mxu0 %v1071
        %1135 = vmatpush1.bf16.msra.mxu0 %v1070
        %1136 = vmatprep.subr.bf16.mxu0 %v1073
        %1137 = vmatpush1.bf16.msra.mxu0 %v1072
        %1138 = vmatprep.subr.bf16.mxu0 %v1075
        %1139 = vmatpush1.bf16.msra.mxu0 %v1074
        %1140 = vmatprep.subr.bf16.mxu0 %v1077
        %1141 = vmatpush1.bf16.msra.mxu0 %v1076
        %1142 = vmatprep.subr.bf16.mxu0 %v1079
        %1143 = vmatpush1.bf16.msra.mxu0 %v1078
        %1144 = vmatprep.subr.bf16.mxu0 %v1081
        %1145 = vmatpush1.bf16.msra.mxu0 %v1080
        %1146 = vmatprep.subr.bf16.mxu0 %v1083
        %1147 = vmatpush1.bf16.msra.mxu0 %v1082
        %1148 = vmatprep.subr.bf16.mxu0 %v1085
        %1149 = vmatpush1.bf16.msra.mxu0 %v1084
        %1150 = vmatprep.subr.bf16.mxu0 %v1087
        %1151 = vmatpush1.bf16.msra.mxu0 %v1086
        %1152 = vmatprep.subr.bf16.mxu0 %v1089
        %1153 = vmatpush1.bf16.msra.mxu0 %v1088
        %1154 = vmatprep.subr.bf16.mxu0 %v1091
        %1155 = vmatpush1.bf16.msra.mxu0 %v1090
        %1156 = vmatprep.subr.bf16.mxu0 %v1093
        %1157 = vmatpush1.bf16.msra.mxu0 %v1092
        %1158 = vmatprep.subr.bf16.mxu0 %v1095
        %1159 = vmatpush1.bf16.msra.mxu0 %v1094
        %1160 = vmatprep.subr.bf16.mxu0 %v1097
        %1161 = vmatpush1.bf16.msra.mxu0 %v1096
        %1162 = vmatprep.mubr.bf16.mxu0 %v937
        %1163 = vmatmul.mubr.bf16.gmra.mrb[0].mxu0 %v936
        %v1164 = vpop.f32.mrb[0].mxu0
        %v1165 = vadd.f32 0.0, %v1164
        %v1166 = vpop.f32.mrb[0].mxu0
        %v1167 = vadd.f32 0.0, %v1166
        %v1168 = vpop.f32.mrb[0].mxu0
        %v1169 = vadd.f32 0.0, %v1168
        %v1170 = vpop.f32.mrb[0].mxu0
        %v1171 = vadd.f32 0.0, %v1170
        %1172 = vdwg.mxu0
        %v1173 = vld [vmem:[%s683] sm:$0xff]
        %v1174 = vld [vmem:[%s683 + $0x8] sm:$0xff]
        %v1175 = vld [vmem:[%s683 + $0x10] sm:$0xff]
        %v1176 = vld [vmem:[%s683 + $0x18] sm:$0xff]
        %v1177 = vld [vmem:[%s683 + $0x20] sm:$0xff]
        %v1178 = vld [vmem:[%s683 + $0x28] sm:$0xff]
        %v1179 = vld [vmem:[%s683 + $0x30] sm:$0xff]
        %v1180 = vld [vmem:[%s683 + $0x38] sm:$0xff]
        %v1181 = vld [vmem:[%s683 + $0x40] sm:$0xff]
        %v1182 = vld [vmem:[%s683 + $0x48] sm:$0xff]
        %v1183 = vld [vmem:[%s683 + $0x50] sm:$0xff]
        %v1184 = vld [vmem:[%s683 + $0x58] sm:$0xff]
        %v1185 = vld [vmem:[%s683 + $0x60] sm:$0xff]
        %v1186 = vld [vmem:[%s683 + $0x68] sm:$0xff]
        %v1187 = vld [vmem:[%s683 + $0x70] sm:$0xff]
        %v1188 = vld [vmem:[%s683 + $0x78] sm:$0xff]
        %v1189 = vld [vmem:[%s683 + $0x80] sm:$0xff]
        %v1190 = vld [vmem:[%s683 + $0x88] sm:$0xff]
        %v1191 = vld [vmem:[%s683 + $0x90] sm:$0xff]
        %v1192 = vld [vmem:[%s683 + $0x98] sm:$0xff]
        %v1193 = vld [vmem:[%s683 + $0xa0] sm:$0xff]
        %v1194 = vld [vmem:[%s683 + $0xa8] sm:$0xff]
        %v1195 = vld [vmem:[%s683 + $0xb0] sm:$0xff]
        %v1196 = vld [vmem:[%s683 + $0xb8] sm:$0xff]
        %v1197 = vld [vmem:[%s683 + $0xc0] sm:$0xff]
        %v1198 = vld [vmem:[%s683 + $0xc8] sm:$0xff]
        %v1199 = vld [vmem:[%s683 + $0xd0] sm:$0xff]
        %v1200 = vld [vmem:[%s683 + $0xd8] sm:$0xff]
        %v1201 = vld [vmem:[%s683 + $0xe0] sm:$0xff]
        %v1202 = vld [vmem:[%s683 + $0xe8] sm:$0xff]
        %v1203 = vld [vmem:[%s683 + $0xf0] sm:$0xff]
        %v1204 = vld [vmem:[%s683 + $0xf8] sm:$0xff]
        %v1237 = vunpack.c.l.b16 %v1173
        %v1238 = vunpack.c.h.b16 %v1173
        %v1239 = vunpack.c.l.b16 %v1174
        %v1240 = vunpack.c.h.b16 %v1174
        %v1241 = vunpack.c.l.b16 %v1175
        %v1242 = vunpack.c.h.b16 %v1175
        %v1243 = vunpack.c.l.b16 %v1176
        %v1244 = vunpack.c.h.b16 %v1176
        %v1245 = vunpack.c.l.b16 %v1177
        %v1246 = vunpack.c.h.b16 %v1177
        %v1247 = vunpack.c.l.b16 %v1178
        %v1248 = vunpack.c.h.b16 %v1178
        %v1249 = vunpack.c.l.b16 %v1179
        %v1250 = vunpack.c.h.b16 %v1179
        %v1251 = vunpack.c.l.b16 %v1180
        %v1252 = vunpack.c.h.b16 %v1180
        %v1253 = vunpack.c.l.b16 %v1181
        %v1254 = vunpack.c.h.b16 %v1181
        %v1255 = vunpack.c.l.b16 %v1182
        %v1256 = vunpack.c.h.b16 %v1182
        %v1257 = vunpack.c.l.b16 %v1183
        %v1258 = vunpack.c.h.b16 %v1183
        %v1259 = vunpack.c.l.b16 %v1184
        %v1260 = vunpack.c.h.b16 %v1184
        %v1261 = vunpack.c.l.b16 %v1185
        %v1262 = vunpack.c.h.b16 %v1185
        %v1263 = vunpack.c.l.b16 %v1186
        %v1264 = vunpack.c.h.b16 %v1186
        %v1265 = vunpack.c.l.b16 %v1187
        %v1266 = vunpack.c.h.b16 %v1187
        %v1267 = vunpack.c.l.b16 %v1188
        %v1268 = vunpack.c.h.b16 %v1188
        %v1269 = vunpack.c.l.b16 %v1189
        %v1270 = vunpack.c.h.b16 %v1189
        %v1271 = vunpack.c.l.b16 %v1190
        %v1272 = vunpack.c.h.b16 %v1190
        %v1273 = vunpack.c.l.b16 %v1191
        %v1274 = vunpack.c.h.b16 %v1191
        %v1275 = vunpack.c.l.b16 %v1192
        %v1276 = vunpack.c.h.b16 %v1192
        %v1277 = vunpack.c.l.b16 %v1193
        %v1278 = vunpack.c.h.b16 %v1193
        %v1279 = vunpack.c.l.b16 %v1194
        %v1280 = vunpack.c.h.b16 %v1194
        %v1281 = vunpack.c.l.b16 %v1195
        %v1282 = vunpack.c.h.b16 %v1195
        %v1283 = vunpack.c.l.b16 %v1196
        %v1284 = vunpack.c.h.b16 %v1196
        %v1285 = vunpack.c.l.b16 %v1197
        %v1286 = vunpack.c.h.b16 %v1197
        %v1287 = vunpack.c.l.b16 %v1198
        %v1288 = vunpack.c.h.b16 %v1198
        %v1289 = vunpack.c.l.b16 %v1199
        %v1290 = vunpack.c.h.b16 %v1199
        %v1291 = vunpack.c.l.b16 %v1200
        %v1292 = vunpack.c.h.b16 %v1200
        %v1293 = vunpack.c.l.b16 %v1201
        %v1294 = vunpack.c.h.b16 %v1201
        %v1295 = vunpack.c.l.b16 %v1202
        %v1296 = vunpack.c.h.b16 %v1202
        %v1297 = vunpack.c.l.b16 %v1203
        %v1298 = vunpack.c.h.b16 %v1203
        %v1299 = vunpack.c.l.b16 %v1204
        %v1300 = vunpack.c.h.b16 %v1204
        %v1301 = vpack.c.b16 %v1239, %v1237
        %v1302 = vpack.c.b16 %v1240, %v1238
        %v1303 = vpack.c.b16 %v1243, %v1241
        %v1304 = vpack.c.b16 %v1244, %v1242
        %v1305 = vpack.c.b16 %v1247, %v1245
        %v1306 = vpack.c.b16 %v1248, %v1246
        %v1307 = vpack.c.b16 %v1251, %v1249
        %v1308 = vpack.c.b16 %v1252, %v1250
        %v1309 = vpack.c.b16 %v1255, %v1253
        %v1310 = vpack.c.b16 %v1256, %v1254
        %v1311 = vpack.c.b16 %v1259, %v1257
        %v1312 = vpack.c.b16 %v1260, %v1258
        %v1313 = vpack.c.b16 %v1263, %v1261
        %v1314 = vpack.c.b16 %v1264, %v1262
        %v1315 = vpack.c.b16 %v1267, %v1265
        %v1316 = vpack.c.b16 %v1268, %v1266
        %v1317 = vpack.c.b16 %v1271, %v1269
        %v1318 = vpack.c.b16 %v1272, %v1270
        %v1319 = vpack.c.b16 %v1275, %v1273
        %v1320 = vpack.c.b16 %v1276, %v1274
        %v1321 = vpack.c.b16 %v1279, %v1277
        %v1322 = vpack.c.b16 %v1280, %v1278
        %v1323 = vpack.c.b16 %v1283, %v1281
        %v1324 = vpack.c.b16 %v1284, %v1282
        %v1325 = vpack.c.b16 %v1287, %v1285
        %v1326 = vpack.c.b16 %v1288, %v1286
        %v1327 = vpack.c.b16 %v1291, %v1289
        %v1328 = vpack.c.b16 %v1292, %v1290
        %v1329 = vpack.c.b16 %v1295, %v1293
        %v1330 = vpack.c.b16 %v1296, %v1294
        %v1331 = vpack.c.b16 %v1299, %v1297
        %v1332 = vpack.c.b16 %v1300, %v1298
        %1365 = vmatprep.subr.bf16.mxu0 %v1302
        %1366 = vmatpush1.bf16.msra.mxu0 %v1301
        %1367 = vmatprep.subr.bf16.mxu0 %v1304
        %1368 = vmatpush1.bf16.msra.mxu0 %v1303
        %1369 = vmatprep.subr.bf16.mxu0 %v1306
        %1370 = vmatpush1.bf16.msra.mxu0 %v1305
        %1371 = vmatprep.subr.bf16.mxu0 %v1308
        %1372 = vmatpush1.bf16.msra.mxu0 %v1307
        %1373 = vmatprep.subr.bf16.mxu0 %v1310
        %1374 = vmatpush1.bf16.msra.mxu0 %v1309
        %1375 = vmatprep.subr.bf16.mxu0 %v1312
        %1376 = vmatpush1.bf16.msra.mxu0 %v1311
        %1377 = vmatprep.subr.bf16.mxu0 %v1314
        %1378 = vmatpush1.bf16.msra.mxu0 %v1313
        %1379 = vmatprep.subr.bf16.mxu0 %v1316
        %1380 = vmatpush1.bf16.msra.mxu0 %v1315
        %1381 = vmatprep.subr.bf16.mxu0 %v1318
        %1382 = vmatpush1.bf16.msra.mxu0 %v1317
        %1383 = vmatprep.subr.bf16.mxu0 %v1320
        %1384 = vmatpush1.bf16.msra.mxu0 %v1319
        %1385 = vmatprep.subr.bf16.mxu0 %v1322
        %1386 = vmatpush1.bf16.msra.mxu0 %v1321
        %1387 = vmatprep.subr.bf16.mxu0 %v1324
        %1388 = vmatpush1.bf16.msra.mxu0 %v1323
        %1389 = vmatprep.subr.bf16.mxu0 %v1326
        %1390 = vmatpush1.bf16.msra.mxu0 %v1325
        %1391 = vmatprep.subr.bf16.mxu0 %v1328
        %1392 = vmatpush1.bf16.msra.mxu0 %v1327
        %1393 = vmatprep.subr.bf16.mxu0 %v1330
        %1394 = vmatpush1.bf16.msra.mxu0 %v1329
        %1395 = vmatprep.subr.bf16.mxu0 %v1332
        %1396 = vmatpush1.bf16.msra.mxu0 %v1331
        %1397 = vmatprep.mubr.bf16.mxu0 %v937
        %1398 = vmatmul.mubr.bf16.gmra.mrb[0].mxu0 %v936
        %v1399 = vpop.f32.mrb[0].mxu0
        %v1400 = vadd.f32 0.0, %v1399
        %v1401 = vpop.f32.mrb[0].mxu0
        %v1402 = vadd.f32 0.0, %v1401
        %v1403 = vpop.f32.mrb[0].mxu0
        %v1404 = vadd.f32 0.0, %v1403
        %v1405 = vpop.f32.mrb[0].mxu0
        %v1406 = vadd.f32 0.0, %v1405
        %1407 = vdwg.mxu0
        %v1408 = vld [vmem:[%s692] sm:$0xff]
        %v1409 = vld [vmem:[%s692 + $0x8] sm:$0xff]
        %v1410 = vld [vmem:[%s692 + $0x10] sm:$0xff]
        %v1411 = vld [vmem:[%s692 + $0x18] sm:$0xff]
        %v1412 = vld [vmem:[%s692 + $0x20] sm:$0xff]
        %v1413 = vld [vmem:[%s692 + $0x28] sm:$0xff]
        %v1414 = vld [vmem:[%s692 + $0x30] sm:$0xff]
        %v1415 = vld [vmem:[%s692 + $0x38] sm:$0xff]
        %v1416 = vld [vmem:[%s692 + $0x40] sm:$0xff]
        %v1417 = vld [vmem:[%s692 + $0x48] sm:$0xff]
        %v1418 = vld [vmem:[%s692 + $0x50] sm:$0xff]
        %v1419 = vld [vmem:[%s692 + $0x58] sm:$0xff]
        %v1420 = vld [vmem:[%s692 + $0x60] sm:$0xff]
        %v1421 = vld [vmem:[%s692 + $0x68] sm:$0xff]
        %v1422 = vld [vmem:[%s692 + $0x70] sm:$0xff]
        %v1423 = vld [vmem:[%s692 + $0x78] sm:$0xff]
        %v1424 = vld [vmem:[%s692 + $0x80] sm:$0xff]
        %v1425 = vld [vmem:[%s692 + $0x88] sm:$0xff]
        %v1426 = vld [vmem:[%s692 + $0x90] sm:$0xff]
        %v1427 = vld [vmem:[%s692 + $0x98] sm:$0xff]
        %v1428 = vld [vmem:[%s692 + $0xa0] sm:$0xff]
        %v1429 = vld [vmem:[%s692 + $0xa8] sm:$0xff]
        %v1430 = vld [vmem:[%s692 + $0xb0] sm:$0xff]
        %v1431 = vld [vmem:[%s692 + $0xb8] sm:$0xff]
        %v1432 = vld [vmem:[%s692 + $0xc0] sm:$0xff]
        %v1433 = vld [vmem:[%s692 + $0xc8] sm:$0xff]
        %v1434 = vld [vmem:[%s692 + $0xd0] sm:$0xff]
        %v1435 = vld [vmem:[%s692 + $0xd8] sm:$0xff]
        %v1436 = vld [vmem:[%s692 + $0xe0] sm:$0xff]
        %v1437 = vld [vmem:[%s692 + $0xe8] sm:$0xff]
        %v1438 = vld [vmem:[%s692 + $0xf0] sm:$0xff]
        %v1439 = vld [vmem:[%s692 + $0xf8] sm:$0xff]
        %v1472 = vunpack.c.l.b16 %v1408
        %v1473 = vunpack.c.h.b16 %v1408
        %v1474 = vunpack.c.l.b16 %v1409
        %v1475 = vunpack.c.h.b16 %v1409
        %v1476 = vunpack.c.l.b16 %v1410
        %v1477 = vunpack.c.h.b16 %v1410
        %v1478 = vunpack.c.l.b16 %v1411
        %v1479 = vunpack.c.h.b16 %v1411
        %v1480 = vunpack.c.l.b16 %v1412
        %v1481 = vunpack.c.h.b16 %v1412
        %v1482 = vunpack.c.l.b16 %v1413
        %v1483 = vunpack.c.h.b16 %v1413
        %v1484 = vunpack.c.l.b16 %v1414
        %v1485 = vunpack.c.h.b16 %v1414
        %v1486 = vunpack.c.l.b16 %v1415
        %v1487 = vunpack.c.h.b16 %v1415
        %v1488 = vunpack.c.l.b16 %v1416
        %v1489 = vunpack.c.h.b16 %v1416
        %v1490 = vunpack.c.l.b16 %v1417
        %v1491 = vunpack.c.h.b16 %v1417
        %v1492 = vunpack.c.l.b16 %v1418
        %v1493 = vunpack.c.h.b16 %v1418
        %v1494 = vunpack.c.l.b16 %v1419
        %v1495 = vunpack.c.h.b16 %v1419
        %v1496 = vunpack.c.l.b16 %v1420
        %v1497 = vunpack.c.h.b16 %v1420
        %v1498 = vunpack.c.l.b16 %v1421
        %v1499 = vunpack.c.h.b16 %v1421
        %v1500 = vunpack.c.l.b16 %v1422
        %v1501 = vunpack.c.h.b16 %v1422
        %v1502 = vunpack.c.l.b16 %v1423
        %v1503 = vunpack.c.h.b16 %v1423
        %v1504 = vunpack.c.l.b16 %v1424
        %v1505 = vunpack.c.h.b16 %v1424
        %v1506 = vunpack.c.l.b16 %v1425
        %v1507 = vunpack.c.h.b16 %v1425
        %v1508 = vunpack.c.l.b16 %v1426
        %v1509 = vunpack.c.h.b16 %v1426
        %v1510 = vunpack.c.l.b16 %v1427
        %v1511 = vunpack.c.h.b16 %v1427
        %v1512 = vunpack.c.l.b16 %v1428
        %v1513 = vunpack.c.h.b16 %v1428
        %v1514 = vunpack.c.l.b16 %v1429
        %v1515 = vunpack.c.h.b16 %v1429
        %v1516 = vunpack.c.l.b16 %v1430
        %v1517 = vunpack.c.h.b16 %v1430
        %v1518 = vunpack.c.l.b16 %v1431
        %v1519 = vunpack.c.h.b16 %v1431
        %v1520 = vunpack.c.l.b16 %v1432
        %v1521 = vunpack.c.h.b16 %v1432
        %v1522 = vunpack.c.l.b16 %v1433
        %v1523 = vunpack.c.h.b16 %v1433
        %v1524 = vunpack.c.l.b16 %v1434
        %v1525 = vunpack.c.h.b16 %v1434
        %v1526 = vunpack.c.l.b16 %v1435
        %v1527 = vunpack.c.h.b16 %v1435
        %v1528 = vunpack.c.l.b16 %v1436
        %v1529 = vunpack.c.h.b16 %v1436
        %v1530 = vunpack.c.l.b16 %v1437
        %v1531 = vunpack.c.h.b16 %v1437
        %v1532 = vunpack.c.l.b16 %v1438
        %v1533 = vunpack.c.h.b16 %v1438
        %v1534 = vunpack.c.l.b16 %v1439
        %v1535 = vunpack.c.h.b16 %v1439
        %v1536 = vpack.c.b16 %v1474, %v1472
        %v1537 = vpack.c.b16 %v1475, %v1473
        %v1538 = vpack.c.b16 %v1478, %v1476
        %v1539 = vpack.c.b16 %v1479, %v1477
        %v1540 = vpack.c.b16 %v1482, %v1480
        %v1541 = vpack.c.b16 %v1483, %v1481
        %v1542 = vpack.c.b16 %v1486, %v1484
        %v1543 = vpack.c.b16 %v1487, %v1485
        %v1544 = vpack.c.b16 %v1490, %v1488
        %v1545 = vpack.c.b16 %v1491, %v1489
        %v1546 = vpack.c.b16 %v1494, %v1492
        %v1547 = vpack.c.b16 %v1495, %v1493
        %v1548 = vpack.c.b16 %v1498, %v1496
        %v1549 = vpack.c.b16 %v1499, %v1497
        %v1550 = vpack.c.b16 %v1502, %v1500
        %v1551 = vpack.c.b16 %v1503, %v1501
        %v1552 = vpack.c.b16 %v1506, %v1504
        %v1553 = vpack.c.b16 %v1507, %v1505
        %v1554 = vpack.c.b16 %v1510, %v1508
        %v1555 = vpack.c.b16 %v1511, %v1509
        %v1556 = vpack.c.b16 %v1514, %v1512
        %v1557 = vpack.c.b16 %v1515, %v1513
        %v1558 = vpack.c.b16 %v1518, %v1516
        %v1559 = vpack.c.b16 %v1519, %v1517
        %v1560 = vpack.c.b16 %v1522, %v1520
        %v1561 = vpack.c.b16 %v1523, %v1521
        %v1562 = vpack.c.b16 %v1526, %v1524
        %v1563 = vpack.c.b16 %v1527, %v1525
        %v1564 = vpack.c.b16 %v1530, %v1528
        %v1565 = vpack.c.b16 %v1531, %v1529
        %v1566 = vpack.c.b16 %v1534, %v1532
        %v1567 = vpack.c.b16 %v1535, %v1533
        %1600 = vmatprep.subr.bf16.mxu0 %v1537
        %1601 = vmatpush1.bf16.msra.mxu0 %v1536
        %1602 = vmatprep.subr.bf16.mxu0 %v1539
        %1603 = vmatpush1.bf16.msra.mxu0 %v1538
        %1604 = vmatprep.subr.bf16.mxu0 %v1541
        %1605 = vmatpush1.bf16.msra.mxu0 %v1540
        %1606 = vmatprep.subr.bf16.mxu0 %v1543
        %1607 = vmatpush1.bf16.msra.mxu0 %v1542
        %1608 = vmatprep.subr.bf16.mxu0 %v1545
        %1609 = vmatpush1.bf16.msra.mxu0 %v1544
        %1610 = vmatprep.subr.bf16.mxu0 %v1547
        %1611 = vmatpush1.bf16.msra.mxu0 %v1546
        %1612 = vmatprep.subr.bf16.mxu0 %v1549
        %1613 = vmatpush1.bf16.msra.mxu0 %v1548
        %1614 = vmatprep.subr.bf16.mxu0 %v1551
        %1615 = vmatpush1.bf16.msra.mxu0 %v1550
        %1616 = vmatprep.subr.bf16.mxu0 %v1553
        %1617 = vmatpush1.bf16.msra.mxu0 %v1552
        %1618 = vmatprep.subr.bf16.mxu0 %v1555
        %1619 = vmatpush1.bf16.msra.mxu0 %v1554
        %1620 = vmatprep.subr.bf16.mxu0 %v1557
        %1621 = vmatpush1.bf16.msra.mxu0 %v1556
        %1622 = vmatprep.subr.bf16.mxu0 %v1559
        %1623 = vmatpush1.bf16.msra.mxu0 %v1558
        %1624 = vmatprep.subr.bf16.mxu0 %v1561
        %1625 = vmatpush1.bf16.msra.mxu0 %v1560
        %1626 = vmatprep.subr.bf16.mxu0 %v1563
        %1627 = vmatpush1.bf16.msra.mxu0 %v1562
        %1628 = vmatprep.subr.bf16.mxu0 %v1565
        %1629 = vmatpush1.bf16.msra.mxu0 %v1564
        %1630 = vmatprep.subr.bf16.mxu0 %v1567
        %1631 = vmatpush1.bf16.msra.mxu0 %v1566
        %1632 = vmatprep.mubr.bf16.mxu0 %v937
        %1633 = vmatmul.mubr.bf16.gmra.mrb[0].mxu0 %v936
        %v1634 = vpop.f32.mrb[0].mxu0
        %v1635 = vadd.f32 0.0, %v1634
        %v1636 = vpop.f32.mrb[0].mxu0
        %v1637 = vadd.f32 0.0, %v1636
        %v1638 = vpop.f32.mrb[0].mxu0
        %v1639 = vadd.f32 0.0, %v1638
        %v1640 = vpop.f32.mrb[0].mxu0
        %v1641 = vadd.f32 0.0, %v1640
        %1642 = vdwg.mxu0
        %v1643 = vld [vmem:[%s1] sm:$0xff]
        %v1644 = vld [vmem:[%s1 + $0x8] sm:$0xff]
        %v1645 = vld [vmem:[%s2] sm:$0xff]
        %v1646 = vld [vmem:[%s2 + $0x8] sm:$0xff]
        %v1647 = vlaneseq
        %v1648 = vshrl.u32 %v1647, 7
        %v1649 = vadd.s32 %v1648, 8
        %v1650 = vlaneseq
        %v1651 = vand.u32 %v1650, 127
        %vm1652 = vcmp.le.s32.totalorder %v1651, %v1648
        %vm1653 = vcmp.le.s32.totalorder %v1651, %v1649
        %v1654 = vmul.f32 %v1165, %v1643
        %v1655 = vmul.f32 %v1169, %v1644
        %1656 = vrot.lane.b32.xlu0 %v1165, 64
        %v1657 = vpop.permute.xlu0 %1656
        %1658 = vrot.lane.b32.xlu0 %v1169, 64
        %v1659 = vpop.permute.xlu0 %1658
        %v1660 = vmul.f32 %v1657, %v1645
        %v1661 = vmul.f32 %v1659, %v1646
        %v1662 = vadd.f32 %v1654, %v1660
        %v1663 = vadd.f32 %v1655, %v1661
        %v1664 = vpack.c.bf16 %v1663, %v1662
        %v1665 = vmul.f32 %v1400, %v1643
        %v1666 = vmul.f32 %v1404, %v1644
        %1667 = vrot.lane.b32.xlu0 %v1400, 64
        %v1668 = vpop.permute.xlu0 %1667
        %1669 = vrot.lane.b32.xlu0 %v1404, 64
        %v1670 = vpop.permute.xlu0 %1669
        %v1671 = vmul.f32 %v1668, %v1645
        %v1672 = vmul.f32 %v1670, %v1646
        %v1673 = vadd.f32 %v1665, %v1671
        %v1674 = vadd.f32 %v1666, %v1672
        %v1675 = vpack.c.bf16 %v1674, %v1673
        %v1676 = vpack.c.bf16 %v1639, %v1635
        %1677 = vmatprep.subr.bf16.mxu0 0
        %1678 = vmatpush1.bf16.xpose.msra.mxu0 %v1675
        %1679 = vmatprep.subr.bf16.mxu0 0
        %1680 = vmatpush1.bf16.xpose.msra.mxu0 0
        %1681 = vmatprep.subr.bf16.mxu0 0
        %1682 = vmatpush1.bf16.xpose.msra.mxu0 0
        %1683 = vmatprep.subr.bf16.mxu0 0
        %1684 = vmatpush1.bf16.xpose.msra.mxu0 0
        %1685 = vmatprep.subr.bf16.mxu0 0
        %1686 = vmatpush1.bf16.xpose.msra.mxu0 0
        %1687 = vmatprep.subr.bf16.mxu0 0
        %1688 = vmatpush1.bf16.xpose.msra.mxu0 0
        %1689 = vmatprep.subr.bf16.mxu0 0
        %1690 = vmatpush1.bf16.xpose.msra.mxu0 0
        %1691 = vmatprep.subr.bf16.mxu0 0
        %1692 = vmatpush1.bf16.xpose.msra.mxu0 0
        %1693 = vmatprep.subr.bf16.mxu0 0
        %1694 = vmatpush1.bf16.xpose.msra.mxu0 0
        %1695 = vmatprep.subr.bf16.mxu0 0
        %1696 = vmatpush1.bf16.xpose.msra.mxu0 0
        %1697 = vmatprep.subr.bf16.mxu0 0
        %1698 = vmatpush1.bf16.xpose.msra.mxu0 0
        %1699 = vmatprep.subr.bf16.mxu0 0
        %1700 = vmatpush1.bf16.xpose.msra.mxu0 0
        %1701 = vmatprep.subr.bf16.mxu0 0
        %1702 = vmatpush1.bf16.xpose.msra.mxu0 0
        %1703 = vmatprep.subr.bf16.mxu0 0
        %1704 = vmatpush1.bf16.xpose.msra.mxu0 0
        %1705 = vmatprep.subr.bf16.mxu0 0
        %1706 = vmatpush1.bf16.xpose.msra.mxu0 0
        %1707 = vmatprep.subr.bf16.mxu0 0
        %1708 = vmatpush1.bf16.xpose.msra.mxu0 0
        %1709 = vmatprep.mubr.bf16.mxu0 0
        %1710 = vmatmul.mubr.bf16.gmra.mrb[0].mxu0 %v1664
        %v1711 = vpop.f32.mrb[0].mxu0
        %v1712 = vadd.f32 0.0, %v1711
        %v1713 = vpop.f32.mrb[0].mxu0
        %v1714 = vpop.f32.mrb[0].mxu0
        %v1715 = vadd.f32 0.0, %v1714
        %v1716 = vpop.f32.mrb[0].mxu0
        %1717 = vdwg.mxu0
        %v1718 = vsel %vm1652, %v1712, -1e+30
        %v1719 = vsel %vm1653, %v1715, -1e+30
        %vm1720 = vcmask 130048
        %v1721 = vsel %vm1720, %v1718, -inf
        %1722 = vmax.xlane.f32.xlu0 %v1721
        %v1723 = vpop.xlane.xlu0 %1722
        %v1724 = vsel %vm1720, %v1719, -inf
        %1725 = vmax.xlane.f32.xlu0 %v1724
        %v1726 = vpop.xlane.xlu0 %1725
        %v1727 = vsub.f32 %v1718, %v1723
        %v1728 = vsub.f32 %v1719, %v1726
        %v1729 = vmul.f32 %v1727, 1.442695
        %v1730 = vpow.pop %v1729
        %v1731 = vmul.f32 %v1728, 1.442695
        %v1732 = vpow.pop %v1731
        %v1733 = vsel %vm1720, %v1730, 0.0
        %1734 = vadd.xlane.f32.xlu0 %v1733
        %v1735 = vpop.xlane.xlu0 %1734
        %v1736 = vsel %vm1720, %v1732, 0.0
        %1737 = vadd.xlane.f32.xlu0 %v1736
        %v1738 = vpop.xlane.xlu0 %1737
        %v1739 = vrcp.pop %v1735
        %v1740 = vmul.f32 %v1730, %v1739
        %v1741 = vrcp.pop %v1738
        %v1742 = vmul.f32 %v1732, %v1741
        %v1743 = vpack.c.bf16 %v1742, %v1740
        %v1745 = vsel %vm1720, %v1743, 0
        %1747 = vmatprep.subr.bf16.mxu0 0
        %1748 = vmatpush1.bf16.msra.mxu0 %v1676
        %1749 = vmatprep.subr.bf16.mxu0 0
        %1750 = vmatpush1.bf16.msra.mxu0 0
        %1751 = vmatprep.subr.bf16.mxu0 0
        %1752 = vmatpush1.bf16.msra.mxu0 0
        %1753 = vmatprep.subr.bf16.mxu0 0
        %1754 = vmatpush1.bf16.msra.mxu0 0
        %1755 = vmatprep.subr.bf16.mxu0 0
        %1756 = vmatpush1.bf16.msra.mxu0 0
        %1757 = vmatprep.subr.bf16.mxu0 0
        %1758 = vmatpush1.bf16.msra.mxu0 0
        %1759 = vmatprep.subr.bf16.mxu0 0
        %1760 = vmatpush1.bf16.msra.mxu0 0
        %1761 = vmatprep.subr.bf16.mxu0 0
        %1762 = vmatpush1.bf16.msra.mxu0 0
        %1763 = vmatprep.subr.bf16.mxu0 0
        %1764 = vmatpush1.bf16.msra.mxu0 0
        %1765 = vmatprep.subr.bf16.mxu0 0
        %1766 = vmatpush1.bf16.msra.mxu0 0
        %1767 = vmatprep.subr.bf16.mxu0 0
        %1768 = vmatpush1.bf16.msra.mxu0 0
        %1769 = vmatprep.subr.bf16.mxu0 0
        %1770 = vmatpush1.bf16.msra.mxu0 0
        %1771 = vmatprep.subr.bf16.mxu0 0
        %1772 = vmatpush1.bf16.msra.mxu0 0
        %1773 = vmatprep.subr.bf16.mxu0 0
        %1774 = vmatpush1.bf16.msra.mxu0 0
        %1775 = vmatprep.subr.bf16.mxu0 0
        %1776 = vmatpush1.bf16.msra.mxu0 0
        %1777 = vmatprep.subr.bf16.mxu0 0
        %1778 = vmatpush1.bf16.msra.mxu0 0
        %1779 = vmatprep.mubr.bf16.mxu0 0
        %1780 = vmatmul.mubr.bf16.gmra.mrb[0].mxu0 %v1745
        %v1781 = vpop.f32.mrb[0].mxu0
        %v1782 = vadd.f32 0.0, %v1781
        %v1783 = vpop.f32.mrb[0].mxu0
        %v1784 = vpop.f32.mrb[0].mxu0
        %v1785 = vadd.f32 0.0, %v1784
        %v1786 = vpop.f32.mrb[0].mxu0
        %1787 = vdwg.mxu0
        %v1788 = vpack.c.bf16 %v1785, %v1782
        %v1789 = vld [vmem:[%s701] sm:$0xff]
        %v1790 = vld [vmem:[%s701 + $0x8] sm:$0xff]
        %v1791 = vld [vmem:[%s701 + $0x10] sm:$0xff]
        %v1792 = vld [vmem:[%s701 + $0x18] sm:$0xff]
        %v1793 = vld [vmem:[%s701 + $0x20] sm:$0xff]
        %v1794 = vld [vmem:[%s701 + $0x28] sm:$0xff]
        %v1795 = vld [vmem:[%s701 + $0x30] sm:$0xff]
        %v1796 = vld [vmem:[%s701 + $0x38] sm:$0xff]
        %v1797 = vld [vmem:[%s701 + $0x40] sm:$0xff]
        %v1798 = vld [vmem:[%s701 + $0x48] sm:$0xff]
        %v1799 = vld [vmem:[%s701 + $0x50] sm:$0xff]
        %v1800 = vld [vmem:[%s701 + $0x58] sm:$0xff]
        %v1801 = vld [vmem:[%s701 + $0x60] sm:$0xff]
        %v1802 = vld [vmem:[%s701 + $0x68] sm:$0xff]
        %v1803 = vld [vmem:[%s701 + $0x70] sm:$0xff]
        %v1804 = vld [vmem:[%s701 + $0x78] sm:$0xff]
        %v1805 = vmul.f32 %v1167, %v1643
        %v1806 = vmul.f32 %v1171, %v1644
        %1807 = vrot.lane.b32.xlu0 %v1167, 64
        %v1808 = vpop.permute.xlu0 %1807
        %1809 = vrot.lane.b32.xlu0 %v1171, 64
        %v1810 = vpop.permute.xlu0 %1809
        %v1811 = vmul.f32 %v1808, %v1645
        %v1812 = vmul.f32 %v1810, %v1646
        %v1813 = vadd.f32 %v1805, %v1811
        %v1814 = vadd.f32 %v1806, %v1812
        %v1815 = vpack.c.bf16 %v1814, %v1813
        %v1816 = vmul.f32 %v1402, %v1643
        %v1817 = vmul.f32 %v1406, %v1644
        %1818 = vrot.lane.b32.xlu0 %v1402, 64
        %v1819 = vpop.permute.xlu0 %1818
        %1820 = vrot.lane.b32.xlu0 %v1406, 64
        %v1821 = vpop.permute.xlu0 %1820
        %v1822 = vmul.f32 %v1819, %v1645
        %v1823 = vmul.f32 %v1821, %v1646
        %v1824 = vadd.f32 %v1816, %v1822
        %v1825 = vadd.f32 %v1817, %v1823
        %v1826 = vpack.c.bf16 %v1825, %v1824
        %v1827 = vpack.c.bf16 %v1641, %v1637
        %1828 = vmatprep.subr.bf16.mxu0 0
        %1829 = vmatpush1.bf16.xpose.msra.mxu0 %v1826
        %1830 = vmatprep.subr.bf16.mxu0 0
        %1831 = vmatpush1.bf16.xpose.msra.mxu0 0
        %1832 = vmatprep.subr.bf16.mxu0 0
        %1833 = vmatpush1.bf16.xpose.msra.mxu0 0
        %1834 = vmatprep.subr.bf16.mxu0 0
        %1835 = vmatpush1.bf16.xpose.msra.mxu0 0
        %1836 = vmatprep.subr.bf16.mxu0 0
        %1837 = vmatpush1.bf16.xpose.msra.mxu0 0
        %1838 = vmatprep.subr.bf16.mxu0 0
        %1839 = vmatpush1.bf16.xpose.msra.mxu0 0
        %1840 = vmatprep.subr.bf16.mxu0 0
        %1841 = vmatpush1.bf16.xpose.msra.mxu0 0
        %1842 = vmatprep.subr.bf16.mxu0 0
        %1843 = vmatpush1.bf16.xpose.msra.mxu0 0
        %1844 = vmatprep.subr.bf16.mxu0 0
        %1845 = vmatpush1.bf16.xpose.msra.mxu0 0
        %1846 = vmatprep.subr.bf16.mxu0 0
        %1847 = vmatpush1.bf16.xpose.msra.mxu0 0
        %1848 = vmatprep.subr.bf16.mxu0 0
        %1849 = vmatpush1.bf16.xpose.msra.mxu0 0
        %1850 = vmatprep.subr.bf16.mxu0 0
        %1851 = vmatpush1.bf16.xpose.msra.mxu0 0
        %1852 = vmatprep.subr.bf16.mxu0 0
        %1853 = vmatpush1.bf16.xpose.msra.mxu0 0
        %1854 = vmatprep.subr.bf16.mxu0 0
        %1855 = vmatpush1.bf16.xpose.msra.mxu0 0
        %1856 = vmatprep.subr.bf16.mxu0 0
        %1857 = vmatpush1.bf16.xpose.msra.mxu0 0
        %1858 = vmatprep.subr.bf16.mxu0 0
        %1859 = vmatpush1.bf16.xpose.msra.mxu0 0
        %1860 = vmatprep.mubr.bf16.mxu0 0
        %1861 = vmatmul.mubr.bf16.gmra.mrb[0].mxu0 %v1815
        %v1862 = vpop.f32.mrb[0].mxu0
        %v1863 = vadd.f32 0.0, %v1862
        %v1864 = vpop.f32.mrb[0].mxu0
        %v1865 = vpop.f32.mrb[0].mxu0
        %v1866 = vadd.f32 0.0, %v1865
        %v1867 = vpop.f32.mrb[0].mxu0
        %1868 = vdwg.mxu0
        %v1869 = vsel %vm1652, %v1863, -1e+30
        %v1870 = vsel %vm1653, %v1866, -1e+30
        %v1871 = vsel %vm1720, %v1869, -inf
        %1872 = vmax.xlane.f32.xlu0 %v1871
        %v1873 = vpop.xlane.xlu0 %1872
        %v1874 = vsel %vm1720, %v1870, -inf
        %1875 = vmax.xlane.f32.xlu0 %v1874
        %v1876 = vpop.xlane.xlu0 %1875
        %v1877 = vsub.f32 %v1869, %v1873
        %v1878 = vsub.f32 %v1870, %v1876
        %v1879 = vmul.f32 %v1877, 1.442695
        %v1880 = vpow.pop %v1879
        %v1881 = vmul.f32 %v1878, 1.442695
        %v1882 = vpow.pop %v1881
        %v1883 = vsel %vm1720, %v1880, 0.0
        %1884 = vadd.xlane.f32.xlu0 %v1883
        %v1885 = vpop.xlane.xlu0 %1884
        %v1886 = vsel %vm1720, %v1882, 0.0
        %1887 = vadd.xlane.f32.xlu0 %v1886
        %v1888 = vpop.xlane.xlu0 %1887
        %v1889 = vrcp.pop %v1885
        %v1890 = vmul.f32 %v1880, %v1889
        %v1891 = vrcp.pop %v1888
        %v1892 = vmul.f32 %v1882, %v1891
        %v1893 = vpack.c.bf16 %v1892, %v1890
        %v1895 = vsel %vm1720, %v1893, 0
        %1897 = vmatprep.subr.bf16.mxu0 0
        %1898 = vmatpush1.bf16.msra.mxu0 %v1827
        %1899 = vmatprep.subr.bf16.mxu0 0
        %1900 = vmatpush1.bf16.msra.mxu0 0
        %1901 = vmatprep.subr.bf16.mxu0 0
        %1902 = vmatpush1.bf16.msra.mxu0 0
        %1903 = vmatprep.subr.bf16.mxu0 0
        %1904 = vmatpush1.bf16.msra.mxu0 0
        %1905 = vmatprep.subr.bf16.mxu0 0
        %1906 = vmatpush1.bf16.msra.mxu0 0
        %1907 = vmatprep.subr.bf16.mxu0 0
        %1908 = vmatpush1.bf16.msra.mxu0 0
        %1909 = vmatprep.subr.bf16.mxu0 0
        %1910 = vmatpush1.bf16.msra.mxu0 0
        %1911 = vmatprep.subr.bf16.mxu0 0
        %1912 = vmatpush1.bf16.msra.mxu0 0
        %1913 = vmatprep.subr.bf16.mxu0 0
        %1914 = vmatpush1.bf16.msra.mxu0 0
        %1915 = vmatprep.subr.bf16.mxu0 0
        %1916 = vmatpush1.bf16.msra.mxu0 0
        %1917 = vmatprep.subr.bf16.mxu0 0
        %1918 = vmatpush1.bf16.msra.mxu0 0
        %1919 = vmatprep.subr.bf16.mxu0 0
        %1920 = vmatpush1.bf16.msra.mxu0 0
        %1921 = vmatprep.subr.bf16.mxu0 0
        %1922 = vmatpush1.bf16.msra.mxu0 0
        %1923 = vmatprep.subr.bf16.mxu0 0
        %1924 = vmatpush1.bf16.msra.mxu0 0
        %1925 = vmatprep.subr.bf16.mxu0 0
        %1926 = vmatpush1.bf16.msra.mxu0 0
        %1927 = vmatprep.subr.bf16.mxu0 0
        %1928 = vmatpush1.bf16.msra.mxu0 0
        %1929 = vmatprep.mubr.bf16.mxu0 0
        %1930 = vmatmul.mubr.bf16.gmra.mrb[0].mxu0 %v1895
        %v1931 = vpop.f32.mrb[0].mxu0
        %v1932 = vadd.f32 0.0, %v1931
        %v1933 = vpop.f32.mrb[0].mxu0
        %v1934 = vpop.f32.mrb[0].mxu0
        %v1935 = vadd.f32 0.0, %v1934
        %v1936 = vpop.f32.mrb[0].mxu0
        %1937 = vdwg.mxu0
        %v1938 = vpack.c.bf16 %v1935, %v1932
        %v1939 = vld [vmem:[%s701 + $0x80] sm:$0xff]
        %v1940 = vld [vmem:[%s701 + $0x88] sm:$0xff]
        %v1941 = vld [vmem:[%s701 + $0x90] sm:$0xff]
        %v1942 = vld [vmem:[%s701 + $0x98] sm:$0xff]
        %v1943 = vld [vmem:[%s701 + $0xa0] sm:$0xff]
        %v1944 = vld [vmem:[%s701 + $0xa8] sm:$0xff]
        %v1945 = vld [vmem:[%s701 + $0xb0] sm:$0xff]
        %v1946 = vld [vmem:[%s701 + $0xb8] sm:$0xff]
        %v1947 = vld [vmem:[%s701 + $0xc0] sm:$0xff]
        %v1948 = vld [vmem:[%s701 + $0xc8] sm:$0xff]
        %v1949 = vld [vmem:[%s701 + $0xd0] sm:$0xff]
        %v1950 = vld [vmem:[%s701 + $0xd8] sm:$0xff]
        %v1951 = vld [vmem:[%s701 + $0xe0] sm:$0xff]
        %v1952 = vld [vmem:[%s701 + $0xe8] sm:$0xff]
        %v1953 = vld [vmem:[%s701 + $0xf0] sm:$0xff]
        %v1954 = vld [vmem:[%s701 + $0xf8] sm:$0xff]
        %v1971 = vunpack.c.l.b16 %v1939
        %v1972 = vunpack.c.h.b16 %v1939
        %v1973 = vunpack.c.l.b16 %v1940
        %v1974 = vunpack.c.h.b16 %v1940
        %v1975 = vunpack.c.l.b16 %v1941
        %v1976 = vunpack.c.h.b16 %v1941
        %v1977 = vunpack.c.l.b16 %v1942
        %v1978 = vunpack.c.h.b16 %v1942
        %v1979 = vunpack.c.l.b16 %v1943
        %v1980 = vunpack.c.h.b16 %v1943
        %v1981 = vunpack.c.l.b16 %v1944
        %v1982 = vunpack.c.h.b16 %v1944
        %v1983 = vunpack.c.l.b16 %v1945
        %v1984 = vunpack.c.h.b16 %v1945
        %v1985 = vunpack.c.l.b16 %v1946
        %v1986 = vunpack.c.h.b16 %v1946
        %v1987 = vunpack.c.l.b16 %v1947
        %v1988 = vunpack.c.h.b16 %v1947
        %v1989 = vunpack.c.l.b16 %v1948
        %v1990 = vunpack.c.h.b16 %v1948
        %v1991 = vunpack.c.l.b16 %v1949
        %v1992 = vunpack.c.h.b16 %v1949
        %v1993 = vunpack.c.l.b16 %v1950
        %v1994 = vunpack.c.h.b16 %v1950
        %v1995 = vunpack.c.l.b16 %v1951
        %v1996 = vunpack.c.h.b16 %v1951
        %v1997 = vunpack.c.l.b16 %v1952
        %v1998 = vunpack.c.h.b16 %v1952
        %v1999 = vunpack.c.l.b16 %v1953
        %v2000 = vunpack.c.h.b16 %v1953
        %v2001 = vunpack.c.l.b16 %v1954
        %v2002 = vunpack.c.h.b16 %v1954
        %v2003 = vpack.c.b16 %v1973, %v1971
        %v2004 = vpack.c.b16 %v1974, %v1972
        %v2005 = vpack.c.b16 %v1977, %v1975
        %v2006 = vpack.c.b16 %v1978, %v1976
        %v2007 = vpack.c.b16 %v1981, %v1979
        %v2008 = vpack.c.b16 %v1982, %v1980
        %v2009 = vpack.c.b16 %v1985, %v1983
        %v2010 = vpack.c.b16 %v1986, %v1984
        %v2011 = vpack.c.b16 %v1989, %v1987
        %v2012 = vpack.c.b16 %v1990, %v1988
        %v2013 = vpack.c.b16 %v1993, %v1991
        %v2014 = vpack.c.b16 %v1994, %v1992
        %v2015 = vpack.c.b16 %v1997, %v1995
        %v2016 = vpack.c.b16 %v1998, %v1996
        %v2017 = vpack.c.b16 %v2001, %v1999
        %v2018 = vpack.c.b16 %v2002, %v2000
        %2035 = vmatprep.subr.bf16.mxu0 %v2004
        %2036 = vmatpush1.bf16.msra.mxu0 %v2003
        %2037 = vmatprep.subr.bf16.mxu0 %v2006
        %2038 = vmatpush1.bf16.msra.mxu0 %v2005
        %2039 = vmatprep.subr.bf16.mxu0 %v2008
        %2040 = vmatpush1.bf16.msra.mxu0 %v2007
        %2041 = vmatprep.subr.bf16.mxu0 %v2010
        %2042 = vmatpush1.bf16.msra.mxu0 %v2009
        %2043 = vmatprep.subr.bf16.mxu0 %v2012
        %2044 = vmatpush1.bf16.msra.mxu0 %v2011
        %2045 = vmatprep.subr.bf16.mxu0 %v2014
        %2046 = vmatpush1.bf16.msra.mxu0 %v2013
        %2047 = vmatprep.subr.bf16.mxu0 %v2016
        %2048 = vmatpush1.bf16.msra.mxu0 %v2015
        %2049 = vmatprep.subr.bf16.mxu0 %v2018
        %2050 = vmatpush1.bf16.msra.mxu0 %v2017
        %2051 = vmatprep.subr.bf16.mxu0 0
        %2052 = vmatpush1.bf16.msra.mxu0 0
        %2053 = vmatprep.subr.bf16.mxu0 0
        %2054 = vmatpush1.bf16.msra.mxu0 0
        %2055 = vmatprep.subr.bf16.mxu0 0
        %2056 = vmatpush1.bf16.msra.mxu0 0
        %2057 = vmatprep.subr.bf16.mxu0 0
        %2058 = vmatpush1.bf16.msra.mxu0 0
        %2059 = vmatprep.subr.bf16.mxu0 0
        %2060 = vmatpush1.bf16.msra.mxu0 0
        %2061 = vmatprep.subr.bf16.mxu0 0
        %2062 = vmatpush1.bf16.msra.mxu0 0
        %2063 = vmatprep.subr.bf16.mxu0 0
        %2064 = vmatpush1.bf16.msra.mxu0 0
        %2065 = vmatprep.subr.bf16.mxu0 0
        %2066 = vmatpush1.bf16.msra.mxu0 0
        %2067 = vmatprep.mubr.bf16.mxu0 0
        %2068 = vmatmul.mubr.bf16.gmra.mrb[0].mxu0 %v1938
        %v2069 = vpop.f32.mrb[0].mxu0
        %v2070 = vadd.f32 0.0, %v2069
        %v2071 = vpop.f32.mrb[0].mxu0
        %v2072 = vadd.f32 0.0, %v2071
        %v2073 = vpop.f32.mrb[0].mxu0
        %v2074 = vadd.f32 0.0, %v2073
        %v2075 = vpop.f32.mrb[0].mxu0
        %v2076 = vadd.f32 0.0, %v2075
        %2077 = vdwg.mxu0
        %v2094 = vunpack.c.l.b16 %v1789
        %v2095 = vunpack.c.h.b16 %v1789
        %v2096 = vunpack.c.l.b16 %v1790
        %v2097 = vunpack.c.h.b16 %v1790
        %v2098 = vunpack.c.l.b16 %v1791
        %v2099 = vunpack.c.h.b16 %v1791
        %v2100 = vunpack.c.l.b16 %v1792
        %v2101 = vunpack.c.h.b16 %v1792
        %v2102 = vunpack.c.l.b16 %v1793
        %v2103 = vunpack.c.h.b16 %v1793
        %v2104 = vunpack.c.l.b16 %v1794
        %v2105 = vunpack.c.h.b16 %v1794
        %v2106 = vunpack.c.l.b16 %v1795
        %v2107 = vunpack.c.h.b16 %v1795
        %v2108 = vunpack.c.l.b16 %v1796
        %v2109 = vunpack.c.h.b16 %v1796
        %v2110 = vunpack.c.l.b16 %v1797
        %v2111 = vunpack.c.h.b16 %v1797
        %v2112 = vunpack.c.l.b16 %v1798
        %v2113 = vunpack.c.h.b16 %v1798
        %v2114 = vunpack.c.l.b16 %v1799
        %v2115 = vunpack.c.h.b16 %v1799
        %v2116 = vunpack.c.l.b16 %v1800
        %v2117 = vunpack.c.h.b16 %v1800
        %v2118 = vunpack.c.l.b16 %v1801
        %v2119 = vunpack.c.h.b16 %v1801
        %v2120 = vunpack.c.l.b16 %v1802
        %v2121 = vunpack.c.h.b16 %v1802
        %v2122 = vunpack.c.l.b16 %v1803
        %v2123 = vunpack.c.h.b16 %v1803
        %v2124 = vunpack.c.l.b16 %v1804
        %v2125 = vunpack.c.h.b16 %v1804
        %v2126 = vpack.c.b16 %v2096, %v2094
        %v2127 = vpack.c.b16 %v2097, %v2095
        %v2128 = vpack.c.b16 %v2100, %v2098
        %v2129 = vpack.c.b16 %v2101, %v2099
        %v2130 = vpack.c.b16 %v2104, %v2102
        %v2131 = vpack.c.b16 %v2105, %v2103
        %v2132 = vpack.c.b16 %v2108, %v2106
        %v2133 = vpack.c.b16 %v2109, %v2107
        %v2134 = vpack.c.b16 %v2112, %v2110
        %v2135 = vpack.c.b16 %v2113, %v2111
        %v2136 = vpack.c.b16 %v2116, %v2114
        %v2137 = vpack.c.b16 %v2117, %v2115
        %v2138 = vpack.c.b16 %v2120, %v2118
        %v2139 = vpack.c.b16 %v2121, %v2119
        %v2140 = vpack.c.b16 %v2124, %v2122
        %v2141 = vpack.c.b16 %v2125, %v2123
        %2158 = vmatprep.subr.bf16.mxu0 %v2127
        %2159 = vmatpush1.bf16.msra.mxu0 %v2126
        %2160 = vmatprep.subr.bf16.mxu0 %v2129
        %2161 = vmatpush1.bf16.msra.mxu0 %v2128
        %2162 = vmatprep.subr.bf16.mxu0 %v2131
        %2163 = vmatpush1.bf16.msra.mxu0 %v2130
        %2164 = vmatprep.subr.bf16.mxu0 %v2133
        %2165 = vmatpush1.bf16.msra.mxu0 %v2132
        %2166 = vmatprep.subr.bf16.mxu0 %v2135
        %2167 = vmatpush1.bf16.msra.mxu0 %v2134
        %2168 = vmatprep.subr.bf16.mxu0 %v2137
        %2169 = vmatpush1.bf16.msra.mxu0 %v2136
        %2170 = vmatprep.subr.bf16.mxu0 %v2139
        %2171 = vmatpush1.bf16.msra.mxu0 %v2138
        %2172 = vmatprep.subr.bf16.mxu0 %v2141
        %2173 = vmatpush1.bf16.msra.mxu0 %v2140
        %2174 = vmatprep.subr.bf16.mxu0 0
        %2175 = vmatpush1.bf16.msra.mxu0 0
        %2176 = vmatprep.subr.bf16.mxu0 0
        %2177 = vmatpush1.bf16.msra.mxu0 0
        %2178 = vmatprep.subr.bf16.mxu0 0
        %2179 = vmatpush1.bf16.msra.mxu0 0
        %2180 = vmatprep.subr.bf16.mxu0 0
        %2181 = vmatpush1.bf16.msra.mxu0 0
        %2182 = vmatprep.subr.bf16.mxu0 0
        %2183 = vmatpush1.bf16.msra.mxu0 0
        %2184 = vmatprep.subr.bf16.mxu0 0
        %2185 = vmatpush1.bf16.msra.mxu0 0
        %2186 = vmatprep.subr.bf16.mxu0 0
        %2187 = vmatpush1.bf16.msra.mxu0 0
        %2188 = vmatprep.subr.bf16.mxu0 0
        %2189 = vmatpush1.bf16.msra.mxu0 0
        %2190 = vmatprep.mubr.bf16.mxu0 0
        %2191 = vmatmul.mubr.bf16.gmra.mrb[0].mxu0 %v1788
        %v2192 = vpop.f32.mrb[0].mxu0
        %v2193 = vadd.f32 %v2070, %v2192
        %v2194 = vpop.f32.mrb[0].mxu0
        %v2195 = vadd.f32 %v2072, %v2194
        %v2196 = vpop.f32.mrb[0].mxu0
        %v2197 = vadd.f32 %v2074, %v2196
        %v2198 = vpop.f32.mrb[0].mxu0
        %v2199 = vadd.f32 %v2076, %v2198
        %2200 = vdwg.mxu0
        %v2201 = vadd.f32 %v867, %v2193
        %v2202 = vadd.f32 %v868, %v2195
        %v2203 = vadd.f32 %v869, %v2197
        %v2204 = vadd.f32 %v870, %v2199
        %v2205 = vld [vmem:[%s844] sm:$0x3]
        %v2206 = vld [vmem:[%s848] sm:$0x3]
        %v2207 = vadd.f32 %v2201, %v2202
        %2208 = vadd.xlane.f32.xlu0 %v2207
        %v2209 = vpop.xlane.xlu0 %2208
        %v2210 = vadd.f32 %v2203, %v2204
        %2211 = vadd.xlane.f32.xlu0 %v2210
        %v2212 = vpop.xlane.xlu0 %2211
        %v2213 = vmul.f32 %v2209, %v879
        %v2214 = vmul.f32 %v2212, %v879
        %v2215 = vsub.f32 %v2201, %v2213
        %v2216 = vsub.f32 %v2202, %v2213
        %v2217 = vsub.f32 %v2203, %v2214
        %v2218 = vsub.f32 %v2204, %v2214
        %v2219 = vmul.f32 %v2215, %v2215
        %v2220 = vmul.f32 %v2216, %v2216
        %v2221 = vmul.f32 %v2217, %v2217
        %v2222 = vmul.f32 %v2218, %v2218
        %v2223 = vadd.f32 %v2219, %v2220
        %2224 = vadd.xlane.f32.xlu0 %v2223
        %v2225 = vpop.xlane.xlu0 %2224
        %v2226 = vadd.f32 %v2221, %v2222
        %2227 = vadd.xlane.f32.xlu0 %v2226
        %v2228 = vpop.xlane.xlu0 %2227
        %v2229 = vmul.f32 %v2225, %v879
        %v2230 = vmul.f32 %v2228, %v879
        %v2231 = vadd.f32 %v2229, 1e-05
        %v2232 = vadd.f32 %v2230, 1e-05
        %v2233 = vrsqrt.pop %v2231
        %v2234 = vrsqrt.pop %v2232
        %v2235 = vmul.f32 %v2215, %v2233
        %v2236 = vmul.f32 %v2216, %v2233
        %v2237 = vmul.f32 %v2217, %v2234
        %v2238 = vmul.f32 %v2218, %v2234
        %v2240 = vlaneseq
        %v2241 = vshrl.u32 %v2240, 7
        %v2242 = vsub.s32 0, %v2241
        %v2243 = vrot.slane %v2205, %v2242
        %v2244 = vlaneseq
        %v2245 = vshrl.u32 %v2244, 7
        %v2246 = vsub.s32 1, %v2245
        %v2247 = vrot.slane %v2205, %v2246
        %v2250 = vmul.f32 %v2235, %v2243
        %v2251 = vmul.f32 %v2236, %v2247
        %v2252 = vmul.f32 %v2237, %v2243
        %v2253 = vmul.f32 %v2238, %v2247
        %v2255 = vlaneseq
        %v2256 = vshrl.u32 %v2255, 7
        %v2257 = vsub.s32 0, %v2256
        %v2258 = vrot.slane %v2206, %v2257
        %v2259 = vlaneseq
        %v2260 = vshrl.u32 %v2259, 7
        %v2261 = vsub.s32 1, %v2260
        %v2262 = vrot.slane %v2206, %v2261
        %v2265 = vadd.f32 %v2250, %v2258
        %v2266 = vadd.f32 %v2251, %v2262
        %v2267 = vadd.f32 %v2252, %v2258
        %v2268 = vadd.f32 %v2253, %v2262
        %v2269 = vpack.c.bf16 %v2267, %v2265
        %v2270 = vpack.c.bf16 %v2268, %v2266
        %v2271 = vld [vmem:[%s710] sm:$0xff]
        %v2272 = vld [vmem:[%s710 + $0x8] sm:$0xff]
        %v2273 = vld [vmem:[%s710 + $0x10] sm:$0xff]
        %v2274 = vld [vmem:[%s710 + $0x18] sm:$0xff]
        %v2275 = vld [vmem:[%s710 + $0x20] sm:$0xff]
        %v2276 = vld [vmem:[%s710 + $0x28] sm:$0xff]
        %v2277 = vld [vmem:[%s710 + $0x30] sm:$0xff]
        %v2278 = vld [vmem:[%s710 + $0x38] sm:$0xff]
        %v2279 = vld [vmem:[%s710 + $0x40] sm:$0xff]
        %v2280 = vld [vmem:[%s710 + $0x48] sm:$0xff]
        %v2281 = vld [vmem:[%s710 + $0x50] sm:$0xff]
        %v2282 = vld [vmem:[%s710 + $0x58] sm:$0xff]
        %v2283 = vld [vmem:[%s710 + $0x60] sm:$0xff]
        %v2284 = vld [vmem:[%s710 + $0x68] sm:$0xff]
        %v2285 = vld [vmem:[%s710 + $0x70] sm:$0xff]
        %v2286 = vld [vmem:[%s710 + $0x78] sm:$0xff]
        %v2287 = vld [vmem:[%s710 + $0x80] sm:$0xff]
        %v2288 = vld [vmem:[%s710 + $0x88] sm:$0xff]
        %v2289 = vld [vmem:[%s710 + $0x90] sm:$0xff]
        %v2290 = vld [vmem:[%s710 + $0x98] sm:$0xff]
        %v2291 = vld [vmem:[%s710 + $0xa0] sm:$0xff]
        %v2292 = vld [vmem:[%s710 + $0xa8] sm:$0xff]
        %v2293 = vld [vmem:[%s710 + $0xb0] sm:$0xff]
        %v2294 = vld [vmem:[%s710 + $0xb8] sm:$0xff]
        %v2295 = vld [vmem:[%s710 + $0xc0] sm:$0xff]
        %v2296 = vld [vmem:[%s710 + $0xc8] sm:$0xff]
        %v2297 = vld [vmem:[%s710 + $0xd0] sm:$0xff]
        %v2298 = vld [vmem:[%s710 + $0xd8] sm:$0xff]
        %v2299 = vld [vmem:[%s710 + $0xe0] sm:$0xff]
        %v2300 = vld [vmem:[%s710 + $0xe8] sm:$0xff]
        %v2301 = vld [vmem:[%s710 + $0xf0] sm:$0xff]
        %v2302 = vld [vmem:[%s710 + $0xf8] sm:$0xff]
        %v2303 = vld [vmem:[%s710 + $0x100] sm:$0xff]
        %v2304 = vld [vmem:[%s710 + $0x108] sm:$0xff]
        %v2305 = vld [vmem:[%s710 + $0x110] sm:$0xff]
        %v2306 = vld [vmem:[%s710 + $0x118] sm:$0xff]
        %v2307 = vld [vmem:[%s710 + $0x120] sm:$0xff]
        %v2308 = vld [vmem:[%s710 + $0x128] sm:$0xff]
        %v2309 = vld [vmem:[%s710 + $0x130] sm:$0xff]
        %v2310 = vld [vmem:[%s710 + $0x138] sm:$0xff]
        %v2311 = vld [vmem:[%s710 + $0x140] sm:$0xff]
        %v2312 = vld [vmem:[%s710 + $0x148] sm:$0xff]
        %v2313 = vld [vmem:[%s710 + $0x150] sm:$0xff]
        %v2314 = vld [vmem:[%s710 + $0x158] sm:$0xff]
        %v2315 = vld [vmem:[%s710 + $0x160] sm:$0xff]
        %v2316 = vld [vmem:[%s710 + $0x168] sm:$0xff]
        %v2317 = vld [vmem:[%s710 + $0x170] sm:$0xff]
        %v2318 = vld [vmem:[%s710 + $0x178] sm:$0xff]
        %v2319 = vld [vmem:[%s710 + $0x180] sm:$0xff]
        %v2320 = vld [vmem:[%s710 + $0x188] sm:$0xff]
        %v2321 = vld [vmem:[%s710 + $0x190] sm:$0xff]
        %v2322 = vld [vmem:[%s710 + $0x198] sm:$0xff]
        %v2323 = vld [vmem:[%s710 + $0x1a0] sm:$0xff]
        %v2324 = vld [vmem:[%s710 + $0x1a8] sm:$0xff]
        %v2325 = vld [vmem:[%s710 + $0x1b0] sm:$0xff]
        %v2326 = vld [vmem:[%s710 + $0x1b8] sm:$0xff]
        %v2327 = vld [vmem:[%s710 + $0x1c0] sm:$0xff]
        %v2328 = vld [vmem:[%s710 + $0x1c8] sm:$0xff]
        %v2329 = vld [vmem:[%s710 + $0x1d0] sm:$0xff]
        %v2330 = vld [vmem:[%s710 + $0x1d8] sm:$0xff]
        %v2331 = vld [vmem:[%s710 + $0x1e0] sm:$0xff]
        %v2332 = vld [vmem:[%s710 + $0x1e8] sm:$0xff]
        %v2333 = vld [vmem:[%s710 + $0x1f0] sm:$0xff]
        %v2334 = vld [vmem:[%s710 + $0x1f8] sm:$0xff]
        %v2399 = vunpack.c.l.b16 %v2271
        %v2400 = vunpack.c.h.b16 %v2271
        %v2401 = vunpack.c.l.b16 %v2272
        %v2402 = vunpack.c.h.b16 %v2272
        %v2403 = vunpack.c.l.b16 %v2273
        %v2404 = vunpack.c.h.b16 %v2273
        %v2405 = vunpack.c.l.b16 %v2274
        %v2406 = vunpack.c.h.b16 %v2274
        %v2407 = vunpack.c.l.b16 %v2275
        %v2408 = vunpack.c.h.b16 %v2275
        %v2409 = vunpack.c.l.b16 %v2276
        %v2410 = vunpack.c.h.b16 %v2276
        %v2411 = vunpack.c.l.b16 %v2277
        %v2412 = vunpack.c.h.b16 %v2277
        %v2413 = vunpack.c.l.b16 %v2278
        %v2414 = vunpack.c.h.b16 %v2278
        %v2415 = vunpack.c.l.b16 %v2279
        %v2416 = vunpack.c.h.b16 %v2279
        %v2417 = vunpack.c.l.b16 %v2280
        %v2418 = vunpack.c.h.b16 %v2280
        %v2419 = vunpack.c.l.b16 %v2281
        %v2420 = vunpack.c.h.b16 %v2281
        %v2421 = vunpack.c.l.b16 %v2282
        %v2422 = vunpack.c.h.b16 %v2282
        %v2423 = vunpack.c.l.b16 %v2283
        %v2424 = vunpack.c.h.b16 %v2283
        %v2425 = vunpack.c.l.b16 %v2284
        %v2426 = vunpack.c.h.b16 %v2284
        %v2427 = vunpack.c.l.b16 %v2285
        %v2428 = vunpack.c.h.b16 %v2285
        %v2429 = vunpack.c.l.b16 %v2286
        %v2430 = vunpack.c.h.b16 %v2286
        %v2431 = vunpack.c.l.b16 %v2287
        %v2432 = vunpack.c.h.b16 %v2287
        %v2433 = vunpack.c.l.b16 %v2288
        %v2434 = vunpack.c.h.b16 %v2288
        %v2435 = vunpack.c.l.b16 %v2289
        %v2436 = vunpack.c.h.b16 %v2289
        %v2437 = vunpack.c.l.b16 %v2290
        %v2438 = vunpack.c.h.b16 %v2290
        %v2439 = vunpack.c.l.b16 %v2291
        %v2440 = vunpack.c.h.b16 %v2291
        %v2441 = vunpack.c.l.b16 %v2292
        %v2442 = vunpack.c.h.b16 %v2292
        %v2443 = vunpack.c.l.b16 %v2293
        %v2444 = vunpack.c.h.b16 %v2293
        %v2445 = vunpack.c.l.b16 %v2294
        %v2446 = vunpack.c.h.b16 %v2294
        %v2447 = vunpack.c.l.b16 %v2295
        %v2448 = vunpack.c.h.b16 %v2295
        %v2449 = vunpack.c.l.b16 %v2296
        %v2450 = vunpack.c.h.b16 %v2296
        %v2451 = vunpack.c.l.b16 %v2297
        %v2452 = vunpack.c.h.b16 %v2297
        %v2453 = vunpack.c.l.b16 %v2298
        %v2454 = vunpack.c.h.b16 %v2298
        %v2455 = vunpack.c.l.b16 %v2299
        %v2456 = vunpack.c.h.b16 %v2299
        %v2457 = vunpack.c.l.b16 %v2300
        %v2458 = vunpack.c.h.b16 %v2300
        %v2459 = vunpack.c.l.b16 %v2301
        %v2460 = vunpack.c.h.b16 %v2301
        %v2461 = vunpack.c.l.b16 %v2302
        %v2462 = vunpack.c.h.b16 %v2302
        %v2463 = vunpack.c.l.b16 %v2303
        %v2464 = vunpack.c.h.b16 %v2303
        %v2465 = vunpack.c.l.b16 %v2304
        %v2466 = vunpack.c.h.b16 %v2304
        %v2467 = vunpack.c.l.b16 %v2305
        %v2468 = vunpack.c.h.b16 %v2305
        %v2469 = vunpack.c.l.b16 %v2306
        %v2470 = vunpack.c.h.b16 %v2306
        %v2471 = vunpack.c.l.b16 %v2307
        %v2472 = vunpack.c.h.b16 %v2307
        %v2473 = vunpack.c.l.b16 %v2308
        %v2474 = vunpack.c.h.b16 %v2308
        %v2475 = vunpack.c.l.b16 %v2309
        %v2476 = vunpack.c.h.b16 %v2309
        %v2477 = vunpack.c.l.b16 %v2310
        %v2478 = vunpack.c.h.b16 %v2310
        %v2479 = vunpack.c.l.b16 %v2311
        %v2480 = vunpack.c.h.b16 %v2311
        %v2481 = vunpack.c.l.b16 %v2312
        %v2482 = vunpack.c.h.b16 %v2312
        %v2483 = vunpack.c.l.b16 %v2313
        %v2484 = vunpack.c.h.b16 %v2313
        %v2485 = vunpack.c.l.b16 %v2314
        %v2486 = vunpack.c.h.b16 %v2314
        %v2487 = vunpack.c.l.b16 %v2315
        %v2488 = vunpack.c.h.b16 %v2315
        %v2489 = vunpack.c.l.b16 %v2316
        %v2490 = vunpack.c.h.b16 %v2316
        %v2491 = vunpack.c.l.b16 %v2317
        %v2492 = vunpack.c.h.b16 %v2317
        %v2493 = vunpack.c.l.b16 %v2318
        %v2494 = vunpack.c.h.b16 %v2318
        %v2495 = vunpack.c.l.b16 %v2319
        %v2496 = vunpack.c.h.b16 %v2319
        %v2497 = vunpack.c.l.b16 %v2320
        %v2498 = vunpack.c.h.b16 %v2320
        %v2499 = vunpack.c.l.b16 %v2321
        %v2500 = vunpack.c.h.b16 %v2321
        %v2501 = vunpack.c.l.b16 %v2322
        %v2502 = vunpack.c.h.b16 %v2322
        %v2503 = vunpack.c.l.b16 %v2323
        %v2504 = vunpack.c.h.b16 %v2323
        %v2505 = vunpack.c.l.b16 %v2324
        %v2506 = vunpack.c.h.b16 %v2324
        %v2507 = vunpack.c.l.b16 %v2325
        %v2508 = vunpack.c.h.b16 %v2325
        %v2509 = vunpack.c.l.b16 %v2326
        %v2510 = vunpack.c.h.b16 %v2326
        %v2511 = vunpack.c.l.b16 %v2327
        %v2512 = vunpack.c.h.b16 %v2327
        %v2513 = vunpack.c.l.b16 %v2328
        %v2514 = vunpack.c.h.b16 %v2328
        %v2515 = vunpack.c.l.b16 %v2329
        %v2516 = vunpack.c.h.b16 %v2329
        %v2517 = vunpack.c.l.b16 %v2330
        %v2518 = vunpack.c.h.b16 %v2330
        %v2519 = vunpack.c.l.b16 %v2331
        %v2520 = vunpack.c.h.b16 %v2331
        %v2521 = vunpack.c.l.b16 %v2332
        %v2522 = vunpack.c.h.b16 %v2332
        %v2523 = vunpack.c.l.b16 %v2333
        %v2524 = vunpack.c.h.b16 %v2333
        %v2525 = vunpack.c.l.b16 %v2334
        %v2526 = vunpack.c.h.b16 %v2334
        %v2527 = vpack.c.b16 %v2403, %v2399
        %v2528 = vpack.c.b16 %v2404, %v2400
        %v2529 = vpack.c.b16 %v2405, %v2401
        %v2530 = vpack.c.b16 %v2406, %v2402
        %v2531 = vpack.c.b16 %v2411, %v2407
        %v2532 = vpack.c.b16 %v2412, %v2408
        %v2533 = vpack.c.b16 %v2413, %v2409
        %v2534 = vpack.c.b16 %v2414, %v2410
        %v2535 = vpack.c.b16 %v2419, %v2415
        %v2536 = vpack.c.b16 %v2420, %v2416
        %v2537 = vpack.c.b16 %v2421, %v2417
        %v2538 = vpack.c.b16 %v2422, %v2418
        %v2539 = vpack.c.b16 %v2427, %v2423
        %v2540 = vpack.c.b16 %v2428, %v2424
        %v2541 = vpack.c.b16 %v2429, %v2425
        %v2542 = vpack.c.b16 %v2430, %v2426
        %v2543 = vpack.c.b16 %v2435, %v2431
        %v2544 = vpack.c.b16 %v2436, %v2432
        %v2545 = vpack.c.b16 %v2437, %v2433
        %v2546 = vpack.c.b16 %v2438, %v2434
        %v2547 = vpack.c.b16 %v2443, %v2439
        %v2548 = vpack.c.b16 %v2444, %v2440
        %v2549 = vpack.c.b16 %v2445, %v2441
        %v2550 = vpack.c.b16 %v2446, %v2442
        %v2551 = vpack.c.b16 %v2451, %v2447
        %v2552 = vpack.c.b16 %v2452, %v2448
        %v2553 = vpack.c.b16 %v2453, %v2449
        %v2554 = vpack.c.b16 %v2454, %v2450
        %v2555 = vpack.c.b16 %v2459, %v2455
        %v2556 = vpack.c.b16 %v2460, %v2456
        %v2557 = vpack.c.b16 %v2461, %v2457
        %v2558 = vpack.c.b16 %v2462, %v2458
        %v2559 = vpack.c.b16 %v2467, %v2463
        %v2560 = vpack.c.b16 %v2468, %v2464
        %v2561 = vpack.c.b16 %v2469, %v2465
        %v2562 = vpack.c.b16 %v2470, %v2466
        %v2563 = vpack.c.b16 %v2475, %v2471
        %v2564 = vpack.c.b16 %v2476, %v2472
        %v2565 = vpack.c.b16 %v2477, %v2473
        %v2566 = vpack.c.b16 %v2478, %v2474
        %v2567 = vpack.c.b16 %v2483, %v2479
        %v2568 = vpack.c.b16 %v2484, %v2480
        %v2569 = vpack.c.b16 %v2485, %v2481
        %v2570 = vpack.c.b16 %v2486, %v2482
        %v2571 = vpack.c.b16 %v2491, %v2487
        %v2572 = vpack.c.b16 %v2492, %v2488
        %v2573 = vpack.c.b16 %v2493, %v2489
        %v2574 = vpack.c.b16 %v2494, %v2490
        %v2575 = vpack.c.b16 %v2499, %v2495
        %v2576 = vpack.c.b16 %v2500, %v2496
        %v2577 = vpack.c.b16 %v2501, %v2497
        %v2578 = vpack.c.b16 %v2502, %v2498
        %v2579 = vpack.c.b16 %v2507, %v2503
        %v2580 = vpack.c.b16 %v2508, %v2504
        %v2581 = vpack.c.b16 %v2509, %v2505
        %v2582 = vpack.c.b16 %v2510, %v2506
        %v2583 = vpack.c.b16 %v2515, %v2511
        %v2584 = vpack.c.b16 %v2516, %v2512
        %v2585 = vpack.c.b16 %v2517, %v2513
        %v2586 = vpack.c.b16 %v2518, %v2514
        %v2587 = vpack.c.b16 %v2523, %v2519
        %v2588 = vpack.c.b16 %v2524, %v2520
        %v2589 = vpack.c.b16 %v2525, %v2521
        %v2590 = vpack.c.b16 %v2526, %v2522
        %2655 = vmatprep.subr.bf16.mxu0 %v2528
        %2656 = vmatpush1.bf16.msra.mxu0 %v2527
        %2657 = vmatprep.subr.bf16.mxu0 %v2532
        %2658 = vmatpush1.bf16.msra.mxu0 %v2531
        %2659 = vmatprep.subr.bf16.mxu0 %v2536
        %2660 = vmatpush1.bf16.msra.mxu0 %v2535
        %2661 = vmatprep.subr.bf16.mxu0 %v2540
        %2662 = vmatpush1.bf16.msra.mxu0 %v2539
        %2663 = vmatprep.subr.bf16.mxu0 %v2544
        %2664 = vmatpush1.bf16.msra.mxu0 %v2543
        %2665 = vmatprep.subr.bf16.mxu0 %v2548
        %2666 = vmatpush1.bf16.msra.mxu0 %v2547
        %2667 = vmatprep.subr.bf16.mxu0 %v2552
        %2668 = vmatpush1.bf16.msra.mxu0 %v2551
        %2669 = vmatprep.subr.bf16.mxu0 %v2556
        %2670 = vmatpush1.bf16.msra.mxu0 %v2555
        %2671 = vmatprep.subr.bf16.mxu0 %v2560
        %2672 = vmatpush1.bf16.msra.mxu0 %v2559
        %2673 = vmatprep.subr.bf16.mxu0 %v2564
        %2674 = vmatpush1.bf16.msra.mxu0 %v2563
        %2675 = vmatprep.subr.bf16.mxu0 %v2568
        %2676 = vmatpush1.bf16.msra.mxu0 %v2567
        %2677 = vmatprep.subr.bf16.mxu0 %v2572
        %2678 = vmatpush1.bf16.msra.mxu0 %v2571
        %2679 = vmatprep.subr.bf16.mxu0 %v2576
        %2680 = vmatpush1.bf16.msra.mxu0 %v2575
        %2681 = vmatprep.subr.bf16.mxu0 %v2580
        %2682 = vmatpush1.bf16.msra.mxu0 %v2579
        %2683 = vmatprep.subr.bf16.mxu0 %v2584
        %2684 = vmatpush1.bf16.msra.mxu0 %v2583
        %2685 = vmatprep.subr.bf16.mxu0 %v2588
        %2686 = vmatpush1.bf16.msra.mxu0 %v2587
        %2687 = vmatprep.mubr.bf16.mxu0 %v2270
        %2688 = vmatmul.mubr.bf16.gmra.mrb[0].mxu0 %v2269
        %v2689 = vpop.f32.mrb[0].mxu0
        %v2690 = vadd.f32 0.0, %v2689
        %v2691 = vpop.f32.mrb[0].mxu0
        %v2692 = vadd.f32 0.0, %v2691
        %v2693 = vpop.f32.mrb[0].mxu0
        %v2694 = vadd.f32 0.0, %v2693
        %v2695 = vpop.f32.mrb[0].mxu0
        %v2696 = vadd.f32 0.0, %v2695
        %2697 = vdwg.mxu0
        %2698 = vmatprep.subr.bf16.mxu0 %v2530
        %2699 = vmatpush1.bf16.msra.mxu0 %v2529
        %2700 = vmatprep.subr.bf16.mxu0 %v2534
        %2701 = vmatpush1.bf16.msra.mxu0 %v2533
        %2702 = vmatprep.subr.bf16.mxu0 %v2538
        %2703 = vmatpush1.bf16.msra.mxu0 %v2537
        %2704 = vmatprep.subr.bf16.mxu0 %v2542
        %2705 = vmatpush1.bf16.msra.mxu0 %v2541
        %2706 = vmatprep.subr.bf16.mxu0 %v2546
        %2707 = vmatpush1.bf16.msra.mxu0 %v2545
        %2708 = vmatprep.subr.bf16.mxu0 %v2550
        %2709 = vmatpush1.bf16.msra.mxu0 %v2549
        %2710 = vmatprep.subr.bf16.mxu0 %v2554
        %2711 = vmatpush1.bf16.msra.mxu0 %v2553
        %2712 = vmatprep.subr.bf16.mxu0 %v2558
        %2713 = vmatpush1.bf16.msra.mxu0 %v2557
        %2714 = vmatprep.subr.bf16.mxu0 %v2562
        %2715 = vmatpush1.bf16.msra.mxu0 %v2561
        %2716 = vmatprep.subr.bf16.mxu0 %v2566
        %2717 = vmatpush1.bf16.msra.mxu0 %v2565
        %2718 = vmatprep.subr.bf16.mxu0 %v2570
        %2719 = vmatpush1.bf16.msra.mxu0 %v2569
        %2720 = vmatprep.subr.bf16.mxu0 %v2574
        %2721 = vmatpush1.bf16.msra.mxu0 %v2573
        %2722 = vmatprep.subr.bf16.mxu0 %v2578
        %2723 = vmatpush1.bf16.msra.mxu0 %v2577
        %2724 = vmatprep.subr.bf16.mxu0 %v2582
        %2725 = vmatpush1.bf16.msra.mxu0 %v2581
        %2726 = vmatprep.subr.bf16.mxu0 %v2586
        %2727 = vmatpush1.bf16.msra.mxu0 %v2585
        %2728 = vmatprep.subr.bf16.mxu0 %v2590
        %2729 = vmatpush1.bf16.msra.mxu0 %v2589
        %2730 = vmatprep.mubr.bf16.mxu0 %v2270
        %2731 = vmatmul.mubr.bf16.gmra.mrb[0].mxu0 %v2269
        %v2732 = vpop.f32.mrb[0].mxu0
        %v2733 = vadd.f32 0.0, %v2732
        %v2734 = vpop.f32.mrb[0].mxu0
        %v2735 = vadd.f32 0.0, %v2734
        %v2736 = vpop.f32.mrb[0].mxu0
        %v2737 = vadd.f32 0.0, %v2736
        %v2738 = vpop.f32.mrb[0].mxu0
        %v2739 = vadd.f32 0.0, %v2738
        %2740 = vdwg.mxu0
        %v2741 = vld [vmem:[%s719] sm:$0xff]
        %v2742 = vld [vmem:[%s719 + $0x8] sm:$0xff]
        %v2743 = vld [vmem:[%s719 + $0x10] sm:$0xff]
        %v2744 = vld [vmem:[%s719 + $0x18] sm:$0xff]
        %v2745 = vld [vmem:[%s719 + $0x20] sm:$0xff]
        %v2746 = vld [vmem:[%s719 + $0x28] sm:$0xff]
        %v2747 = vld [vmem:[%s719 + $0x30] sm:$0xff]
        %v2748 = vld [vmem:[%s719 + $0x38] sm:$0xff]
        %v2749 = vld [vmem:[%s719 + $0x40] sm:$0xff]
        %v2750 = vld [vmem:[%s719 + $0x48] sm:$0xff]
        %v2751 = vld [vmem:[%s719 + $0x50] sm:$0xff]
        %v2752 = vld [vmem:[%s719 + $0x58] sm:$0xff]
        %v2753 = vld [vmem:[%s719 + $0x60] sm:$0xff]
        %v2754 = vld [vmem:[%s719 + $0x68] sm:$0xff]
        %v2755 = vld [vmem:[%s719 + $0x70] sm:$0xff]
        %v2756 = vld [vmem:[%s719 + $0x78] sm:$0xff]
        %v2757 = vld [vmem:[%s719 + $0x80] sm:$0xff]
        %v2758 = vld [vmem:[%s719 + $0x88] sm:$0xff]
        %v2759 = vld [vmem:[%s719 + $0x90] sm:$0xff]
        %v2760 = vld [vmem:[%s719 + $0x98] sm:$0xff]
        %v2761 = vld [vmem:[%s719 + $0xa0] sm:$0xff]
        %v2762 = vld [vmem:[%s719 + $0xa8] sm:$0xff]
        %v2763 = vld [vmem:[%s719 + $0xb0] sm:$0xff]
        %v2764 = vld [vmem:[%s719 + $0xb8] sm:$0xff]
        %v2765 = vld [vmem:[%s719 + $0xc0] sm:$0xff]
        %v2766 = vld [vmem:[%s719 + $0xc8] sm:$0xff]
        %v2767 = vld [vmem:[%s719 + $0xd0] sm:$0xff]
        %v2768 = vld [vmem:[%s719 + $0xd8] sm:$0xff]
        %v2769 = vld [vmem:[%s719 + $0xe0] sm:$0xff]
        %v2770 = vld [vmem:[%s719 + $0xe8] sm:$0xff]
        %v2771 = vld [vmem:[%s719 + $0xf0] sm:$0xff]
        %v2772 = vld [vmem:[%s719 + $0xf8] sm:$0xff]
        %v2773 = vld [vmem:[%s719 + $0x100] sm:$0xff]
        %v2774 = vld [vmem:[%s719 + $0x108] sm:$0xff]
        %v2775 = vld [vmem:[%s719 + $0x110] sm:$0xff]
        %v2776 = vld [vmem:[%s719 + $0x118] sm:$0xff]
        %v2777 = vld [vmem:[%s719 + $0x120] sm:$0xff]
        %v2778 = vld [vmem:[%s719 + $0x128] sm:$0xff]
        %v2779 = vld [vmem:[%s719 + $0x130] sm:$0xff]
        %v2780 = vld [vmem:[%s719 + $0x138] sm:$0xff]
        %v2781 = vld [vmem:[%s719 + $0x140] sm:$0xff]
        %v2782 = vld [vmem:[%s719 + $0x148] sm:$0xff]
        %v2783 = vld [vmem:[%s719 + $0x150] sm:$0xff]
        %v2784 = vld [vmem:[%s719 + $0x158] sm:$0xff]
        %v2785 = vld [vmem:[%s719 + $0x160] sm:$0xff]
        %v2786 = vld [vmem:[%s719 + $0x168] sm:$0xff]
        %v2787 = vld [vmem:[%s719 + $0x170] sm:$0xff]
        %v2788 = vld [vmem:[%s719 + $0x178] sm:$0xff]
        %v2789 = vld [vmem:[%s719 + $0x180] sm:$0xff]
        %v2790 = vld [vmem:[%s719 + $0x188] sm:$0xff]
        %v2791 = vld [vmem:[%s719 + $0x190] sm:$0xff]
        %v2792 = vld [vmem:[%s719 + $0x198] sm:$0xff]
        %v2793 = vld [vmem:[%s719 + $0x1a0] sm:$0xff]
        %v2794 = vld [vmem:[%s719 + $0x1a8] sm:$0xff]
        %v2795 = vld [vmem:[%s719 + $0x1b0] sm:$0xff]
        %v2796 = vld [vmem:[%s719 + $0x1b8] sm:$0xff]
        %v2797 = vld [vmem:[%s719 + $0x1c0] sm:$0xff]
        %v2798 = vld [vmem:[%s719 + $0x1c8] sm:$0xff]
        %v2799 = vld [vmem:[%s719 + $0x1d0] sm:$0xff]
        %v2800 = vld [vmem:[%s719 + $0x1d8] sm:$0xff]
        %v2801 = vld [vmem:[%s719 + $0x1e0] sm:$0xff]
        %v2802 = vld [vmem:[%s719 + $0x1e8] sm:$0xff]
        %v2803 = vld [vmem:[%s719 + $0x1f0] sm:$0xff]
        %v2804 = vld [vmem:[%s719 + $0x1f8] sm:$0xff]
        %v2869 = vunpack.c.l.b16 %v2741
        %v2870 = vunpack.c.h.b16 %v2741
        %v2871 = vunpack.c.l.b16 %v2742
        %v2872 = vunpack.c.h.b16 %v2742
        %v2873 = vunpack.c.l.b16 %v2743
        %v2874 = vunpack.c.h.b16 %v2743
        %v2875 = vunpack.c.l.b16 %v2744
        %v2876 = vunpack.c.h.b16 %v2744
        %v2877 = vunpack.c.l.b16 %v2745
        %v2878 = vunpack.c.h.b16 %v2745
        %v2879 = vunpack.c.l.b16 %v2746
        %v2880 = vunpack.c.h.b16 %v2746
        %v2881 = vunpack.c.l.b16 %v2747
        %v2882 = vunpack.c.h.b16 %v2747
        %v2883 = vunpack.c.l.b16 %v2748
        %v2884 = vunpack.c.h.b16 %v2748
        %v2885 = vunpack.c.l.b16 %v2749
        %v2886 = vunpack.c.h.b16 %v2749
        %v2887 = vunpack.c.l.b16 %v2750
        %v2888 = vunpack.c.h.b16 %v2750
        %v2889 = vunpack.c.l.b16 %v2751
        %v2890 = vunpack.c.h.b16 %v2751
        %v2891 = vunpack.c.l.b16 %v2752
        %v2892 = vunpack.c.h.b16 %v2752
        %v2893 = vunpack.c.l.b16 %v2753
        %v2894 = vunpack.c.h.b16 %v2753
        %v2895 = vunpack.c.l.b16 %v2754
        %v2896 = vunpack.c.h.b16 %v2754
        %v2897 = vunpack.c.l.b16 %v2755
        %v2898 = vunpack.c.h.b16 %v2755
        %v2899 = vunpack.c.l.b16 %v2756
        %v2900 = vunpack.c.h.b16 %v2756
        %v2901 = vunpack.c.l.b16 %v2757
        %v2902 = vunpack.c.h.b16 %v2757
        %v2903 = vunpack.c.l.b16 %v2758
        %v2904 = vunpack.c.h.b16 %v2758
        %v2905 = vunpack.c.l.b16 %v2759
        %v2906 = vunpack.c.h.b16 %v2759
        %v2907 = vunpack.c.l.b16 %v2760
        %v2908 = vunpack.c.h.b16 %v2760
        %v2909 = vunpack.c.l.b16 %v2761
        %v2910 = vunpack.c.h.b16 %v2761
        %v2911 = vunpack.c.l.b16 %v2762
        %v2912 = vunpack.c.h.b16 %v2762
        %v2913 = vunpack.c.l.b16 %v2763
        %v2914 = vunpack.c.h.b16 %v2763
        %v2915 = vunpack.c.l.b16 %v2764
        %v2916 = vunpack.c.h.b16 %v2764
        %v2917 = vunpack.c.l.b16 %v2765
        %v2918 = vunpack.c.h.b16 %v2765
        %v2919 = vunpack.c.l.b16 %v2766
        %v2920 = vunpack.c.h.b16 %v2766
        %v2921 = vunpack.c.l.b16 %v2767
        %v2922 = vunpack.c.h.b16 %v2767
        %v2923 = vunpack.c.l.b16 %v2768
        %v2924 = vunpack.c.h.b16 %v2768
        %v2925 = vunpack.c.l.b16 %v2769
        %v2926 = vunpack.c.h.b16 %v2769
        %v2927 = vunpack.c.l.b16 %v2770
        %v2928 = vunpack.c.h.b16 %v2770
        %v2929 = vunpack.c.l.b16 %v2771
        %v2930 = vunpack.c.h.b16 %v2771
        %v2931 = vunpack.c.l.b16 %v2772
        %v2932 = vunpack.c.h.b16 %v2772
        %v2933 = vunpack.c.l.b16 %v2773
        %v2934 = vunpack.c.h.b16 %v2773
        %v2935 = vunpack.c.l.b16 %v2774
        %v2936 = vunpack.c.h.b16 %v2774
        %v2937 = vunpack.c.l.b16 %v2775
        %v2938 = vunpack.c.h.b16 %v2775
        %v2939 = vunpack.c.l.b16 %v2776
        %v2940 = vunpack.c.h.b16 %v2776
        %v2941 = vunpack.c.l.b16 %v2777
        %v2942 = vunpack.c.h.b16 %v2777
        %v2943 = vunpack.c.l.b16 %v2778
        %v2944 = vunpack.c.h.b16 %v2778
        %v2945 = vunpack.c.l.b16 %v2779
        %v2946 = vunpack.c.h.b16 %v2779
        %v2947 = vunpack.c.l.b16 %v2780
        %v2948 = vunpack.c.h.b16 %v2780
        %v2949 = vunpack.c.l.b16 %v2781
        %v2950 = vunpack.c.h.b16 %v2781
        %v2951 = vunpack.c.l.b16 %v2782
        %v2952 = vunpack.c.h.b16 %v2782
        %v2953 = vunpack.c.l.b16 %v2783
        %v2954 = vunpack.c.h.b16 %v2783
        %v2955 = vunpack.c.l.b16 %v2784
        %v2956 = vunpack.c.h.b16 %v2784
        %v2957 = vunpack.c.l.b16 %v2785
        %v2958 = vunpack.c.h.b16 %v2785
        %v2959 = vunpack.c.l.b16 %v2786
        %v2960 = vunpack.c.h.b16 %v2786
        %v2961 = vunpack.c.l.b16 %v2787
        %v2962 = vunpack.c.h.b16 %v2787
        %v2963 = vunpack.c.l.b16 %v2788
        %v2964 = vunpack.c.h.b16 %v2788
        %v2965 = vunpack.c.l.b16 %v2789
        %v2966 = vunpack.c.h.b16 %v2789
        %v2967 = vunpack.c.l.b16 %v2790
        %v2968 = vunpack.c.h.b16 %v2790
        %v2969 = vunpack.c.l.b16 %v2791
        %v2970 = vunpack.c.h.b16 %v2791
        %v2971 = vunpack.c.l.b16 %v2792
        %v2972 = vunpack.c.h.b16 %v2792
        %v2973 = vunpack.c.l.b16 %v2793
        %v2974 = vunpack.c.h.b16 %v2793
        %v2975 = vunpack.c.l.b16 %v2794
        %v2976 = vunpack.c.h.b16 %v2794
        %v2977 = vunpack.c.l.b16 %v2795
        %v2978 = vunpack.c.h.b16 %v2795
        %v2979 = vunpack.c.l.b16 %v2796
        %v2980 = vunpack.c.h.b16 %v2796
        %v2981 = vunpack.c.l.b16 %v2797
        %v2982 = vunpack.c.h.b16 %v2797
        %v2983 = vunpack.c.l.b16 %v2798
        %v2984 = vunpack.c.h.b16 %v2798
        %v2985 = vunpack.c.l.b16 %v2799
        %v2986 = vunpack.c.h.b16 %v2799
        %v2987 = vunpack.c.l.b16 %v2800
        %v2988 = vunpack.c.h.b16 %v2800
        %v2989 = vunpack.c.l.b16 %v2801
        %v2990 = vunpack.c.h.b16 %v2801
        %v2991 = vunpack.c.l.b16 %v2802
        %v2992 = vunpack.c.h.b16 %v2802
        %v2993 = vunpack.c.l.b16 %v2803
        %v2994 = vunpack.c.h.b16 %v2803
        %v2995 = vunpack.c.l.b16 %v2804
        %v2996 = vunpack.c.h.b16 %v2804
        %v2997 = vpack.c.b16 %v2873, %v2869
        %v2998 = vpack.c.b16 %v2874, %v2870
        %v2999 = vpack.c.b16 %v2875, %v2871
        %v3000 = vpack.c.b16 %v2876, %v2872
        %v3001 = vpack.c.b16 %v2881, %v2877
        %v3002 = vpack.c.b16 %v2882, %v2878
        %v3003 = vpack.c.b16 %v2883, %v2879
        %v3004 = vpack.c.b16 %v2884, %v2880
        %v3005 = vpack.c.b16 %v2889, %v2885
        %v3006 = vpack.c.b16 %v2890, %v2886
        %v3007 = vpack.c.b16 %v2891, %v2887
        %v3008 = vpack.c.b16 %v2892, %v2888
        %v3009 = vpack.c.b16 %v2897, %v2893
        %v3010 = vpack.c.b16 %v2898, %v2894
        %v3011 = vpack.c.b16 %v2899, %v2895
        %v3012 = vpack.c.b16 %v2900, %v2896
        %v3013 = vpack.c.b16 %v2905, %v2901
        %v3014 = vpack.c.b16 %v2906, %v2902
        %v3015 = vpack.c.b16 %v2907, %v2903
        %v3016 = vpack.c.b16 %v2908, %v2904
        %v3017 = vpack.c.b16 %v2913, %v2909
        %v3018 = vpack.c.b16 %v2914, %v2910
        %v3019 = vpack.c.b16 %v2915, %v2911
        %v3020 = vpack.c.b16 %v2916, %v2912
        %v3021 = vpack.c.b16 %v2921, %v2917
        %v3022 = vpack.c.b16 %v2922, %v2918
        %v3023 = vpack.c.b16 %v2923, %v2919
        %v3024 = vpack.c.b16 %v2924, %v2920
        %v3025 = vpack.c.b16 %v2929, %v2925
        %v3026 = vpack.c.b16 %v2930, %v2926
        %v3027 = vpack.c.b16 %v2931, %v2927
        %v3028 = vpack.c.b16 %v2932, %v2928
        %v3029 = vpack.c.b16 %v2937, %v2933
        %v3030 = vpack.c.b16 %v2938, %v2934
        %v3031 = vpack.c.b16 %v2939, %v2935
        %v3032 = vpack.c.b16 %v2940, %v2936
        %v3033 = vpack.c.b16 %v2945, %v2941
        %v3034 = vpack.c.b16 %v2946, %v2942
        %v3035 = vpack.c.b16 %v2947, %v2943
        %v3036 = vpack.c.b16 %v2948, %v2944
        %v3037 = vpack.c.b16 %v2953, %v2949
        %v3038 = vpack.c.b16 %v2954, %v2950
        %v3039 = vpack.c.b16 %v2955, %v2951
        %v3040 = vpack.c.b16 %v2956, %v2952
        %v3041 = vpack.c.b16 %v2961, %v2957
        %v3042 = vpack.c.b16 %v2962, %v2958
        %v3043 = vpack.c.b16 %v2963, %v2959
        %v3044 = vpack.c.b16 %v2964, %v2960
        %v3045 = vpack.c.b16 %v2969, %v2965
        %v3046 = vpack.c.b16 %v2970, %v2966
        %v3047 = vpack.c.b16 %v2971, %v2967
        %v3048 = vpack.c.b16 %v2972, %v2968
        %v3049 = vpack.c.b16 %v2977, %v2973
        %v3050 = vpack.c.b16 %v2978, %v2974
        %v3051 = vpack.c.b16 %v2979, %v2975
        %v3052 = vpack.c.b16 %v2980, %v2976
        %v3053 = vpack.c.b16 %v2985, %v2981
        %v3054 = vpack.c.b16 %v2986, %v2982
        %v3055 = vpack.c.b16 %v2987, %v2983
        %v3056 = vpack.c.b16 %v2988, %v2984
        %v3057 = vpack.c.b16 %v2993, %v2989
        %v3058 = vpack.c.b16 %v2994, %v2990
        %v3059 = vpack.c.b16 %v2995, %v2991
        %v3060 = vpack.c.b16 %v2996, %v2992
        %3125 = vmatprep.subr.bf16.mxu0 %v2998
        %3126 = vmatpush1.bf16.msra.mxu0 %v2997
        %3127 = vmatprep.subr.bf16.mxu0 %v3002
        %3128 = vmatpush1.bf16.msra.mxu0 %v3001
        %3129 = vmatprep.subr.bf16.mxu0 %v3006
        %3130 = vmatpush1.bf16.msra.mxu0 %v3005
        %3131 = vmatprep.subr.bf16.mxu0 %v3010
        %3132 = vmatpush1.bf16.msra.mxu0 %v3009
        %3133 = vmatprep.subr.bf16.mxu0 %v3014
        %3134 = vmatpush1.bf16.msra.mxu0 %v3013
        %3135 = vmatprep.subr.bf16.mxu0 %v3018
        %3136 = vmatpush1.bf16.msra.mxu0 %v3017
        %3137 = vmatprep.subr.bf16.mxu0 %v3022
        %3138 = vmatpush1.bf16.msra.mxu0 %v3021
        %3139 = vmatprep.subr.bf16.mxu0 %v3026
        %3140 = vmatpush1.bf16.msra.mxu0 %v3025
        %3141 = vmatprep.subr.bf16.mxu0 %v3030
        %3142 = vmatpush1.bf16.msra.mxu0 %v3029
        %3143 = vmatprep.subr.bf16.mxu0 %v3034
        %3144 = vmatpush1.bf16.msra.mxu0 %v3033
        %3145 = vmatprep.subr.bf16.mxu0 %v3038
        %3146 = vmatpush1.bf16.msra.mxu0 %v3037
        %3147 = vmatprep.subr.bf16.mxu0 %v3042
        %3148 = vmatpush1.bf16.msra.mxu0 %v3041
        %3149 = vmatprep.subr.bf16.mxu0 %v3046
        %3150 = vmatpush1.bf16.msra.mxu0 %v3045
        %3151 = vmatprep.subr.bf16.mxu0 %v3050
        %3152 = vmatpush1.bf16.msra.mxu0 %v3049
        %3153 = vmatprep.subr.bf16.mxu0 %v3054
        %3154 = vmatpush1.bf16.msra.mxu0 %v3053
        %3155 = vmatprep.subr.bf16.mxu0 %v3058
        %3156 = vmatpush1.bf16.msra.mxu0 %v3057
        %3157 = vmatprep.mubr.bf16.mxu0 %v2270
        %3158 = vmatmul.mubr.bf16.gmra.mrb[0].mxu0 %v2269
        %v3159 = vpop.f32.mrb[0].mxu0
        %v3160 = vadd.f32 0.0, %v3159
        %v3161 = vpop.f32.mrb[0].mxu0
        %v3162 = vadd.f32 0.0, %v3161
        %v3163 = vpop.f32.mrb[0].mxu0
        %v3164 = vadd.f32 0.0, %v3163
        %v3165 = vpop.f32.mrb[0].mxu0
        %v3166 = vadd.f32 0.0, %v3165
        %3167 = vdwg.mxu0
        %3168 = vmatprep.subr.bf16.mxu0 %v3000
        %3169 = vmatpush1.bf16.msra.mxu0 %v2999
        %3170 = vmatprep.subr.bf16.mxu0 %v3004
        %3171 = vmatpush1.bf16.msra.mxu0 %v3003
        %3172 = vmatprep.subr.bf16.mxu0 %v3008
        %3173 = vmatpush1.bf16.msra.mxu0 %v3007
        %3174 = vmatprep.subr.bf16.mxu0 %v3012
        %3175 = vmatpush1.bf16.msra.mxu0 %v3011
        %3176 = vmatprep.subr.bf16.mxu0 %v3016
        %3177 = vmatpush1.bf16.msra.mxu0 %v3015
        %3178 = vmatprep.subr.bf16.mxu0 %v3020
        %3179 = vmatpush1.bf16.msra.mxu0 %v3019
        %3180 = vmatprep.subr.bf16.mxu0 %v3024
        %3181 = vmatpush1.bf16.msra.mxu0 %v3023
        %3182 = vmatprep.subr.bf16.mxu0 %v3028
        %3183 = vmatpush1.bf16.msra.mxu0 %v3027
        %3184 = vmatprep.subr.bf16.mxu0 %v3032
        %3185 = vmatpush1.bf16.msra.mxu0 %v3031
        %3186 = vmatprep.subr.bf16.mxu0 %v3036
        %3187 = vmatpush1.bf16.msra.mxu0 %v3035
        %3188 = vmatprep.subr.bf16.mxu0 %v3040
        %3189 = vmatpush1.bf16.msra.mxu0 %v3039
        %3190 = vmatprep.subr.bf16.mxu0 %v3044
        %3191 = vmatpush1.bf16.msra.mxu0 %v3043
        %3192 = vmatprep.subr.bf16.mxu0 %v3048
        %3193 = vmatpush1.bf16.msra.mxu0 %v3047
        %3194 = vmatprep.subr.bf16.mxu0 %v3052
        %3195 = vmatpush1.bf16.msra.mxu0 %v3051
        %3196 = vmatprep.subr.bf16.mxu0 %v3056
        %3197 = vmatpush1.bf16.msra.mxu0 %v3055
        %3198 = vmatprep.subr.bf16.mxu0 %v3060
        %3199 = vmatpush1.bf16.msra.mxu0 %v3059
        %3200 = vmatprep.mubr.bf16.mxu0 %v2270
        %3201 = vmatmul.mubr.bf16.gmra.mrb[0].mxu0 %v2269
        %v3202 = vpop.f32.mrb[0].mxu0
        %v3203 = vadd.f32 0.0, %v3202
        %v3204 = vpop.f32.mrb[0].mxu0
        %v3205 = vadd.f32 0.0, %v3204
        %v3206 = vpop.f32.mrb[0].mxu0
        %v3207 = vadd.f32 0.0, %v3206
        %v3208 = vpop.f32.mrb[0].mxu0
        %v3209 = vadd.f32 0.0, %v3208
        %3210 = vdwg.mxu0
        %v3211 = vxor.u32 %v2690, 2147483648
        %v3212 = vxor.u32 %v2692, 2147483648
        %v3213 = vxor.u32 %v2733, 2147483648
        %v3214 = vxor.u32 %v2735, 2147483648
        %v3215 = vxor.u32 %v2694, 2147483648
        %v3216 = vxor.u32 %v2696, 2147483648
        %v3217 = vxor.u32 %v2737, 2147483648
        %v3218 = vxor.u32 %v2739, 2147483648
        %v3219 = vmul.f32 %v3211, 1.442695
        %v3220 = vpow.pop %v3219
        %v3221 = vmul.f32 %v3212, 1.442695
        %v3222 = vpow.pop %v3221
        %v3223 = vmul.f32 %v3213, 1.442695
        %v3224 = vpow.pop %v3223
        %v3225 = vmul.f32 %v3214, 1.442695
        %v3226 = vpow.pop %v3225
        %v3227 = vmul.f32 %v3215, 1.442695
        %v3228 = vpow.pop %v3227
        %v3229 = vmul.f32 %v3216, 1.442695
        %v3230 = vpow.pop %v3229
        %v3231 = vmul.f32 %v3217, 1.442695
        %v3232 = vpow.pop %v3231
        %v3233 = vmul.f32 %v3218, 1.442695
        %v3234 = vpow.pop %v3233
        %v3235 = vadd.f32 %v3220, 1.0
        %v3236 = vadd.f32 %v3222, 1.0
        %v3237 = vadd.f32 %v3224, 1.0
        %v3238 = vadd.f32 %v3226, 1.0
        %v3239 = vadd.f32 %v3228, 1.0
        %v3240 = vadd.f32 %v3230, 1.0
        %v3241 = vadd.f32 %v3232, 1.0
        %v3242 = vadd.f32 %v3234, 1.0
        %v3243 = vrcp.pop %v3235
        %v3244 = vmul.f32 1.0, %v3243
        %v3245 = vrcp.pop %v3236
        %v3246 = vmul.f32 1.0, %v3245
        %v3247 = vrcp.pop %v3237
        %v3248 = vmul.f32 1.0, %v3247
        %v3249 = vrcp.pop %v3238
        %v3250 = vmul.f32 1.0, %v3249
        %v3251 = vrcp.pop %v3239
        %v3252 = vmul.f32 1.0, %v3251
        %v3253 = vrcp.pop %v3240
        %v3254 = vmul.f32 1.0, %v3253
        %v3255 = vrcp.pop %v3241
        %v3256 = vmul.f32 1.0, %v3255
        %v3257 = vrcp.pop %v3242
        %v3258 = vmul.f32 1.0, %v3257
        %v3259 = vmul.f32 %v2690, %v3244
        %v3260 = vmul.f32 %v2692, %v3246
        %v3261 = vmul.f32 %v2733, %v3248
        %v3262 = vmul.f32 %v2735, %v3250
        %v3263 = vmul.f32 %v2694, %v3252
        %v3264 = vmul.f32 %v2696, %v3254
        %v3265 = vmul.f32 %v2737, %v3256
        %v3266 = vmul.f32 %v2739, %v3258
        %v3267 = vmul.f32 %v3259, %v3160
        %v3268 = vmul.f32 %v3260, %v3162
        %v3269 = vmul.f32 %v3261, %v3203
        %v3270 = vmul.f32 %v3262, %v3205
        %v3271 = vmul.f32 %v3263, %v3164
        %v3272 = vmul.f32 %v3264, %v3166
        %v3273 = vmul.f32 %v3265, %v3207
        %v3274 = vmul.f32 %v3266, %v3209
        %v3275 = vpack.c.bf16 %v3271, %v3267
        %v3276 = vpack.c.bf16 %v3272, %v3268
        %v3277 = vpack.c.bf16 %v3273, %v3269
        %v3278 = vpack.c.bf16 %v3274, %v3270
        %v3279 = vld [vmem:[%s728] sm:$0xff]
        %v3280 = vld [vmem:[%s728 + $0x8] sm:$0xff]
        %v3281 = vld [vmem:[%s728 + $0x10] sm:$0xff]
        %v3282 = vld [vmem:[%s728 + $0x18] sm:$0xff]
        %v3283 = vld [vmem:[%s728 + $0x20] sm:$0xff]
        %v3284 = vld [vmem:[%s728 + $0x28] sm:$0xff]
        %v3285 = vld [vmem:[%s728 + $0x30] sm:$0xff]
        %v3286 = vld [vmem:[%s728 + $0x38] sm:$0xff]
        %v3287 = vld [vmem:[%s728 + $0x40] sm:$0xff]
        %v3288 = vld [vmem:[%s728 + $0x48] sm:$0xff]
        %v3289 = vld [vmem:[%s728 + $0x50] sm:$0xff]
        %v3290 = vld [vmem:[%s728 + $0x58] sm:$0xff]
        %v3291 = vld [vmem:[%s728 + $0x60] sm:$0xff]
        %v3292 = vld [vmem:[%s728 + $0x68] sm:$0xff]
        %v3293 = vld [vmem:[%s728 + $0x70] sm:$0xff]
        %v3294 = vld [vmem:[%s728 + $0x78] sm:$0xff]
        %v3295 = vld [vmem:[%s728 + $0x80] sm:$0xff]
        %v3296 = vld [vmem:[%s728 + $0x88] sm:$0xff]
        %v3297 = vld [vmem:[%s728 + $0x90] sm:$0xff]
        %v3298 = vld [vmem:[%s728 + $0x98] sm:$0xff]
        %v3299 = vld [vmem:[%s728 + $0xa0] sm:$0xff]
        %v3300 = vld [vmem:[%s728 + $0xa8] sm:$0xff]
        %v3301 = vld [vmem:[%s728 + $0xb0] sm:$0xff]
        %v3302 = vld [vmem:[%s728 + $0xb8] sm:$0xff]
        %v3303 = vld [vmem:[%s728 + $0xc0] sm:$0xff]
        %v3304 = vld [vmem:[%s728 + $0xc8] sm:$0xff]
        %v3305 = vld [vmem:[%s728 + $0xd0] sm:$0xff]
        %v3306 = vld [vmem:[%s728 + $0xd8] sm:$0xff]
        %v3307 = vld [vmem:[%s728 + $0xe0] sm:$0xff]
        %v3308 = vld [vmem:[%s728 + $0xe8] sm:$0xff]
        %v3309 = vld [vmem:[%s728 + $0xf0] sm:$0xff]
        %v3310 = vld [vmem:[%s728 + $0xf8] sm:$0xff]
        %v3311 = vld [vmem:[%s728 + $0x100] sm:$0xff]
        %v3312 = vld [vmem:[%s728 + $0x108] sm:$0xff]
        %v3313 = vld [vmem:[%s728 + $0x110] sm:$0xff]
        %v3314 = vld [vmem:[%s728 + $0x118] sm:$0xff]
        %v3315 = vld [vmem:[%s728 + $0x120] sm:$0xff]
        %v3316 = vld [vmem:[%s728 + $0x128] sm:$0xff]
        %v3317 = vld [vmem:[%s728 + $0x130] sm:$0xff]
        %v3318 = vld [vmem:[%s728 + $0x138] sm:$0xff]
        %v3319 = vld [vmem:[%s728 + $0x140] sm:$0xff]
        %v3320 = vld [vmem:[%s728 + $0x148] sm:$0xff]
        %v3321 = vld [vmem:[%s728 + $0x150] sm:$0xff]
        %v3322 = vld [vmem:[%s728 + $0x158] sm:$0xff]
        %v3323 = vld [vmem:[%s728 + $0x160] sm:$0xff]
        %v3324 = vld [vmem:[%s728 + $0x168] sm:$0xff]
        %v3325 = vld [vmem:[%s728 + $0x170] sm:$0xff]
        %v3326 = vld [vmem:[%s728 + $0x178] sm:$0xff]
        %v3327 = vld [vmem:[%s728 + $0x180] sm:$0xff]
        %v3328 = vld [vmem:[%s728 + $0x188] sm:$0xff]
        %v3329 = vld [vmem:[%s728 + $0x190] sm:$0xff]
        %v3330 = vld [vmem:[%s728 + $0x198] sm:$0xff]
        %v3331 = vld [vmem:[%s728 + $0x1a0] sm:$0xff]
        %v3332 = vld [vmem:[%s728 + $0x1a8] sm:$0xff]
        %v3333 = vld [vmem:[%s728 + $0x1b0] sm:$0xff]
        %v3334 = vld [vmem:[%s728 + $0x1b8] sm:$0xff]
        %v3335 = vld [vmem:[%s728 + $0x1c0] sm:$0xff]
        %v3336 = vld [vmem:[%s728 + $0x1c8] sm:$0xff]
        %v3337 = vld [vmem:[%s728 + $0x1d0] sm:$0xff]
        %v3338 = vld [vmem:[%s728 + $0x1d8] sm:$0xff]
        %v3339 = vld [vmem:[%s728 + $0x1e0] sm:$0xff]
        %v3340 = vld [vmem:[%s728 + $0x1e8] sm:$0xff]
        %v3341 = vld [vmem:[%s728 + $0x1f0] sm:$0xff]
        %v3342 = vld [vmem:[%s728 + $0x1f8] sm:$0xff]
        %v3407 = vunpack.c.l.b16 %v3279
        %v3408 = vunpack.c.h.b16 %v3279
        %v3409 = vunpack.c.l.b16 %v3280
        %v3410 = vunpack.c.h.b16 %v3280
        %v3411 = vunpack.c.l.b16 %v3281
        %v3412 = vunpack.c.h.b16 %v3281
        %v3413 = vunpack.c.l.b16 %v3282
        %v3414 = vunpack.c.h.b16 %v3282
        %v3415 = vunpack.c.l.b16 %v3283
        %v3416 = vunpack.c.h.b16 %v3283
        %v3417 = vunpack.c.l.b16 %v3284
        %v3418 = vunpack.c.h.b16 %v3284
        %v3419 = vunpack.c.l.b16 %v3285
        %v3420 = vunpack.c.h.b16 %v3285
        %v3421 = vunpack.c.l.b16 %v3286
        %v3422 = vunpack.c.h.b16 %v3286
        %v3423 = vunpack.c.l.b16 %v3287
        %v3424 = vunpack.c.h.b16 %v3287
        %v3425 = vunpack.c.l.b16 %v3288
        %v3426 = vunpack.c.h.b16 %v3288
        %v3427 = vunpack.c.l.b16 %v3289
        %v3428 = vunpack.c.h.b16 %v3289
        %v3429 = vunpack.c.l.b16 %v3290
        %v3430 = vunpack.c.h.b16 %v3290
        %v3431 = vunpack.c.l.b16 %v3291
        %v3432 = vunpack.c.h.b16 %v3291
        %v3433 = vunpack.c.l.b16 %v3292
        %v3434 = vunpack.c.h.b16 %v3292
        %v3435 = vunpack.c.l.b16 %v3293
        %v3436 = vunpack.c.h.b16 %v3293
        %v3437 = vunpack.c.l.b16 %v3294
        %v3438 = vunpack.c.h.b16 %v3294
        %v3439 = vunpack.c.l.b16 %v3295
        %v3440 = vunpack.c.h.b16 %v3295
        %v3441 = vunpack.c.l.b16 %v3296
        %v3442 = vunpack.c.h.b16 %v3296
        %v3443 = vunpack.c.l.b16 %v3297
        %v3444 = vunpack.c.h.b16 %v3297
        %v3445 = vunpack.c.l.b16 %v3298
        %v3446 = vunpack.c.h.b16 %v3298
        %v3447 = vunpack.c.l.b16 %v3299
        %v3448 = vunpack.c.h.b16 %v3299
        %v3449 = vunpack.c.l.b16 %v3300
        %v3450 = vunpack.c.h.b16 %v3300
        %v3451 = vunpack.c.l.b16 %v3301
        %v3452 = vunpack.c.h.b16 %v3301
        %v3453 = vunpack.c.l.b16 %v3302
        %v3454 = vunpack.c.h.b16 %v3302
        %v3455 = vunpack.c.l.b16 %v3303
        %v3456 = vunpack.c.h.b16 %v3303
        %v3457 = vunpack.c.l.b16 %v3304
        %v3458 = vunpack.c.h.b16 %v3304
        %v3459 = vunpack.c.l.b16 %v3305
        %v3460 = vunpack.c.h.b16 %v3305
        %v3461 = vunpack.c.l.b16 %v3306
        %v3462 = vunpack.c.h.b16 %v3306
        %v3463 = vunpack.c.l.b16 %v3307
        %v3464 = vunpack.c.h.b16 %v3307
        %v3465 = vunpack.c.l.b16 %v3308
        %v3466 = vunpack.c.h.b16 %v3308
        %v3467 = vunpack.c.l.b16 %v3309
        %v3468 = vunpack.c.h.b16 %v3309
        %v3469 = vunpack.c.l.b16 %v3310
        %v3470 = vunpack.c.h.b16 %v3310
        %v3471 = vunpack.c.l.b16 %v3311
        %v3472 = vunpack.c.h.b16 %v3311
        %v3473 = vunpack.c.l.b16 %v3312
        %v3474 = vunpack.c.h.b16 %v3312
        %v3475 = vunpack.c.l.b16 %v3313
        %v3476 = vunpack.c.h.b16 %v3313
        %v3477 = vunpack.c.l.b16 %v3314
        %v3478 = vunpack.c.h.b16 %v3314
        %v3479 = vunpack.c.l.b16 %v3315
        %v3480 = vunpack.c.h.b16 %v3315
        %v3481 = vunpack.c.l.b16 %v3316
        %v3482 = vunpack.c.h.b16 %v3316
        %v3483 = vunpack.c.l.b16 %v3317
        %v3484 = vunpack.c.h.b16 %v3317
        %v3485 = vunpack.c.l.b16 %v3318
        %v3486 = vunpack.c.h.b16 %v3318
        %v3487 = vunpack.c.l.b16 %v3319
        %v3488 = vunpack.c.h.b16 %v3319
        %v3489 = vunpack.c.l.b16 %v3320
        %v3490 = vunpack.c.h.b16 %v3320
        %v3491 = vunpack.c.l.b16 %v3321
        %v3492 = vunpack.c.h.b16 %v3321
        %v3493 = vunpack.c.l.b16 %v3322
        %v3494 = vunpack.c.h.b16 %v3322
        %v3495 = vunpack.c.l.b16 %v3323
        %v3496 = vunpack.c.h.b16 %v3323
        %v3497 = vunpack.c.l.b16 %v3324
        %v3498 = vunpack.c.h.b16 %v3324
        %v3499 = vunpack.c.l.b16 %v3325
        %v3500 = vunpack.c.h.b16 %v3325
        %v3501 = vunpack.c.l.b16 %v3326
        %v3502 = vunpack.c.h.b16 %v3326
        %v3503 = vunpack.c.l.b16 %v3327
        %v3504 = vunpack.c.h.b16 %v3327
        %v3505 = vunpack.c.l.b16 %v3328
        %v3506 = vunpack.c.h.b16 %v3328
        %v3507 = vunpack.c.l.b16 %v3329
        %v3508 = vunpack.c.h.b16 %v3329
        %v3509 = vunpack.c.l.b16 %v3330
        %v3510 = vunpack.c.h.b16 %v3330
        %v3511 = vunpack.c.l.b16 %v3331
        %v3512 = vunpack.c.h.b16 %v3331
        %v3513 = vunpack.c.l.b16 %v3332
        %v3514 = vunpack.c.h.b16 %v3332
        %v3515 = vunpack.c.l.b16 %v3333
        %v3516 = vunpack.c.h.b16 %v3333
        %v3517 = vunpack.c.l.b16 %v3334
        %v3518 = vunpack.c.h.b16 %v3334
        %v3519 = vunpack.c.l.b16 %v3335
        %v3520 = vunpack.c.h.b16 %v3335
        %v3521 = vunpack.c.l.b16 %v3336
        %v3522 = vunpack.c.h.b16 %v3336
        %v3523 = vunpack.c.l.b16 %v3337
        %v3524 = vunpack.c.h.b16 %v3337
        %v3525 = vunpack.c.l.b16 %v3338
        %v3526 = vunpack.c.h.b16 %v3338
        %v3527 = vunpack.c.l.b16 %v3339
        %v3528 = vunpack.c.h.b16 %v3339
        %v3529 = vunpack.c.l.b16 %v3340
        %v3530 = vunpack.c.h.b16 %v3340
        %v3531 = vunpack.c.l.b16 %v3341
        %v3532 = vunpack.c.h.b16 %v3341
        %v3533 = vunpack.c.l.b16 %v3342
        %v3534 = vunpack.c.h.b16 %v3342
        %v3535 = vpack.c.b16 %v3409, %v3407
        %v3536 = vpack.c.b16 %v3410, %v3408
        %v3537 = vpack.c.b16 %v3413, %v3411
        %v3538 = vpack.c.b16 %v3414, %v3412
        %v3539 = vpack.c.b16 %v3417, %v3415
        %v3540 = vpack.c.b16 %v3418, %v3416
        %v3541 = vpack.c.b16 %v3421, %v3419
        %v3542 = vpack.c.b16 %v3422, %v3420
        %v3543 = vpack.c.b16 %v3425, %v3423
        %v3544 = vpack.c.b16 %v3426, %v3424
        %v3545 = vpack.c.b16 %v3429, %v3427
        %v3546 = vpack.c.b16 %v3430, %v3428
        %v3547 = vpack.c.b16 %v3433, %v3431
        %v3548 = vpack.c.b16 %v3434, %v3432
        %v3549 = vpack.c.b16 %v3437, %v3435
        %v3550 = vpack.c.b16 %v3438, %v3436
        %v3551 = vpack.c.b16 %v3441, %v3439
        %v3552 = vpack.c.b16 %v3442, %v3440
        %v3553 = vpack.c.b16 %v3445, %v3443
        %v3554 = vpack.c.b16 %v3446, %v3444
        %v3555 = vpack.c.b16 %v3449, %v3447
        %v3556 = vpack.c.b16 %v3450, %v3448
        %v3557 = vpack.c.b16 %v3453, %v3451
        %v3558 = vpack.c.b16 %v3454, %v3452
        %v3559 = vpack.c.b16 %v3457, %v3455
        %v3560 = vpack.c.b16 %v3458, %v3456
        %v3561 = vpack.c.b16 %v3461, %v3459
        %v3562 = vpack.c.b16 %v3462, %v3460
        %v3563 = vpack.c.b16 %v3465, %v3463
        %v3564 = vpack.c.b16 %v3466, %v3464
        %v3565 = vpack.c.b16 %v3469, %v3467
        %v3566 = vpack.c.b16 %v3470, %v3468
        %v3567 = vpack.c.b16 %v3473, %v3471
        %v3568 = vpack.c.b16 %v3474, %v3472
        %v3569 = vpack.c.b16 %v3477, %v3475
        %v3570 = vpack.c.b16 %v3478, %v3476
        %v3571 = vpack.c.b16 %v3481, %v3479
        %v3572 = vpack.c.b16 %v3482, %v3480
        %v3573 = vpack.c.b16 %v3485, %v3483
        %v3574 = vpack.c.b16 %v3486, %v3484
        %v3575 = vpack.c.b16 %v3489, %v3487
        %v3576 = vpack.c.b16 %v3490, %v3488
        %v3577 = vpack.c.b16 %v3493, %v3491
        %v3578 = vpack.c.b16 %v3494, %v3492
        %v3579 = vpack.c.b16 %v3497, %v3495
        %v3580 = vpack.c.b16 %v3498, %v3496
        %v3581 = vpack.c.b16 %v3501, %v3499
        %v3582 = vpack.c.b16 %v3502, %v3500
        %v3583 = vpack.c.b16 %v3505, %v3503
        %v3584 = vpack.c.b16 %v3506, %v3504
        %v3585 = vpack.c.b16 %v3509, %v3507
        %v3586 = vpack.c.b16 %v3510, %v3508
        %v3587 = vpack.c.b16 %v3513, %v3511
        %v3588 = vpack.c.b16 %v3514, %v3512
        %v3589 = vpack.c.b16 %v3517, %v3515
        %v3590 = vpack.c.b16 %v3518, %v3516
        %v3591 = vpack.c.b16 %v3521, %v3519
        %v3592 = vpack.c.b16 %v3522, %v3520
        %v3593 = vpack.c.b16 %v3525, %v3523
        %v3594 = vpack.c.b16 %v3526, %v3524
        %v3595 = vpack.c.b16 %v3529, %v3527
        %v3596 = vpack.c.b16 %v3530, %v3528
        %v3597 = vpack.c.b16 %v3533, %v3531
        %v3598 = vpack.c.b16 %v3534, %v3532
        %3663 = vmatprep.subr.bf16.mxu0 %v3536
        %3664 = vmatpush1.bf16.msra.mxu0 %v3535
        %3665 = vmatprep.subr.bf16.mxu0 %v3538
        %3666 = vmatpush1.bf16.msra.mxu0 %v3537
        %3667 = vmatprep.subr.bf16.mxu0 %v3540
        %3668 = vmatpush1.bf16.msra.mxu0 %v3539
        %3669 = vmatprep.subr.bf16.mxu0 %v3542
        %3670 = vmatpush1.bf16.msra.mxu0 %v3541
        %3671 = vmatprep.subr.bf16.mxu0 %v3544
        %3672 = vmatpush1.bf16.msra.mxu0 %v3543
        %3673 = vmatprep.subr.bf16.mxu0 %v3546
        %3674 = vmatpush1.bf16.msra.mxu0 %v3545
        %3675 = vmatprep.subr.bf16.mxu0 %v3548
        %3676 = vmatpush1.bf16.msra.mxu0 %v3547
        %3677 = vmatprep.subr.bf16.mxu0 %v3550
        %3678 = vmatpush1.bf16.msra.mxu0 %v3549
        %3679 = vmatprep.subr.bf16.mxu0 %v3552
        %3680 = vmatpush1.bf16.msra.mxu0 %v3551
        %3681 = vmatprep.subr.bf16.mxu0 %v3554
        %3682 = vmatpush1.bf16.msra.mxu0 %v3553
        %3683 = vmatprep.subr.bf16.mxu0 %v3556
        %3684 = vmatpush1.bf16.msra.mxu0 %v3555
        %3685 = vmatprep.subr.bf16.mxu0 %v3558
        %3686 = vmatpush1.bf16.msra.mxu0 %v3557
        %3687 = vmatprep.subr.bf16.mxu0 %v3560
        %3688 = vmatpush1.bf16.msra.mxu0 %v3559
        %3689 = vmatprep.subr.bf16.mxu0 %v3562
        %3690 = vmatpush1.bf16.msra.mxu0 %v3561
        %3691 = vmatprep.subr.bf16.mxu0 %v3564
        %3692 = vmatpush1.bf16.msra.mxu0 %v3563
        %3693 = vmatprep.subr.bf16.mxu0 %v3566
        %3694 = vmatpush1.bf16.msra.mxu0 %v3565
        %3695 = vmatprep.mubr.bf16.mxu0 %v3276
        %3696 = vmatmul.mubr.bf16.gmra.mrb[0].mxu0 %v3275
        %v3697 = vpop.f32.mrb[0].mxu0
        %v3698 = vadd.f32 0.0, %v3697
        %v3699 = vpop.f32.mrb[0].mxu0
        %v3700 = vadd.f32 0.0, %v3699
        %v3701 = vpop.f32.mrb[0].mxu0
        %v3702 = vadd.f32 0.0, %v3701
        %v3703 = vpop.f32.mrb[0].mxu0
        %v3704 = vadd.f32 0.0, %v3703
        %3705 = vdwg.mxu0
        %3706 = vmatprep.subr.bf16.mxu0 %v3568
        %3707 = vmatpush1.bf16.msra.mxu0 %v3567
        %3708 = vmatprep.subr.bf16.mxu0 %v3570
        %3709 = vmatpush1.bf16.msra.mxu0 %v3569
        %3710 = vmatprep.subr.bf16.mxu0 %v3572
        %3711 = vmatpush1.bf16.msra.mxu0 %v3571
        %3712 = vmatprep.subr.bf16.mxu0 %v3574
        %3713 = vmatpush1.bf16.msra.mxu0 %v3573
        %3714 = vmatprep.subr.bf16.mxu0 %v3576
        %3715 = vmatpush1.bf16.msra.mxu0 %v3575
        %3716 = vmatprep.subr.bf16.mxu0 %v3578
        %3717 = vmatpush1.bf16.msra.mxu0 %v3577
        %3718 = vmatprep.subr.bf16.mxu0 %v3580
        %3719 = vmatpush1.bf16.msra.mxu0 %v3579
        %3720 = vmatprep.subr.bf16.mxu0 %v3582
        %3721 = vmatpush1.bf16.msra.mxu0 %v3581
        %3722 = vmatprep.subr.bf16.mxu0 %v3584
        %3723 = vmatpush1.bf16.msra.mxu0 %v3583
        %3724 = vmatprep.subr.bf16.mxu0 %v3586
        %3725 = vmatpush1.bf16.msra.mxu0 %v3585
        %3726 = vmatprep.subr.bf16.mxu0 %v3588
        %3727 = vmatpush1.bf16.msra.mxu0 %v3587
        %3728 = vmatprep.subr.bf16.mxu0 %v3590
        %3729 = vmatpush1.bf16.msra.mxu0 %v3589
        %3730 = vmatprep.subr.bf16.mxu0 %v3592
        %3731 = vmatpush1.bf16.msra.mxu0 %v3591
        %3732 = vmatprep.subr.bf16.mxu0 %v3594
        %3733 = vmatpush1.bf16.msra.mxu0 %v3593
        %3734 = vmatprep.subr.bf16.mxu0 %v3596
        %3735 = vmatpush1.bf16.msra.mxu0 %v3595
        %3736 = vmatprep.subr.bf16.mxu0 %v3598
        %3737 = vmatpush1.bf16.msra.mxu0 %v3597
        %3738 = vmatprep.mubr.bf16.mxu0 %v3278
        %3739 = vmatmul.mubr.bf16.gmra.mrb[0].mxu0 %v3277
        %v3740 = vpop.f32.mrb[0].mxu0
        %v3741 = vadd.f32 %v3698, %v3740
        %v3742 = vpop.f32.mrb[0].mxu0
        %v3743 = vadd.f32 %v3700, %v3742
        %v3744 = vpop.f32.mrb[0].mxu0
        %v3745 = vadd.f32 %v3702, %v3744
        %v3746 = vpop.f32.mrb[0].mxu0
        %v3747 = vadd.f32 %v3704, %v3746
        %3748 = vdwg.mxu0
        %v3749 = vadd.f32 %v2201, %v3741
        %v3750 = vadd.f32 %v2202, %v3743
        %v3751 = vadd.f32 %v2203, %v3745
        %v3752 = vadd.f32 %v2204, %v3747
        %3753 = vst [vmem:[%s827] sm:$0xff] %v3749
        %3754 = vst [vmem:[%s827 + $0x8] sm:$0xff] %v3750
        %3755 = vst [vmem:[%s827 + $0x10] sm:$0xff] %v3751
        %3756 = vst [vmem:[%s827 + $0x18] sm:$0xff] %v3752
        %p3757 = scmp.eq.s32.totalorder %s47, 1
        // Predicated region
        $region113: #{transformer_forward.1} parent=83 // pred_check
          %p3758 = pneg %p3757
        $region114: #{transformer_forward.1} parent=83 // pred_check_branch
          %3760 = sbr.rel (%p3758) target = $region116
        $region115: #{transformer_forward.1} parent=83 // pred_region
          %v3761 = vld [vmem:[%s827] sm:$0xff]
          %v3762 = vld [vmem:[%s827 + $0x8] sm:$0xff]
          %v3763 = vld [vmem:[%s827 + $0x10] sm:$0xff]
          %v3764 = vld [vmem:[%s827 + $0x18] sm:$0xff]
          %v3765 = vld [vmem:[%s7] sm:$0x3]
          %v3766 = vld [vmem:[%s8] sm:$0x3]
          %v3767 = vadd.f32 %v3761, %v3762
          %3768 = vadd.xlane.f32.xlu0 %v3767
          %v3769 = vpop.xlane.xlu0 %3768
          %v3770 = vadd.f32 %v3763, %v3764
          %3771 = vadd.xlane.f32.xlu0 %v3770
          %v3772 = vpop.xlane.xlu0 %3771
          %v3773 = vmul.f32 %v3769, %v879
          %v3774 = vmul.f32 %v3772, %v879
          %v3775 = vsub.f32 %v3761, %v3773
          %v3776 = vsub.f32 %v3762, %v3773
          %v3777 = vsub.f32 %v3763, %v3774
          %v3778 = vsub.f32 %v3764, %v3774
          %v3779 = vmul.f32 %v3775, %v3775
          %v3780 = vmul.f32 %v3776, %v3776
          %v3781 = vmul.f32 %v3777, %v3777
          %v3782 = vmul.f32 %v3778, %v3778
          %v3783 = vadd.f32 %v3779, %v3780
          %3784 = vadd.xlane.f32.xlu0 %v3783
          %v3785 = vpop.xlane.xlu0 %3784
          %v3786 = vadd.f32 %v3781, %v3782
          %3787 = vadd.xlane.f32.xlu0 %v3786
          %v3788 = vpop.xlane.xlu0 %3787
          %v3789 = vmul.f32 %v3785, %v879
          %v3790 = vmul.f32 %v3788, %v879
          %v3791 = vadd.f32 %v3789, 1e-05
          %v3792 = vadd.f32 %v3790, 1e-05
          %v3793 = vrsqrt.pop %v3791
          %v3794 = vrsqrt.pop %v3792
          %v3795 = vmul.f32 %v3775, %v3793
          %v3796 = vmul.f32 %v3776, %v3793
          %v3797 = vmul.f32 %v3777, %v3794
          %v3798 = vmul.f32 %v3778, %v3794
          %v3800 = vlaneseq
          %v3801 = vshrl.u32 %v3800, 7
          %v3802 = vsub.s32 0, %v3801
          %v3803 = vrot.slane %v3765, %v3802
          %v3804 = vlaneseq
          %v3805 = vshrl.u32 %v3804, 7
          %v3806 = vsub.s32 1, %v3805
          %v3807 = vrot.slane %v3765, %v3806
          %v3810 = vmul.f32 %v3795, %v3803
          %v3811 = vmul.f32 %v3796, %v3807
          %v3812 = vmul.f32 %v3797, %v3803
          %v3813 = vmul.f32 %v3798, %v3807
          %v3815 = vlaneseq
          %v3816 = vshrl.u32 %v3815, 7
          %v3817 = vsub.s32 0, %v3816
          %v3818 = vrot.slane %v3766, %v3817
          %v3819 = vlaneseq
          %v3820 = vshrl.u32 %v3819, 7
          %v3821 = vsub.s32 1, %v3820
          %v3822 = vrot.slane %v3766, %v3821
          %v3825 = vadd.f32 %v3810, %v3818
          %v3826 = vadd.f32 %v3811, %v3822
          %v3827 = vadd.f32 %v3812, %v3818
          %v3828 = vadd.f32 %v3813, %v3822
          %3829 = vst [vmem:[%s827] sm:$0xff] %v3825
          %3830 = vst [vmem:[%s827 + $0x8] sm:$0xff] %v3826
          %3831 = vst [vmem:[%s827 + $0x10] sm:$0xff] %v3827
          %3832 = vst [vmem:[%s827 + $0x18] sm:$0xff] %v3828
        $region116: #{transformer_forward.1} parent=83 // pred_fallthru
          _
        %s3833 = sand.u32 %s458, 1
        %s3834 = scalar_lea.sflag [#allocation4], %s3833
        %s3835 = sand.u32 %s458, 1
        %s3836 = smul.addr %s3835, 32
        %s3837 = scalar_lea.vmem [#allocation13], %s3836
        // Predicated region
        $region117: #{transformer_forward.1} parent=83 // pred_check
          %p3838 = pneg %p468
        $region118: #{transformer_forward.1} parent=83 // pred_check_branch
          %3840 = sbr.rel (%p3838) target = $region120
        $region119: #{transformer_forward.1} parent=83 // pred_region
          %s3842 = ssub.s32 512, 512
          %3843 = vsyncadd %s3834, %s3842
          %s3844 = smul.addr %s46, 4
          %s3845 = smul.addr %s3844, 128
          %s3846 = scalar_lea.hbm %s16, %s3845
          %s3847 = sshll.u32 %s3837, 4
          %s3848 = int_to_ptr.vmem [resolvable:$true] %s3847
          %3853 = dma.vmem_to_hbm [thread:$0]  %s3848, 512, %s3846, %s3834, 256, 256, 16
        $region120: #{transformer_forward.1} parent=83 // pred_fallthru
          _
      $region84: #{transformer_forward.1} parent=5 // pred_fallthru
        _
      %p3854 = scmp.le.s32.totalorder 2, %s37
      // Predicated region
      $region121: #{transformer_forward.1} parent=5 // pred_check
        %p3855 = pneg %p3854
      $region122: #{transformer_forward.1} parent=5 // pred_check_branch
        %3857 = sbr.rel (%p3855) target = $region124
      $region123: #{transformer_forward.1} parent=5 // pred_region
        %s3858 = ssub.s32 %s37, 2
        // Predicated region
        $region125: #{transformer_forward.1} parent=123 // pred_check
          %p3859 = pneg %p474
        $region126: #{transformer_forward.1} parent=123 // pred_check_branch
          %3861 = sbr.rel (%p3859) target = $region128
        $region127: #{transformer_forward.1} parent=123 // pred_region
          %s3862 = sand.u32 %s459, 1
          %s3863 = scalar_lea.sflag [#allocation4], %s3862
          %s3864 = sand.u32 %s459, 1
          %s3865 = smul.addr %s3864, 32
          %s3866 = scalar_lea.vmem [#allocation13], %s3865
          %3867 = dma.done %s3863, 512
        $region128: #{transformer_forward.1} parent=123 // pred_fallthru
          _
      $region124: #{transformer_forward.1} parent=5 // pred_fallthru
        _
    $region6: #{transformer_forward.1} parent=1 // loop_footer
      %s41 = sadd.s32 1, %s37
    $region7: #{transformer_forward.1} parent=1 // loop_footer_branch
      %36 = sbr.rel target = $region3
    $region8: #{transformer_forward.1} parent=1 // loop_exit
      _
    %3868 = vsyncpa [#allocation3], 1
    %s3869 = scalar_lea.sflag [#allocation3], 1
    %3870 = vsyncpa %s3869, 1
    %3871 = vsyncpa [#allocation6], 1
    %s3872 = scalar_lea.sflag [#allocation6], 1
    %3873 = vsyncpa %s3872, 1
    %3874 = vsyncpa [#allocation9], 1
    %s3875 = scalar_lea.sflag [#allocation9], 1
    %3876 = vsyncpa %s3875, 1
    %3877 = vsyncpa [#allocation12], 1
    %s3878 = scalar_lea.sflag [#allocation12], 1
    %3879 = vsyncpa %s3878, 1
    %3880 = vsyncpa [#allocation4], 1
    %s3881 = scalar_lea.sflag [#allocation4], 1
    %3882 = vsyncpa %s3881, 1

</llo_original>
